<compile_context>
chip_gen: v7x
topology: tpu7x:2x2x1
jax: 0.10.0
libtpu: 0.0.40
codegen_flags: <defaults>
</compile_context>

<pallas_src>
import functools

import jax
import jax.numpy as jnp
from jax.experimental import pallas as pl
from jax.experimental.pallas import tpu as pltpu

# --------------------------- synthetic configuration ---------------------------
# TODO(synk): vocab_size comes from `char_to_idx{T_}.npy` in the original script;
#             no file I/O allowed, so we synthesize a small, lane-friendly vocab.
VOCAB_SIZE = 128              # == input_size in the original module (one-hot chars)
INPUT_SIZE = VOCAB_SIZE
HIDDEN_SIZE = 256             # matches `hidden_size = 256` in the original script


def _sigmoid(z):
    return 1.0 / (1.0 + jnp.exp(-z))


# --------------------------------- Pallas kernel --------------------------------
def _lstm_head_kernel(x_ref, wih_ref, whh_ref, b_ref, wout_ref, bout_ref,
                      o_ref, h_all_ref, *, T, B, H):
    """Fused single-layer LSTM (T steps) + Linear head.

    x_ref    : [T*B, I]   time-major rows (row t*B + b <-> timestep t, batch b)
    wih_ref  : [I, 4H]    gate order (i, f, g, o) -- PyTorch convention
    whh_ref  : [H, 4H]
    b_ref    : [1, 4H]    b_ih + b_hh
    wout_ref : [H, V]
    bout_ref : [1, V]
    o_ref    : [T*B, V]   logits (time-major rows)
    h_all_ref: [T*B, H]   VMEM scratch holding every timestep's hidden state
    """
    x = x_ref[...].astype(jnp.float32)
    wih = wih_ref[...].astype(jnp.float32)
    whh = whh_ref[...].astype(jnp.float32)

    # Input contribution for every timestep in one MXU matmul (hoisted from loop).
    xw = jnp.dot(x, wih, preferred_element_type=jnp.float32) + b_ref[...]  # [T*B,4H]

    h = jnp.zeros((B, H), jnp.float32)
    c = jnp.zeros((B, H), jnp.float32)
    for t in range(T):                       # tiny static trip count -> unrolled
        gates = xw[t * B:(t + 1) * B, :] + jnp.dot(
            h, whh, preferred_element_type=jnp.float32)                    # [B, 4H]
        i_g = _sigmoid(gates[:, 0 * H:1 * H])
        f_g = _sigmoid(gates[:, 1 * H:2 * H])
        g_g = jnp.tanh(gates[:, 2 * H:3 * H])
        o_g = _sigmoid(gates[:, 3 * H:4 * H])
        c = f_g * c + i_g * g_g
        h = o_g * jnp.tanh(c)
        h_all_ref[t * B:(t + 1) * B, :] = h

    # Vocab projection for all timesteps in one matmul; V=128 -> lane-dense store.
    logits = jnp.dot(h_all_ref[...], wout_ref[...],
                     preferred_element_type=jnp.float32) + bout_ref[...]
    o_ref[...] = logits.astype(o_ref.dtype)


# ------------------------------- wrapper / forward -------------------------------
def rnn_text_generator_forward(params, input_seq):
    """input_seq: [B, T, input_size] float (batch_first) -> logits [B, T, vocab]."""
    B, T, I = input_seq.shape
    H = params["weight_hh"].shape[1]         # weight_hh: [4H, H]
    V = params["linear_w"].shape[0]

    # PyTorch parameter layouts -> matmul-friendly (right-multiply) layouts.
    wih = params["weight_ih"].T                                   # [I, 4H]
    whh = params["weight_hh"].T                                   # [H, 4H]
    b = (params["bias_ih"] + params["bias_hh"]).reshape(1, 4 * H)
    wout = params["linear_w"].T                                   # [H, V]
    bout = params["linear_b"].reshape(1, V)

    # Time-major 2-D activations: row t*B + b <-> (timestep t, batch b).
    x2d = jnp.transpose(input_seq, (1, 0, 2)).reshape(T * B, I)

    kernel = functools.partial(_lstm_head_kernel, T=T, B=B, H=H)
    vmem = pl.BlockSpec(memory_space=pltpu.MemorySpace.VMEM)      # whole array in VMEM
    out = pl.pallas_call(
        kernel,
        out_shape=jax.ShapeDtypeStruct((T * B, V), jnp.float32),
        in_specs=[vmem] * 6,
        out_specs=vmem,
        scratch_shapes=[pltpu.VMEM((T * B, H), jnp.float32)],
    )(x2d, wih, whh, b, wout, bout)

    return out.reshape(T, B, V).transpose(1, 0, 2)                # [B, T, V]


# ------------------------------ pure-JAX reference --------------------------------
def reference_forward(params, input_seq):
    B, T, I = input_seq.shape
    H = params["weight_hh"].shape[1]
    wih = params["weight_ih"].T
    whh = params["weight_hh"].T
    b = params["bias_ih"] + params["bias_hh"]

    def step(carry, x_t):
        h, c = carry
        gates = x_t @ wih + h @ whh + b
        i_g = jax.nn.sigmoid(gates[:, 0:H])
        f_g = jax.nn.sigmoid(gates[:, H:2 * H])
        g_g = jnp.tanh(gates[:, 2 * H:3 * H])
        o_g = jax.nn.sigmoid(gates[:, 3 * H:4 * H])
        c = f_g * c + i_g * g_g
        h = o_g * jnp.tanh(c)
        return (h, c), h

    x_tm = jnp.transpose(input_seq, (1, 0, 2))                    # [T, B, I]
    init = (jnp.zeros((B, H), jnp.float32), jnp.zeros((B, H), jnp.float32))
    _, hs = jax.lax.scan(step, init, x_tm)                        # [T, B, H]
    hs = jnp.transpose(hs, (1, 0, 2))                             # [B, T, H]
    return hs @ params["linear_w"].T + params["linear_b"]


# ---------------------------------- parameters ------------------------------------
def init_params(key):
    H, I, V = HIDDEN_SIZE, INPUT_SIZE, VOCAB_SIZE
    k = jax.random.split(key, 6)
    s = 1.0 / (H ** 0.5)                                          # PyTorch default init

    def u(kk, shape):
        return jax.random.uniform(kk, shape, jnp.float32, -s, s)

    return {
        "weight_ih": u(k[0], (4 * H, I)),     # PyTorch nn.LSTM layout
        "weight_hh": u(k[1], (4 * H, H)),
        "bias_ih":   u(k[2], (4 * H,)),
        "bias_hh":   u(k[3], (4 * H,)),
        "linear_w":  u(k[4], (V, H)),         # PyTorch nn.Linear layout
        "linear_b":  u(k[5], (V,)),
    }


# -------------------------------------- main ---------------------------------------
if __name__ == "__main__":
    key = jax.random.PRNGKey(0)
    pkey, ikey = jax.random.split(key)

    params = init_params(pkey)

    B, T = 2, 8
    char_ids = jax.random.randint(ikey, (B, T), 0, VOCAB_SIZE, dtype=jnp.int32)
    input_seq = jax.nn.one_hot(char_ids, VOCAB_SIZE, dtype=jnp.float32)  # [B, T, I]

    fwd = jax.jit(rnn_text_generator_forward)
    logits = jax.block_until_ready(fwd(params, input_seq))

    assert logits.shape == (B, T, VOCAB_SIZE)
    assert bool(jnp.all(jnp.isfinite(logits)))

    ref = jax.block_until_ready(jax.jit(reference_forward)(params, input_seq))
    assert bool(jnp.allclose(logits, ref, atol=1e-3, rtol=1e-3))

    print("KERNEL_OK")
</pallas_src>

<mosaic_0001>
module attributes {stable_mosaic.version = 11 : i64} {
  func.func @_lstm_head_kernel(%arg0: memref<16x128xf32, #tpu.memory_space<vmem>>, %arg1: memref<128x1024xf32, #tpu.memory_space<vmem>>, %arg2: memref<256x1024xf32, #tpu.memory_space<vmem>>, %arg3: memref<1x1024xf32, #tpu.memory_space<vmem>>, %arg4: memref<256x128xf32, #tpu.memory_space<vmem>>, %arg5: memref<1x128xf32, #tpu.memory_space<vmem>>, %arg6: memref<16x128xf32, #tpu.memory_space<vmem>>, %arg7: memref<16x256xf32, #tpu.memory_space<vmem>>) attributes {dimension_semantics = [], scalar_prefetch = 0 : i64, scratch_operands = 1 : i64, tpu.core_type = #tpu.core_type<tc>} {
    %c0 = arith.constant 0 : index
    %c0_0 = arith.constant 0 : index
    %0 = vector.load %arg0[%c0, %c0_0] : memref<16x128xf32, #tpu.memory_space<vmem>>, vector<16x128xf32>
    %c0_1 = arith.constant 0 : index
    %c0_2 = arith.constant 0 : index
    %1 = vector.load %arg1[%c0_1, %c0_2] : memref<128x1024xf32, #tpu.memory_space<vmem>>, vector<128x1024xf32>
    %c0_3 = arith.constant 0 : index
    %c0_4 = arith.constant 0 : index
    %2 = vector.load %arg2[%c0_3, %c0_4] : memref<256x1024xf32, #tpu.memory_space<vmem>>, vector<256x1024xf32>
    %cst = arith.constant dense<0.000000e+00> : vector<16x1024xf32>
    %3 = tpu.matmul %0, %1, %cst {dimension_numbers = #tpu.dot_dimension_numbers<[1], [0], [0], [1], [0, 0, 1, 1], [], []>} : vector<16x128xf32>, vector<128x1024xf32>, vector<16x1024xf32> -> vector<16x1024xf32>
    %c0_5 = arith.constant 0 : index
    %c0_6 = arith.constant 0 : index
    %4 = vector.load %arg3[%c0_5, %c0_6] : memref<1x1024xf32, #tpu.memory_space<vmem>>, vector<1x1024xf32>
    %5 = vector.broadcast %4 : vector<1x1024xf32> to vector<16x1024xf32>
    %6 = arith.addf %3, %5 : vector<16x1024xf32>
    %cst_7 = arith.constant 0.000000e+00 : f32
    %7 = vector.broadcast %cst_7 : f32 to vector<2x256xf32>
    %cst_8 = arith.constant 0.000000e+00 : f32
    %8 = vector.broadcast %cst_8 : f32 to vector<2x256xf32>
    %9 = vector.extract_strided_slice %6 {offsets = [0, 0], sizes = [2, 1024], strides = [1, 1]} : vector<16x1024xf32> to vector<2x1024xf32>
    %cst_9 = arith.constant dense<0.000000e+00> : vector<2x1024xf32>
    %10 = tpu.matmul %7, %2, %cst_9 {dimension_numbers = #tpu.dot_dimension_numbers<[1], [0], [0], [1], [0, 0, 1, 1], [], []>} : vector<2x256xf32>, vector<256x1024xf32>, vector<2x1024xf32> -> vector<2x1024xf32>
    %11 = arith.addf %9, %10 : vector<2x1024xf32>
    %12 = vector.extract_strided_slice %11 {offsets = [0, 0], sizes = [2, 256], strides = [1, 1]} : vector<2x1024xf32> to vector<2x256xf32>
    %cst_10 = arith.constant 0.000000e+00 : f32
    %13 = vector.broadcast %cst_10 : f32 to vector<2x256xf32>
    %14 = arith.subf %13, %12 : vector<2x256xf32>
    %15 = math.exp %14 : vector<2x256xf32>
    %cst_11 = arith.constant 1.000000e+00 : f32
    %16 = vector.broadcast %cst_11 : f32 to vector<2x256xf32>
    %17 = arith.addf %16, %15 : vector<2x256xf32>
    %cst_12 = arith.constant 1.000000e+00 : f32
    %18 = vector.broadcast %cst_12 : f32 to vector<2x256xf32>
    %19 = arith.divf %18, %17 : vector<2x256xf32>
    %20 = vector.extract_strided_slice %11 {offsets = [0, 256], sizes = [2, 256], strides = [1, 1]} : vector<2x1024xf32> to vector<2x256xf32>
    %cst_13 = arith.constant 0.000000e+00 : f32
    %21 = vector.broadcast %cst_13 : f32 to vector<2x256xf32>
    %22 = arith.subf %21, %20 : vector<2x256xf32>
    %23 = math.exp %22 : vector<2x256xf32>
    %cst_14 = arith.constant 1.000000e+00 : f32
    %24 = vector.broadcast %cst_14 : f32 to vector<2x256xf32>
    %25 = arith.addf %24, %23 : vector<2x256xf32>
    %cst_15 = arith.constant 1.000000e+00 : f32
    %26 = vector.broadcast %cst_15 : f32 to vector<2x256xf32>
    %27 = arith.divf %26, %25 : vector<2x256xf32>
    %28 = vector.extract_strided_slice %11 {offsets = [0, 512], sizes = [2, 256], strides = [1, 1]} : vector<2x1024xf32> to vector<2x256xf32>
    %29 = math.tanh %28 : vector<2x256xf32>
    %30 = vector.extract_strided_slice %11 {offsets = [0, 768], sizes = [2, 256], strides = [1, 1]} : vector<2x1024xf32> to vector<2x256xf32>
    %cst_16 = arith.constant 0.000000e+00 : f32
    %31 = vector.broadcast %cst_16 : f32 to vector<2x256xf32>
    %32 = arith.subf %31, %30 : vector<2x256xf32>
    %33 = math.exp %32 : vector<2x256xf32>
    %cst_17 = arith.constant 1.000000e+00 : f32
    %34 = vector.broadcast %cst_17 : f32 to vector<2x256xf32>
    %35 = arith.addf %34, %33 : vector<2x256xf32>
    %cst_18 = arith.constant 1.000000e+00 : f32
    %36 = vector.broadcast %cst_18 : f32 to vector<2x256xf32>
    %37 = arith.divf %36, %35 : vector<2x256xf32>
    %38 = arith.mulf %27, %8 : vector<2x256xf32>
    %39 = arith.mulf %19, %29 : vector<2x256xf32>
    %40 = arith.addf %38, %39 : vector<2x256xf32>
    %41 = math.tanh %40 : vector<2x256xf32>
    %42 = arith.mulf %37, %41 : vector<2x256xf32>
    %c0_19 = arith.constant 0 : index
    %c0_20 = arith.constant 0 : index
    %43 = vector.load %arg7[%c0_19, %c0_20] : memref<16x256xf32, #tpu.memory_space<vmem>>, vector<2x256xf32>
    tpu.vector_store %arg7[%c0_19, %c0_20], %42 {strides = array<i32>} : memref<16x256xf32, #tpu.memory_space<vmem>>, vector<2x256xf32>,
    %44 = vector.extract_strided_slice %6 {offsets = [2, 0], sizes = [2, 1024], strides = [1, 1]} : vector<16x1024xf32> to vector<2x1024xf32>
    %cst_21 = arith.constant dense<0.000000e+00> : vector<2x1024xf32>
    %45 = tpu.matmul %42, %2, %cst_21 {dimension_numbers = #tpu.dot_dimension_numbers<[1], [0], [0], [1], [0, 0, 1, 1], [], []>} : vector<2x256xf32>, vector<256x1024xf32>, vector<2x1024xf32> -> vector<2x1024xf32>
    %46 = arith.addf %44, %45 : vector<2x1024xf32>
    %47 = vector.extract_strided_slice %46 {offsets = [0, 0], sizes = [2, 256], strides = [1, 1]} : vector<2x1024xf32> to vector<2x256xf32>
    %cst_22 = arith.constant 0.000000e+00 : f32
    %48 = vector.broadcast %cst_22 : f32 to vector<2x256xf32>
    %49 = arith.subf %48, %47 : vector<2x256xf32>
    %50 = math.exp %49 : vector<2x256xf32>
    %cst_23 = arith.constant 1.000000e+00 : f32
    %51 = vector.broadcast %cst_23 : f32 to vector<2x256xf32>
    %52 = arith.addf %51, %50 : vector<2x256xf32>
    %cst_24 = arith.constant 1.000000e+00 : f32
    %53 = vector.broadcast %cst_24 : f32 to vector<2x256xf32>
    %54 = arith.divf %53, %52 : vector<2x256xf32>
    %55 = vector.extract_strided_slice %46 {offsets = [0, 256], sizes = [2, 256], strides = [1, 1]} : vector<2x1024xf32> to vector<2x256xf32>
    %cst_25 = arith.constant 0.000000e+00 : f32
    %56 = vector.broadcast %cst_25 : f32 to vector<2x256xf32>
    %57 = arith.subf %56, %55 : vector<2x256xf32>
    %58 = math.exp %57 : vector<2x256xf32>
    %cst_26 = arith.constant 1.000000e+00 : f32
    %59 = vector.broadcast %cst_26 : f32 to vector<2x256xf32>
    %60 = arith.addf %59, %58 : vector<2x256xf32>
    %cst_27 = arith.constant 1.000000e+00 : f32
    %61 = vector.broadcast %cst_27 : f32 to vector<2x256xf32>
    %62 = arith.divf %61, %60 : vector<2x256xf32>
    %63 = vector.extract_strided_slice %46 {offsets = [0, 512], sizes = [2, 256], strides = [1, 1]} : vector<2x1024xf32> to vector<2x256xf32>
    %64 = math.tanh %63 : vector<2x256xf32>
    %65 = vector.extract_strided_slice %46 {offsets = [0, 768], sizes = [2, 256], strides = [1, 1]} : vector<2x1024xf32> to vector<2x256xf32>
    %cst_28 = arith.constant 0.000000e+00 : f32
    %66 = vector.broadcast %cst_28 : f32 to vector<2x256xf32>
    %67 = arith.subf %66, %65 : vector<2x256xf32>
    %68 = math.exp %67 : vector<2x256xf32>
    %cst_29 = arith.constant 1.000000e+00 : f32
    %69 = vector.broadcast %cst_29 : f32 to vector<2x256xf32>
    %70 = arith.addf %69, %68 : vector<2x256xf32>
    %cst_30 = arith.constant 1.000000e+00 : f32
    %71 = vector.broadcast %cst_30 : f32 to vector<2x256xf32>
    %72 = arith.divf %71, %70 : vector<2x256xf32>
    %73 = arith.mulf %62, %40 : vector<2x256xf32>
    %74 = arith.mulf %54, %64 : vector<2x256xf32>
    %75 = arith.addf %73, %74 : vector<2x256xf32>
    %76 = math.tanh %75 : vector<2x256xf32>
    %77 = arith.mulf %72, %76 : vector<2x256xf32>
    %c2 = arith.constant 2 : index
    %c0_31 = arith.constant 0 : index
    %78 = vector.load %arg7[%c2, %c0_31] : memref<16x256xf32, #tpu.memory_space<vmem>>, vector<2x256xf32>
    tpu.vector_store %arg7[%c2, %c0_31], %77 {strides = array<i32>} : memref<16x256xf32, #tpu.memory_space<vmem>>, vector<2x256xf32>,
    %79 = vector.extract_strided_slice %6 {offsets = [4, 0], sizes = [2, 1024], strides = [1, 1]} : vector<16x1024xf32> to vector<2x1024xf32>
    %cst_32 = arith.constant dense<0.000000e+00> : vector<2x1024xf32>
    %80 = tpu.matmul %77, %2, %cst_32 {dimension_numbers = #tpu.dot_dimension_numbers<[1], [0], [0], [1], [0, 0, 1, 1], [], []>} : vector<2x256xf32>, vector<256x1024xf32>, vector<2x1024xf32> -> vector<2x1024xf32>
    %81 = arith.addf %79, %80 : vector<2x1024xf32>
    %82 = vector.extract_strided_slice %81 {offsets = [0, 0], sizes = [2, 256], strides = [1, 1]} : vector<2x1024xf32> to vector<2x256xf32>
    %cst_33 = arith.constant 0.000000e+00 : f32
    %83 = vector.broadcast %cst_33 : f32 to vector<2x256xf32>
    %84 = arith.subf %83, %82 : vector<2x256xf32>
    %85 = math.exp %84 : vector<2x256xf32>
    %cst_34 = arith.constant 1.000000e+00 : f32
    %86 = vector.broadcast %cst_34 : f32 to vector<2x256xf32>
    %87 = arith.addf %86, %85 : vector<2x256xf32>
    %cst_35 = arith.constant 1.000000e+00 : f32
    %88 = vector.broadcast %cst_35 : f32 to vector<2x256xf32>
    %89 = arith.divf %88, %87 : vector<2x256xf32>
    %90 = vector.extract_strided_slice %81 {offsets = [0, 256], sizes = [2, 256], strides = [1, 1]} : vector<2x1024xf32> to vector<2x256xf32>
    %cst_36 = arith.constant 0.000000e+00 : f32
    %91 = vector.broadcast %cst_36 : f32 to vector<2x256xf32>
    %92 = arith.subf %91, %90 : vector<2x256xf32>
    %93 = math.exp %92 : vector<2x256xf32>
    %cst_37 = arith.constant 1.000000e+00 : f32
    %94 = vector.broadcast %cst_37 : f32 to vector<2x256xf32>
    %95 = arith.addf %94, %93 : vector<2x256xf32>
    %cst_38 = arith.constant 1.000000e+00 : f32
    %96 = vector.broadcast %cst_38 : f32 to vector<2x256xf32>
    %97 = arith.divf %96, %95 : vector<2x256xf32>
    %98 = vector.extract_strided_slice %81 {offsets = [0, 512], sizes = [2, 256], strides = [1, 1]} : vector<2x1024xf32> to vector<2x256xf32>
    %99 = math.tanh %98 : vector<2x256xf32>
    %100 = vector.extract_strided_slice %81 {offsets = [0, 768], sizes = [2, 256], strides = [1, 1]} : vector<2x1024xf32> to vector<2x256xf32>
    %cst_39 = arith.constant 0.000000e+00 : f32
    %101 = vector.broadcast %cst_39 : f32 to vector<2x256xf32>
    %102 = arith.subf %101, %100 : vector<2x256xf32>
    %103 = math.exp %102 : vector<2x256xf32>
    %cst_40 = arith.constant 1.000000e+00 : f32
    %104 = vector.broadcast %cst_40 : f32 to vector<2x256xf32>
    %105 = arith.addf %104, %103 : vector<2x256xf32>
    %cst_41 = arith.constant 1.000000e+00 : f32
    %106 = vector.broadcast %cst_41 : f32 to vector<2x256xf32>
    %107 = arith.divf %106, %105 : vector<2x256xf32>
    %108 = arith.mulf %97, %75 : vector<2x256xf32>
    %109 = arith.mulf %89, %99 : vector<2x256xf32>
    %110 = arith.addf %108, %109 : vector<2x256xf32>
    %111 = math.tanh %110 : vector<2x256xf32>
    %112 = arith.mulf %107, %111 : vector<2x256xf32>
    %c4 = arith.constant 4 : index
    %c0_42 = arith.constant 0 : index
    %113 = vector.load %arg7[%c4, %c0_42] : memref<16x256xf32, #tpu.memory_space<vmem>>, vector<2x256xf32>
    tpu.vector_store %arg7[%c4, %c0_42], %112 {strides = array<i32>} : memref<16x256xf32, #tpu.memory_space<vmem>>, vector<2x256xf32>,
    %114 = vector.extract_strided_slice %6 {offsets = [6, 0], sizes = [2, 1024], strides = [1, 1]} : vector<16x1024xf32> to vector<2x1024xf32>
    %cst_43 = arith.constant dense<0.000000e+00> : vector<2x1024xf32>
    %115 = tpu.matmul %112, %2, %cst_43 {dimension_numbers = #tpu.dot_dimension_numbers<[1], [0], [0], [1], [0, 0, 1, 1], [], []>} : vector<2x256xf32>, vector<256x1024xf32>, vector<2x1024xf32> -> vector<2x1024xf32>
    %116 = arith.addf %114, %115 : vector<2x1024xf32>
    %117 = vector.extract_strided_slice %116 {offsets = [0, 0], sizes = [2, 256], strides = [1, 1]} : vector<2x1024xf32> to vector<2x256xf32>
    %cst_44 = arith.constant 0.000000e+00 : f32
    %118 = vector.broadcast %cst_44 : f32 to vector<2x256xf32>
    %119 = arith.subf %118, %117 : vector<2x256xf32>
    %120 = math.exp %119 : vector<2x256xf32>
    %cst_45 = arith.constant 1.000000e+00 : f32
    %121 = vector.broadcast %cst_45 : f32 to vector<2x256xf32>
    %122 = arith.addf %121, %120 : vector<2x256xf32>
    %cst_46 = arith.constant 1.000000e+00 : f32
    %123 = vector.broadcast %cst_46 : f32 to vector<2x256xf32>
    %124 = arith.divf %123, %122 : vector<2x256xf32>
    %125 = vector.extract_strided_slice %116 {offsets = [0, 256], sizes = [2, 256], strides = [1, 1]} : vector<2x1024xf32> to vector<2x256xf32>
    %cst_47 = arith.constant 0.000000e+00 : f32
    %126 = vector.broadcast %cst_47 : f32 to vector<2x256xf32>
    %127 = arith.subf %126, %125 : vector<2x256xf32>
    %128 = math.exp %127 : vector<2x256xf32>
    %cst_48 = arith.constant 1.000000e+00 : f32
    %129 = vector.broadcast %cst_48 : f32 to vector<2x256xf32>
    %130 = arith.addf %129, %128 : vector<2x256xf32>
    %cst_49 = arith.constant 1.000000e+00 : f32
    %131 = vector.broadcast %cst_49 : f32 to vector<2x256xf32>
    %132 = arith.divf %131, %130 : vector<2x256xf32>
    %133 = vector.extract_strided_slice %116 {offsets = [0, 512], sizes = [2, 256], strides = [1, 1]} : vector<2x1024xf32> to vector<2x256xf32>
    %134 = math.tanh %133 : vector<2x256xf32>
    %135 = vector.extract_strided_slice %116 {offsets = [0, 768], sizes = [2, 256], strides = [1, 1]} : vector<2x1024xf32> to vector<2x256xf32>
    %cst_50 = arith.constant 0.000000e+00 : f32
    %136 = vector.broadcast %cst_50 : f32 to vector<2x256xf32>
    %137 = arith.subf %136, %135 : vector<2x256xf32>
    %138 = math.exp %137 : vector<2x256xf32>
    %cst_51 = arith.constant 1.000000e+00 : f32
    %139 = vector.broadcast %cst_51 : f32 to vector<2x256xf32>
    %140 = arith.addf %139, %138 : vector<2x256xf32>
    %cst_52 = arith.constant 1.000000e+00 : f32
    %141 = vector.broadcast %cst_52 : f32 to vector<2x256xf32>
    %142 = arith.divf %141, %140 : vector<2x256xf32>
    %143 = arith.mulf %132, %110 : vector<2x256xf32>
    %144 = arith.mulf %124, %134 : vector<2x256xf32>
    %145 = arith.addf %143, %144 : vector<2x256xf32>
    %146 = math.tanh %145 : vector<2x256xf32>
    %147 = arith.mulf %142, %146 : vector<2x256xf32>
    %c6 = arith.constant 6 : index
    %c0_53 = arith.constant 0 : index
    %148 = vector.load %arg7[%c6, %c0_53] : memref<16x256xf32, #tpu.memory_space<vmem>>, vector<2x256xf32>
    tpu.vector_store %arg7[%c6, %c0_53], %147 {strides = array<i32>} : memref<16x256xf32, #tpu.memory_space<vmem>>, vector<2x256xf32>,
    %149 = vector.extract_strided_slice %6 {offsets = [8, 0], sizes = [2, 1024], strides = [1, 1]} : vector<16x1024xf32> to vector<2x1024xf32>
    %cst_54 = arith.constant dense<0.000000e+00> : vector<2x1024xf32>
    %150 = tpu.matmul %147, %2, %cst_54 {dimension_numbers = #tpu.dot_dimension_numbers<[1], [0], [0], [1], [0, 0, 1, 1], [], []>} : vector<2x256xf32>, vector<256x1024xf32>, vector<2x1024xf32> -> vector<2x1024xf32>
    %151 = arith.addf %149, %150 : vector<2x1024xf32>
    %152 = vector.extract_strided_slice %151 {offsets = [0, 0], sizes = [2, 256], strides = [1, 1]} : vector<2x1024xf32> to vector<2x256xf32>
    %cst_55 = arith.constant 0.000000e+00 : f32
    %153 = vector.broadcast %cst_55 : f32 to vector<2x256xf32>
    %154 = arith.subf %153, %152 : vector<2x256xf32>
    %155 = math.exp %154 : vector<2x256xf32>
    %cst_56 = arith.constant 1.000000e+00 : f32
    %156 = vector.broadcast %cst_56 : f32 to vector<2x256xf32>
    %157 = arith.addf %156, %155 : vector<2x256xf32>
    %cst_57 = arith.constant 1.000000e+00 : f32
    %158 = vector.broadcast %cst_57 : f32 to vector<2x256xf32>
    %159 = arith.divf %158, %157 : vector<2x256xf32>
    %160 = vector.extract_strided_slice %151 {offsets = [0, 256], sizes = [2, 256], strides = [1, 1]} : vector<2x1024xf32> to vector<2x256xf32>
    %cst_58 = arith.constant 0.000000e+00 : f32
    %161 = vector.broadcast %cst_58 : f32 to vector<2x256xf32>
    %162 = arith.subf %161, %160 : vector<2x256xf32>
    %163 = math.exp %162 : vector<2x256xf32>
    %cst_59 = arith.constant 1.000000e+00 : f32
    %164 = vector.broadcast %cst_59 : f32 to vector<2x256xf32>
    %165 = arith.addf %164, %163 : vector<2x256xf32>
    %cst_60 = arith.constant 1.000000e+00 : f32
    %166 = vector.broadcast %cst_60 : f32 to vector<2x256xf32>
    %167 = arith.divf %166, %165 : vector<2x256xf32>
    %168 = vector.extract_strided_slice %151 {offsets = [0, 512], sizes = [2, 256], strides = [1, 1]} : vector<2x1024xf32> to vector<2x256xf32>
    %169 = math.tanh %168 : vector<2x256xf32>
    %170 = vector.extract_strided_slice %151 {offsets = [0, 768], sizes = [2, 256], strides = [1, 1]} : vector<2x1024xf32> to vector<2x256xf32>
    %cst_61 = arith.constant 0.000000e+00 : f32
    %171 = vector.broadcast %cst_61 : f32 to vector<2x256xf32>
    %172 = arith.subf %171, %170 : vector<2x256xf32>
    %173 = math.exp %172 : vector<2x256xf32>
    %cst_62 = arith.constant 1.000000e+00 : f32
    %174 = vector.broadcast %cst_62 : f32 to vector<2x256xf32>
    %175 = arith.addf %174, %173 : vector<2x256xf32>
    %cst_63 = arith.constant 1.000000e+00 : f32
    %176 = vector.broadcast %cst_63 : f32 to vector<2x256xf32>
    %177 = arith.divf %176, %175 : vector<2x256xf32>
    %178 = arith.mulf %167, %145 : vector<2x256xf32>
    %179 = arith.mulf %159, %169 : vector<2x256xf32>
    %180 = arith.addf %178, %179 : vector<2x256xf32>
    %181 = math.tanh %180 : vector<2x256xf32>
    %182 = arith.mulf %177, %181 : vector<2x256xf32>
    %c8 = arith.constant 8 : index
    %c0_64 = arith.constant 0 : index
    %183 = vector.load %arg7[%c8, %c0_64] : memref<16x256xf32, #tpu.memory_space<vmem>>, vector<2x256xf32>
    tpu.vector_store %arg7[%c8, %c0_64], %182 {strides = array<i32>} : memref<16x256xf32, #tpu.memory_space<vmem>>, vector<2x256xf32>,
    %184 = vector.extract_strided_slice %6 {offsets = [10, 0], sizes = [2, 1024], strides = [1, 1]} : vector<16x1024xf32> to vector<2x1024xf32>
    %cst_65 = arith.constant dense<0.000000e+00> : vector<2x1024xf32>
    %185 = tpu.matmul %182, %2, %cst_65 {dimension_numbers = #tpu.dot_dimension_numbers<[1], [0], [0], [1], [0, 0, 1, 1], [], []>} : vector<2x256xf32>, vector<256x1024xf32>, vector<2x1024xf32> -> vector<2x1024xf32>
    %186 = arith.addf %184, %185 : vector<2x1024xf32>
    %187 = vector.extract_strided_slice %186 {offsets = [0, 0], sizes = [2, 256], strides = [1, 1]} : vector<2x1024xf32> to vector<2x256xf32>
    %cst_66 = arith.constant 0.000000e+00 : f32
    %188 = vector.broadcast %cst_66 : f32 to vector<2x256xf32>
    %189 = arith.subf %188, %187 : vector<2x256xf32>
    %190 = math.exp %189 : vector<2x256xf32>
    %cst_67 = arith.constant 1.000000e+00 : f32
    %191 = vector.broadcast %cst_67 : f32 to vector<2x256xf32>
    %192 = arith.addf %191, %190 : vector<2x256xf32>
    %cst_68 = arith.constant 1.000000e+00 : f32
    %193 = vector.broadcast %cst_68 : f32 to vector<2x256xf32>
    %194 = arith.divf %193, %192 : vector<2x256xf32>
    %195 = vector.extract_strided_slice %186 {offsets = [0, 256], sizes = [2, 256], strides = [1, 1]} : vector<2x1024xf32> to vector<2x256xf32>
    %cst_69 = arith.constant 0.000000e+00 : f32
    %196 = vector.broadcast %cst_69 : f32 to vector<2x256xf32>
    %197 = arith.subf %196, %195 : vector<2x256xf32>
    %198 = math.exp %197 : vector<2x256xf32>
    %cst_70 = arith.constant 1.000000e+00 : f32
    %199 = vector.broadcast %cst_70 : f32 to vector<2x256xf32>
    %200 = arith.addf %199, %198 : vector<2x256xf32>
    %cst_71 = arith.constant 1.000000e+00 : f32
    %201 = vector.broadcast %cst_71 : f32 to vector<2x256xf32>
    %202 = arith.divf %201, %200 : vector<2x256xf32>
    %203 = vector.extract_strided_slice %186 {offsets = [0, 512], sizes = [2, 256], strides = [1, 1]} : vector<2x1024xf32> to vector<2x256xf32>
    %204 = math.tanh %203 : vector<2x256xf32>
    %205 = vector.extract_strided_slice %186 {offsets = [0, 768], sizes = [2, 256], strides = [1, 1]} : vector<2x1024xf32> to vector<2x256xf32>
    %cst_72 = arith.constant 0.000000e+00 : f32
    %206 = vector.broadcast %cst_72 : f32 to vector<2x256xf32>
    %207 = arith.subf %206, %205 : vector<2x256xf32>
    %208 = math.exp %207 : vector<2x256xf32>
    %cst_73 = arith.constant 1.000000e+00 : f32
    %209 = vector.broadcast %cst_73 : f32 to vector<2x256xf32>
    %210 = arith.addf %209, %208 : vector<2x256xf32>
    %cst_74 = arith.constant 1.000000e+00 : f32
    %211 = vector.broadcast %cst_74 : f32 to vector<2x256xf32>
    %212 = arith.divf %211, %210 : vector<2x256xf32>
    %213 = arith.mulf %202, %180 : vector<2x256xf32>
    %214 = arith.mulf %194, %204 : vector<2x256xf32>
    %215 = arith.addf %213, %214 : vector<2x256xf32>
    %216 = math.tanh %215 : vector<2x256xf32>
    %217 = arith.mulf %212, %216 : vector<2x256xf32>
    %c10 = arith.constant 10 : index
    %c0_75 = arith.constant 0 : index
    %218 = vector.load %arg7[%c10, %c0_75] : memref<16x256xf32, #tpu.memory_space<vmem>>, vector<2x256xf32>
    tpu.vector_store %arg7[%c10, %c0_75], %217 {strides = array<i32>} : memref<16x256xf32, #tpu.memory_space<vmem>>, vector<2x256xf32>,
    %219 = vector.extract_strided_slice %6 {offsets = [12, 0], sizes = [2, 1024], strides = [1, 1]} : vector<16x1024xf32> to vector<2x1024xf32>
    %cst_76 = arith.constant dense<0.000000e+00> : vector<2x1024xf32>
    %220 = tpu.matmul %217, %2, %cst_76 {dimension_numbers = #tpu.dot_dimension_numbers<[1], [0], [0], [1], [0, 0, 1, 1], [], []>} : vector<2x256xf32>, vector<256x1024xf32>, vector<2x1024xf32> -> vector<2x1024xf32>
    %221 = arith.addf %219, %220 : vector<2x1024xf32>
    %222 = vector.extract_strided_slice %221 {offsets = [0, 0], sizes = [2, 256], strides = [1, 1]} : vector<2x1024xf32> to vector<2x256xf32>
    %cst_77 = arith.constant 0.000000e+00 : f32
    %223 = vector.broadcast %cst_77 : f32 to vector<2x256xf32>
    %224 = arith.subf %223, %222 : vector<2x256xf32>
    %225 = math.exp %224 : vector<2x256xf32>
    %cst_78 = arith.constant 1.000000e+00 : f32
    %226 = vector.broadcast %cst_78 : f32 to vector<2x256xf32>
    %227 = arith.addf %226, %225 : vector<2x256xf32>
    %cst_79 = arith.constant 1.000000e+00 : f32
    %228 = vector.broadcast %cst_79 : f32 to vector<2x256xf32>
    %229 = arith.divf %228, %227 : vector<2x256xf32>
    %230 = vector.extract_strided_slice %221 {offsets = [0, 256], sizes = [2, 256], strides = [1, 1]} : vector<2x1024xf32> to vector<2x256xf32>
    %cst_80 = arith.constant 0.000000e+00 : f32
    %231 = vector.broadcast %cst_80 : f32 to vector<2x256xf32>
    %232 = arith.subf %231, %230 : vector<2x256xf32>
    %233 = math.exp %232 : vector<2x256xf32>
    %cst_81 = arith.constant 1.000000e+00 : f32
    %234 = vector.broadcast %cst_81 : f32 to vector<2x256xf32>
    %235 = arith.addf %234, %233 : vector<2x256xf32>
    %cst_82 = arith.constant 1.000000e+00 : f32
    %236 = vector.broadcast %cst_82 : f32 to vector<2x256xf32>
    %237 = arith.divf %236, %235 : vector<2x256xf32>
    %238 = vector.extract_strided_slice %221 {offsets = [0, 512], sizes = [2, 256], strides = [1, 1]} : vector<2x1024xf32> to vector<2x256xf32>
    %239 = math.tanh %238 : vector<2x256xf32>
    %240 = vector.extract_strided_slice %221 {offsets = [0, 768], sizes = [2, 256], strides = [1, 1]} : vector<2x1024xf32> to vector<2x256xf32>
    %cst_83 = arith.constant 0.000000e+00 : f32
    %241 = vector.broadcast %cst_83 : f32 to vector<2x256xf32>
    %242 = arith.subf %241, %240 : vector<2x256xf32>
    %243 = math.exp %242 : vector<2x256xf32>
    %cst_84 = arith.constant 1.000000e+00 : f32
    %244 = vector.broadcast %cst_84 : f32 to vector<2x256xf32>
    %245 = arith.addf %244, %243 : vector<2x256xf32>
    %cst_85 = arith.constant 1.000000e+00 : f32
    %246 = vector.broadcast %cst_85 : f32 to vector<2x256xf32>
    %247 = arith.divf %246, %245 : vector<2x256xf32>
    %248 = arith.mulf %237, %215 : vector<2x256xf32>
    %249 = arith.mulf %229, %239 : vector<2x256xf32>
    %250 = arith.addf %248, %249 : vector<2x256xf32>
    %251 = math.tanh %250 : vector<2x256xf32>
    %252 = arith.mulf %247, %251 : vector<2x256xf32>
    %c12 = arith.constant 12 : index
    %c0_86 = arith.constant 0 : index
    %253 = vector.load %arg7[%c12, %c0_86] : memref<16x256xf32, #tpu.memory_space<vmem>>, vector<2x256xf32>
    tpu.vector_store %arg7[%c12, %c0_86], %252 {strides = array<i32>} : memref<16x256xf32, #tpu.memory_space<vmem>>, vector<2x256xf32>,
    %254 = vector.extract_strided_slice %6 {offsets = [14, 0], sizes = [2, 1024], strides = [1, 1]} : vector<16x1024xf32> to vector<2x1024xf32>
    %cst_87 = arith.constant dense<0.000000e+00> : vector<2x1024xf32>
    %255 = tpu.matmul %252, %2, %cst_87 {dimension_numbers = #tpu.dot_dimension_numbers<[1], [0], [0], [1], [0, 0, 1, 1], [], []>} : vector<2x256xf32>, vector<256x1024xf32>, vector<2x1024xf32> -> vector<2x1024xf32>
    %256 = arith.addf %254, %255 : vector<2x1024xf32>
    %257 = vector.extract_strided_slice %256 {offsets = [0, 0], sizes = [2, 256], strides = [1, 1]} : vector<2x1024xf32> to vector<2x256xf32>
    %cst_88 = arith.constant 0.000000e+00 : f32
    %258 = vector.broadcast %cst_88 : f32 to vector<2x256xf32>
    %259 = arith.subf %258, %257 : vector<2x256xf32>
    %260 = math.exp %259 : vector<2x256xf32>
    %cst_89 = arith.constant 1.000000e+00 : f32
    %261 = vector.broadcast %cst_89 : f32 to vector<2x256xf32>
    %262 = arith.addf %261, %260 : vector<2x256xf32>
    %cst_90 = arith.constant 1.000000e+00 : f32
    %263 = vector.broadcast %cst_90 : f32 to vector<2x256xf32>
    %264 = arith.divf %263, %262 : vector<2x256xf32>
    %265 = vector.extract_strided_slice %256 {offsets = [0, 256], sizes = [2, 256], strides = [1, 1]} : vector<2x1024xf32> to vector<2x256xf32>
    %cst_91 = arith.constant 0.000000e+00 : f32
    %266 = vector.broadcast %cst_91 : f32 to vector<2x256xf32>
    %267 = arith.subf %266, %265 : vector<2x256xf32>
    %268 = math.exp %267 : vector<2x256xf32>
    %cst_92 = arith.constant 1.000000e+00 : f32
    %269 = vector.broadcast %cst_92 : f32 to vector<2x256xf32>
    %270 = arith.addf %269, %268 : vector<2x256xf32>
    %cst_93 = arith.constant 1.000000e+00 : f32
    %271 = vector.broadcast %cst_93 : f32 to vector<2x256xf32>
    %272 = arith.divf %271, %270 : vector<2x256xf32>
    %273 = vector.extract_strided_slice %256 {offsets = [0, 512], sizes = [2, 256], strides = [1, 1]} : vector<2x1024xf32> to vector<2x256xf32>
    %274 = math.tanh %273 : vector<2x256xf32>
    %275 = vector.extract_strided_slice %256 {offsets = [0, 768], sizes = [2, 256], strides = [1, 1]} : vector<2x1024xf32> to vector<2x256xf32>
    %cst_94 = arith.constant 0.000000e+00 : f32
    %276 = vector.broadcast %cst_94 : f32 to vector<2x256xf32>
    %277 = arith.subf %276, %275 : vector<2x256xf32>
    %278 = math.exp %277 : vector<2x256xf32>
    %cst_95 = arith.constant 1.000000e+00 : f32
    %279 = vector.broadcast %cst_95 : f32 to vector<2x256xf32>
    %280 = arith.addf %279, %278 : vector<2x256xf32>
    %cst_96 = arith.constant 1.000000e+00 : f32
    %281 = vector.broadcast %cst_96 : f32 to vector<2x256xf32>
    %282 = arith.divf %281, %280 : vector<2x256xf32>
    %283 = arith.mulf %272, %250 : vector<2x256xf32>
    %284 = arith.mulf %264, %274 : vector<2x256xf32>
    %285 = arith.addf %283, %284 : vector<2x256xf32>
    %286 = math.tanh %285 : vector<2x256xf32>
    %287 = arith.mulf %282, %286 : vector<2x256xf32>
    %c14 = arith.constant 14 : index
    %c0_97 = arith.constant 0 : index
    %288 = vector.load %arg7[%c14, %c0_97] : memref<16x256xf32, #tpu.memory_space<vmem>>, vector<2x256xf32>
    tpu.vector_store %arg7[%c14, %c0_97], %287 {strides = array<i32>} : memref<16x256xf32, #tpu.memory_space<vmem>>, vector<2x256xf32>,
    %c0_98 = arith.constant 0 : index
    %c0_99 = arith.constant 0 : index
    %289 = vector.load %arg7[%c0_98, %c0_99] : memref<16x256xf32, #tpu.memory_space<vmem>>, vector<16x256xf32>
    %c0_100 = arith.constant 0 : index
    %c0_101 = arith.constant 0 : index
    %290 = vector.load %arg4[%c0_100, %c0_101] : memref<256x128xf32, #tpu.memory_space<vmem>>, vector<256x128xf32>
    %cst_102 = arith.constant dense<0.000000e+00> : vector<16x128xf32>
    %291 = tpu.matmul %289, %290, %cst_102 {dimension_numbers = #tpu.dot_dimension_numbers<[1], [0], [0], [1], [0, 0, 1, 1], [], []>} : vector<16x256xf32>, vector<256x128xf32>, vector<16x128xf32> -> vector<16x128xf32>
    %c0_103 = arith.constant 0 : index
    %c0_104 = arith.constant 0 : index
    %292 = vector.load %arg5[%c0_103, %c0_104] : memref<1x128xf32, #tpu.memory_space<vmem>>, vector<1x128xf32>
    %293 = vector.broadcast %292 : vector<1x128xf32> to vector<16x128xf32>
    %294 = arith.addf %291, %293 : vector<16x128xf32>
    %c0_105 = arith.constant 0 : index
    %c0_106 = arith.constant 0 : index
    %295 = vector.load %arg6[%c0_105, %c0_106] : memref<16x128xf32, #tpu.memory_space<vmem>>, vector<16x128xf32>
    tpu.vector_store %arg6[%c0_105, %c0_106], %294 {strides = array<i32>} : memref<16x128xf32, #tpu.memory_space<vmem>>, vector<16x128xf32>,
    return
  }
}

</mosaic_0001>

<llo_original>
// kernel: rnn_text_generator_forward.1
$region0: #{rnn_text_generator_forward.1}
  #allocation0 [shape = 'u32[]', space=smem, size = 0x4, offset = 0x4, fixed_abs, tag = 'smem constant byte address 0x4 - core index']
  #allocation1 [shape = 'u32[144,128]{1,0:T(1,128)}', space=vmem, size = 0x12000, scoped, tag = 'internal scratch']
  #allocation2 [shape = 'f32[16,256]{1,0:T(8,128)}', space=vmem, size = 0x4000, scoped, tag = 'scratch operand']
  %s0 = inlined_call_operand.vmem [shape: f32[16,128], index: 0, kind: input, shape index: {}]
  %s1 = inlined_call_operand.vmem [shape: f32[128,1024], index: 1, kind: input, shape index: {}]
  %s2 = inlined_call_operand.vmem [shape: f32[256,1024], index: 2, kind: input, shape index: {}]
  %s3 = inlined_call_operand.vmem [shape: f32[1,1024], index: 3, kind: input, shape index: {}]
  %s4 = inlined_call_operand.vmem [shape: f32[256,128], index: 4, kind: input, shape index: {}]
  %s5 = inlined_call_operand.vmem [shape: f32[1,128], index: 5, kind: input, shape index: {}]
  %s6 = inlined_call_operand.vmem [shape: f32[16,128], index: 6, kind: output, shape index: {}]
  %s7 = sld [smem:[#allocation0]]
  $region34: #{rnn_text_generator_forward.1} parent=0
    _
  %s9 = ssub.s32 1, %s7
  %s10 = scalar_select 0, %s9, %s7
  // Predicated region
  $region2: #{rnn_text_generator_forward.1} parent=0 // pred_check
    _
  $region3: #{rnn_text_generator_forward.1} parent=0 // pred_check_branch
    %12 = sbr.rel (0) target = $region5
  $region4: #{rnn_text_generator_forward.1} parent=0 // pred_region
    _
  $region5: #{rnn_text_generator_forward.1} parent=0 // pred_fallthru
    _
  // Predicated region
  $region6: #{rnn_text_generator_forward.1} parent=0 // pred_check
    _
  $region7: #{rnn_text_generator_forward.1} parent=0 // pred_check_branch
    %14 = sbr.rel (0) target = $region9
  $region8: #{rnn_text_generator_forward.1} parent=0 // pred_region
    _
  $region9: #{rnn_text_generator_forward.1} parent=0 // pred_fallthru
    _
  // Predicated region
  $region10: #{rnn_text_generator_forward.1} parent=0 // pred_check
    _
  $region11: #{rnn_text_generator_forward.1} parent=0 // pred_check_branch
    %16 = sbr.rel (0) target = $region13
  $region12: #{rnn_text_generator_forward.1} parent=0 // pred_region
    _
  $region13: #{rnn_text_generator_forward.1} parent=0 // pred_fallthru
    _
  // Predicated region
  $region14: #{rnn_text_generator_forward.1} parent=0 // pred_check
    _
  $region15: #{rnn_text_generator_forward.1} parent=0 // pred_check_branch
    %18 = sbr.rel (0) target = $region17
  $region16: #{rnn_text_generator_forward.1} parent=0 // pred_region
    _
  $region17: #{rnn_text_generator_forward.1} parent=0 // pred_fallthru
    _
  // Predicated region
  $region18: #{rnn_text_generator_forward.1} parent=0 // pred_check
    _
  $region19: #{rnn_text_generator_forward.1} parent=0 // pred_check_branch
    %20 = sbr.rel (0) target = $region21
  $region20: #{rnn_text_generator_forward.1} parent=0 // pred_region
    _
  $region21: #{rnn_text_generator_forward.1} parent=0 // pred_fallthru
    _
  // Predicated region
  $region22: #{rnn_text_generator_forward.1} parent=0 // pred_check
    _
  $region23: #{rnn_text_generator_forward.1} parent=0 // pred_check_branch
    %22 = sbr.rel (0) target = $region25
  $region24: #{rnn_text_generator_forward.1} parent=0 // pred_region
    _
  $region25: #{rnn_text_generator_forward.1} parent=0 // pred_fallthru
    _
  %v23 = vld [vmem:[%s0] sm:$0xff]
  %v24 = vld [vmem:[%s0 + $0x8] sm:$0xff]
  %v25 = vld [vmem:[%s1] sm:$0xff]
  %v26 = vld [vmem:[%s1 + $0x8] sm:$0xff]
  %v27 = vld [vmem:[%s1 + $0x10] sm:$0xff]
  %v28 = vld [vmem:[%s1 + $0x18] sm:$0xff]
  %v29 = vld [vmem:[%s1 + $0x20] sm:$0xff]
  %v30 = vld [vmem:[%s1 + $0x28] sm:$0xff]
  %v31 = vld [vmem:[%s1 + $0x30] sm:$0xff]
  %v32 = vld [vmem:[%s1 + $0x38] sm:$0xff]
  %v33 = vld [vmem:[%s1 + $0x40] sm:$0xff]
  %v34 = vld [vmem:[%s1 + $0x48] sm:$0xff]
  %v35 = vld [vmem:[%s1 + $0x50] sm:$0xff]
  %v36 = vld [vmem:[%s1 + $0x58] sm:$0xff]
  %v37 = vld [vmem:[%s1 + $0x60] sm:$0xff]
  %v38 = vld [vmem:[%s1 + $0x68] sm:$0xff]
  %v39 = vld [vmem:[%s1 + $0x70] sm:$0xff]
  %v40 = vld [vmem:[%s1 + $0x78] sm:$0xff]
  %v41 = vld [vmem:[%s1 + $0x80] sm:$0xff]
  %v42 = vld [vmem:[%s1 + $0x88] sm:$0xff]
  %v43 = vld [vmem:[%s1 + $0x90] sm:$0xff]
  %v44 = vld [vmem:[%s1 + $0x98] sm:$0xff]
  %v45 = vld [vmem:[%s1 + $0xa0] sm:$0xff]
  %v46 = vld [vmem:[%s1 + $0xa8] sm:$0xff]
  %v47 = vld [vmem:[%s1 + $0xb0] sm:$0xff]
  %v48 = vld [vmem:[%s1 + $0xb8] sm:$0xff]
  %v49 = vld [vmem:[%s1 + $0xc0] sm:$0xff]
  %v50 = vld [vmem:[%s1 + $0xc8] sm:$0xff]
  %v51 = vld [vmem:[%s1 + $0xd0] sm:$0xff]
  %v52 = vld [vmem:[%s1 + $0xd8] sm:$0xff]
  %v53 = vld [vmem:[%s1 + $0xe0] sm:$0xff]
  %v54 = vld [vmem:[%s1 + $0xe8] sm:$0xff]
  %v55 = vld [vmem:[%s1 + $0xf0] sm:$0xff]
  %v56 = vld [vmem:[%s1 + $0xf8] sm:$0xff]
  %v57 = vld [vmem:[%s1 + $0x100] sm:$0xff]
  %v58 = vld [vmem:[%s1 + $0x108] sm:$0xff]
  %v59 = vld [vmem:[%s1 + $0x110] sm:$0xff]
  %v60 = vld [vmem:[%s1 + $0x118] sm:$0xff]
  %v61 = vld [vmem:[%s1 + $0x120] sm:$0xff]
  %v62 = vld [vmem:[%s1 + $0x128] sm:$0xff]
  %v63 = vld [vmem:[%s1 + $0x130] sm:$0xff]
  %v64 = vld [vmem:[%s1 + $0x138] sm:$0xff]
  %v65 = vld [vmem:[%s1 + $0x140] sm:$0xff]
  %v66 = vld [vmem:[%s1 + $0x148] sm:$0xff]
  %v67 = vld [vmem:[%s1 + $0x150] sm:$0xff]
  %v68 = vld [vmem:[%s1 + $0x158] sm:$0xff]
  %v69 = vld [vmem:[%s1 + $0x160] sm:$0xff]
  %v70 = vld [vmem:[%s1 + $0x168] sm:$0xff]
  %v71 = vld [vmem:[%s1 + $0x170] sm:$0xff]
  %v72 = vld [vmem:[%s1 + $0x178] sm:$0xff]
  %v73 = vld [vmem:[%s1 + $0x180] sm:$0xff]
  %v74 = vld [vmem:[%s1 + $0x188] sm:$0xff]
  %v75 = vld [vmem:[%s1 + $0x190] sm:$0xff]
  %v76 = vld [vmem:[%s1 + $0x198] sm:$0xff]
  %v77 = vld [vmem:[%s1 + $0x1a0] sm:$0xff]
  %v78 = vld [vmem:[%s1 + $0x1a8] sm:$0xff]
  %v79 = vld [vmem:[%s1 + $0x1b0] sm:$0xff]
  %v80 = vld [vmem:[%s1 + $0x1b8] sm:$0xff]
  %v81 = vld [vmem:[%s1 + $0x1c0] sm:$0xff]
  %v82 = vld [vmem:[%s1 + $0x1c8] sm:$0xff]
  %v83 = vld [vmem:[%s1 + $0x1d0] sm:$0xff]
  %v84 = vld [vmem:[%s1 + $0x1d8] sm:$0xff]
  %v85 = vld [vmem:[%s1 + $0x1e0] sm:$0xff]
  %v86 = vld [vmem:[%s1 + $0x1e8] sm:$0xff]
  %v87 = vld [vmem:[%s1 + $0x1f0] sm:$0xff]
  %v88 = vld [vmem:[%s1 + $0x1f8] sm:$0xff]
  %v89 = vld [vmem:[%s1 + $0x200] sm:$0xff]
  %v90 = vld [vmem:[%s1 + $0x208] sm:$0xff]
  %v91 = vld [vmem:[%s1 + $0x210] sm:$0xff]
  %v92 = vld [vmem:[%s1 + $0x218] sm:$0xff]
  %v93 = vld [vmem:[%s1 + $0x220] sm:$0xff]
  %v94 = vld [vmem:[%s1 + $0x228] sm:$0xff]
  %v95 = vld [vmem:[%s1 + $0x230] sm:$0xff]
  %v96 = vld [vmem:[%s1 + $0x238] sm:$0xff]
  %v97 = vld [vmem:[%s1 + $0x240] sm:$0xff]
  %v98 = vld [vmem:[%s1 + $0x248] sm:$0xff]
  %v99 = vld [vmem:[%s1 + $0x250] sm:$0xff]
  %v100 = vld [vmem:[%s1 + $0x258] sm:$0xff]
  %v101 = vld [vmem:[%s1 + $0x260] sm:$0xff]
  %v102 = vld [vmem:[%s1 + $0x268] sm:$0xff]
  %v103 = vld [vmem:[%s1 + $0x270] sm:$0xff]
  %v104 = vld [vmem:[%s1 + $0x278] sm:$0xff]
  %v105 = vld [vmem:[%s1 + $0x280] sm:$0xff]
  %v106 = vld [vmem:[%s1 + $0x288] sm:$0xff]
  %v107 = vld [vmem:[%s1 + $0x290] sm:$0xff]
  %v108 = vld [vmem:[%s1 + $0x298] sm:$0xff]
  %v109 = vld [vmem:[%s1 + $0x2a0] sm:$0xff]
  %v110 = vld [vmem:[%s1 + $0x2a8] sm:$0xff]
  %v111 = vld [vmem:[%s1 + $0x2b0] sm:$0xff]
  %v112 = vld [vmem:[%s1 + $0x2b8] sm:$0xff]
  %v113 = vld [vmem:[%s1 + $0x2c0] sm:$0xff]
  %v114 = vld [vmem:[%s1 + $0x2c8] sm:$0xff]
  %v115 = vld [vmem:[%s1 + $0x2d0] sm:$0xff]
  %v116 = vld [vmem:[%s1 + $0x2d8] sm:$0xff]
  %v117 = vld [vmem:[%s1 + $0x2e0] sm:$0xff]
  %v118 = vld [vmem:[%s1 + $0x2e8] sm:$0xff]
  %v119 = vld [vmem:[%s1 + $0x2f0] sm:$0xff]
  %v120 = vld [vmem:[%s1 + $0x2f8] sm:$0xff]
  %v121 = vld [vmem:[%s1 + $0x300] sm:$0xff]
  %v122 = vld [vmem:[%s1 + $0x308] sm:$0xff]
  %v123 = vld [vmem:[%s1 + $0x310] sm:$0xff]
  %v124 = vld [vmem:[%s1 + $0x318] sm:$0xff]
  %v125 = vld [vmem:[%s1 + $0x320] sm:$0xff]
  %v126 = vld [vmem:[%s1 + $0x328] sm:$0xff]
  %v127 = vld [vmem:[%s1 + $0x330] sm:$0xff]
  %v128 = vld [vmem:[%s1 + $0x338] sm:$0xff]
  %v129 = vld [vmem:[%s1 + $0x340] sm:$0xff]
  %v130 = vld [vmem:[%s1 + $0x348] sm:$0xff]
  %v131 = vld [vmem:[%s1 + $0x350] sm:$0xff]
  %v132 = vld [vmem:[%s1 + $0x358] sm:$0xff]
  %v133 = vld [vmem:[%s1 + $0x360] sm:$0xff]
  %v134 = vld [vmem:[%s1 + $0x368] sm:$0xff]
  %v135 = vld [vmem:[%s1 + $0x370] sm:$0xff]
  %v136 = vld [vmem:[%s1 + $0x378] sm:$0xff]
  %v137 = vld [vmem:[%s1 + $0x380] sm:$0xff]
  %v138 = vld [vmem:[%s1 + $0x388] sm:$0xff]
  %v139 = vld [vmem:[%s1 + $0x390] sm:$0xff]
  %v140 = vld [vmem:[%s1 + $0x398] sm:$0xff]
  %v141 = vld [vmem:[%s1 + $0x3a0] sm:$0xff]
  %v142 = vld [vmem:[%s1 + $0x3a8] sm:$0xff]
  %v143 = vld [vmem:[%s1 + $0x3b0] sm:$0xff]
  %v144 = vld [vmem:[%s1 + $0x3b8] sm:$0xff]
  %v145 = vld [vmem:[%s1 + $0x3c0] sm:$0xff]
  %v146 = vld [vmem:[%s1 + $0x3c8] sm:$0xff]
  %v147 = vld [vmem:[%s1 + $0x3d0] sm:$0xff]
  %v148 = vld [vmem:[%s1 + $0x3d8] sm:$0xff]
  %v149 = vld [vmem:[%s1 + $0x3e0] sm:$0xff]
  %v150 = vld [vmem:[%s1 + $0x3e8] sm:$0xff]
  %v151 = vld [vmem:[%s1 + $0x3f0] sm:$0xff]
  %v152 = vld [vmem:[%s1 + $0x3f8] sm:$0xff]
  %v153 = vld [vmem:[%s2] sm:$0xff]
  %v154 = vld [vmem:[%s2 + $0x8] sm:$0xff]
  %v155 = vld [vmem:[%s2 + $0x10] sm:$0xff]
  %v156 = vld [vmem:[%s2 + $0x18] sm:$0xff]
  %v157 = vld [vmem:[%s2 + $0x20] sm:$0xff]
  %v158 = vld [vmem:[%s2 + $0x28] sm:$0xff]
  %v159 = vld [vmem:[%s2 + $0x30] sm:$0xff]
  %v160 = vld [vmem:[%s2 + $0x38] sm:$0xff]
  %v161 = vld [vmem:[%s2 + $0x40] sm:$0xff]
  %v162 = vld [vmem:[%s2 + $0x48] sm:$0xff]
  %v163 = vld [vmem:[%s2 + $0x50] sm:$0xff]
  %v164 = vld [vmem:[%s2 + $0x58] sm:$0xff]
  %v165 = vld [vmem:[%s2 + $0x60] sm:$0xff]
  %v166 = vld [vmem:[%s2 + $0x68] sm:$0xff]
  %v167 = vld [vmem:[%s2 + $0x70] sm:$0xff]
  %v168 = vld [vmem:[%s2 + $0x78] sm:$0xff]
  %v169 = vld [vmem:[%s2 + $0x80] sm:$0xff]
  %v170 = vld [vmem:[%s2 + $0x88] sm:$0xff]
  %v171 = vld [vmem:[%s2 + $0x90] sm:$0xff]
  %v172 = vld [vmem:[%s2 + $0x98] sm:$0xff]
  %v173 = vld [vmem:[%s2 + $0xa0] sm:$0xff]
  %v174 = vld [vmem:[%s2 + $0xa8] sm:$0xff]
  %v175 = vld [vmem:[%s2 + $0xb0] sm:$0xff]
  %v176 = vld [vmem:[%s2 + $0xb8] sm:$0xff]
  %v177 = vld [vmem:[%s2 + $0xc0] sm:$0xff]
  %v178 = vld [vmem:[%s2 + $0xc8] sm:$0xff]
  %v179 = vld [vmem:[%s2 + $0xd0] sm:$0xff]
  %v180 = vld [vmem:[%s2 + $0xd8] sm:$0xff]
  %v181 = vld [vmem:[%s2 + $0xe0] sm:$0xff]
  %v182 = vld [vmem:[%s2 + $0xe8] sm:$0xff]
  %v183 = vld [vmem:[%s2 + $0xf0] sm:$0xff]
  %v184 = vld [vmem:[%s2 + $0xf8] sm:$0xff]
  %v185 = vld [vmem:[%s2 + $0x100] sm:$0xff]
  %v186 = vld [vmem:[%s2 + $0x108] sm:$0xff]
  %v187 = vld [vmem:[%s2 + $0x110] sm:$0xff]
  %v188 = vld [vmem:[%s2 + $0x118] sm:$0xff]
  %v189 = vld [vmem:[%s2 + $0x120] sm:$0xff]
  %v190 = vld [vmem:[%s2 + $0x128] sm:$0xff]
  %v191 = vld [vmem:[%s2 + $0x130] sm:$0xff]
  %v192 = vld [vmem:[%s2 + $0x138] sm:$0xff]
  %v193 = vld [vmem:[%s2 + $0x140] sm:$0xff]
  %v194 = vld [vmem:[%s2 + $0x148] sm:$0xff]
  %v195 = vld [vmem:[%s2 + $0x150] sm:$0xff]
  %v196 = vld [vmem:[%s2 + $0x158] sm:$0xff]
  %v197 = vld [vmem:[%s2 + $0x160] sm:$0xff]
  %v198 = vld [vmem:[%s2 + $0x168] sm:$0xff]
  %v199 = vld [vmem:[%s2 + $0x170] sm:$0xff]
  %v200 = vld [vmem:[%s2 + $0x178] sm:$0xff]
  %v201 = vld [vmem:[%s2 + $0x180] sm:$0xff]
  %v202 = vld [vmem:[%s2 + $0x188] sm:$0xff]
  %v203 = vld [vmem:[%s2 + $0x190] sm:$0xff]
  %v204 = vld [vmem:[%s2 + $0x198] sm:$0xff]
  %v205 = vld [vmem:[%s2 + $0x1a0] sm:$0xff]
  %v206 = vld [vmem:[%s2 + $0x1a8] sm:$0xff]
  %v207 = vld [vmem:[%s2 + $0x1b0] sm:$0xff]
  %v208 = vld [vmem:[%s2 + $0x1b8] sm:$0xff]
  %v209 = vld [vmem:[%s2 + $0x1c0] sm:$0xff]
  %v210 = vld [vmem:[%s2 + $0x1c8] sm:$0xff]
  %v211 = vld [vmem:[%s2 + $0x1d0] sm:$0xff]
  %v212 = vld [vmem:[%s2 + $0x1d8] sm:$0xff]
  %v213 = vld [vmem:[%s2 + $0x1e0] sm:$0xff]
  %v214 = vld [vmem:[%s2 + $0x1e8] sm:$0xff]
  %v215 = vld [vmem:[%s2 + $0x1f0] sm:$0xff]
  %v216 = vld [vmem:[%s2 + $0x1f8] sm:$0xff]
  %v217 = vld [vmem:[%s2 + $0x200] sm:$0xff]
  %v218 = vld [vmem:[%s2 + $0x208] sm:$0xff]
  %v219 = vld [vmem:[%s2 + $0x210] sm:$0xff]
  %v220 = vld [vmem:[%s2 + $0x218] sm:$0xff]
  %v221 = vld [vmem:[%s2 + $0x220] sm:$0xff]
  %v222 = vld [vmem:[%s2 + $0x228] sm:$0xff]
  %v223 = vld [vmem:[%s2 + $0x230] sm:$0xff]
  %v224 = vld [vmem:[%s2 + $0x238] sm:$0xff]
  %v225 = vld [vmem:[%s2 + $0x240] sm:$0xff]
  %v226 = vld [vmem:[%s2 + $0x248] sm:$0xff]
  %v227 = vld [vmem:[%s2 + $0x250] sm:$0xff]
  %v228 = vld [vmem:[%s2 + $0x258] sm:$0xff]
  %v229 = vld [vmem:[%s2 + $0x260] sm:$0xff]
  %v230 = vld [vmem:[%s2 + $0x268] sm:$0xff]
  %v231 = vld [vmem:[%s2 + $0x270] sm:$0xff]
  %v232 = vld [vmem:[%s2 + $0x278] sm:$0xff]
  %v233 = vld [vmem:[%s2 + $0x280] sm:$0xff]
  %v234 = vld [vmem:[%s2 + $0x288] sm:$0xff]
  %v235 = vld [vmem:[%s2 + $0x290] sm:$0xff]
  %v236 = vld [vmem:[%s2 + $0x298] sm:$0xff]
  %v237 = vld [vmem:[%s2 + $0x2a0] sm:$0xff]
  %v238 = vld [vmem:[%s2 + $0x2a8] sm:$0xff]
  %v239 = vld [vmem:[%s2 + $0x2b0] sm:$0xff]
  %v240 = vld [vmem:[%s2 + $0x2b8] sm:$0xff]
  %v241 = vld [vmem:[%s2 + $0x2c0] sm:$0xff]
  %v242 = vld [vmem:[%s2 + $0x2c8] sm:$0xff]
  %v243 = vld [vmem:[%s2 + $0x2d0] sm:$0xff]
  %v244 = vld [vmem:[%s2 + $0x2d8] sm:$0xff]
  %v245 = vld [vmem:[%s2 + $0x2e0] sm:$0xff]
  %v246 = vld [vmem:[%s2 + $0x2e8] sm:$0xff]
  %v247 = vld [vmem:[%s2 + $0x2f0] sm:$0xff]
  %v248 = vld [vmem:[%s2 + $0x2f8] sm:$0xff]
  %v249 = vld [vmem:[%s2 + $0x300] sm:$0xff]
  %v250 = vld [vmem:[%s2 + $0x308] sm:$0xff]
  %v251 = vld [vmem:[%s2 + $0x310] sm:$0xff]
  %v252 = vld [vmem:[%s2 + $0x318] sm:$0xff]
  %v253 = vld [vmem:[%s2 + $0x320] sm:$0xff]
  %v254 = vld [vmem:[%s2 + $0x328] sm:$0xff]
  %v255 = vld [vmem:[%s2 + $0x330] sm:$0xff]
  %v256 = vld [vmem:[%s2 + $0x338] sm:$0xff]
  %v257 = vld [vmem:[%s2 + $0x340] sm:$0xff]
  %v258 = vld [vmem:[%s2 + $0x348] sm:$0xff]
  %v259 = vld [vmem:[%s2 + $0x350] sm:$0xff]
  %v260 = vld [vmem:[%s2 + $0x358] sm:$0xff]
  %v261 = vld [vmem:[%s2 + $0x360] sm:$0xff]
  %v262 = vld [vmem:[%s2 + $0x368] sm:$0xff]
  %v263 = vld [vmem:[%s2 + $0x370] sm:$0xff]
  %v264 = vld [vmem:[%s2 + $0x378] sm:$0xff]
  %v265 = vld [vmem:[%s2 + $0x380] sm:$0xff]
  %v266 = vld [vmem:[%s2 + $0x388] sm:$0xff]
  %v267 = vld [vmem:[%s2 + $0x390] sm:$0xff]
  %v268 = vld [vmem:[%s2 + $0x398] sm:$0xff]
  %v269 = vld [vmem:[%s2 + $0x3a0] sm:$0xff]
  %v270 = vld [vmem:[%s2 + $0x3a8] sm:$0xff]
  %v271 = vld [vmem:[%s2 + $0x3b0] sm:$0xff]
  %v272 = vld [vmem:[%s2 + $0x3b8] sm:$0xff]
  %v273 = vld [vmem:[%s2 + $0x3c0] sm:$0xff]
  %v274 = vld [vmem:[%s2 + $0x3c8] sm:$0xff]
  %v275 = vld [vmem:[%s2 + $0x3d0] sm:$0xff]
  %v276 = vld [vmem:[%s2 + $0x3d8] sm:$0xff]
  %v277 = vld [vmem:[%s2 + $0x3e0] sm:$0xff]
  %v278 = vld [vmem:[%s2 + $0x3e8] sm:$0xff]
  %v279 = vld [vmem:[%s2 + $0x3f0] sm:$0xff]
  %v280 = vld [vmem:[%s2 + $0x3f8] sm:$0xff]
  %v281 = vld [vmem:[%s2 + $0x400] sm:$0xff]
  %v282 = vld [vmem:[%s2 + $0x408] sm:$0xff]
  %v283 = vld [vmem:[%s2 + $0x410] sm:$0xff]
  %v284 = vld [vmem:[%s2 + $0x418] sm:$0xff]
  %v285 = vld [vmem:[%s2 + $0x420] sm:$0xff]
  %v286 = vld [vmem:[%s2 + $0x428] sm:$0xff]
  %v287 = vld [vmem:[%s2 + $0x430] sm:$0xff]
  %v288 = vld [vmem:[%s2 + $0x438] sm:$0xff]
  %v289 = vld [vmem:[%s2 + $0x440] sm:$0xff]
  %v290 = vld [vmem:[%s2 + $0x448] sm:$0xff]
  %v291 = vld [vmem:[%s2 + $0x450] sm:$0xff]
  %v292 = vld [vmem:[%s2 + $0x458] sm:$0xff]
  %v293 = vld [vmem:[%s2 + $0x460] sm:$0xff]
  %v294 = vld [vmem:[%s2 + $0x468] sm:$0xff]
  %v295 = vld [vmem:[%s2 + $0x470] sm:$0xff]
  %v296 = vld [vmem:[%s2 + $0x478] sm:$0xff]
  %v297 = vld [vmem:[%s2 + $0x480] sm:$0xff]
  %v298 = vld [vmem:[%s2 + $0x488] sm:$0xff]
  %v299 = vld [vmem:[%s2 + $0x490] sm:$0xff]
  %v300 = vld [vmem:[%s2 + $0x498] sm:$0xff]
  %v301 = vld [vmem:[%s2 + $0x4a0] sm:$0xff]
  %v302 = vld [vmem:[%s2 + $0x4a8] sm:$0xff]
  %v303 = vld [vmem:[%s2 + $0x4b0] sm:$0xff]
  %v304 = vld [vmem:[%s2 + $0x4b8] sm:$0xff]
  %v305 = vld [vmem:[%s2 + $0x4c0] sm:$0xff]
  %v306 = vld [vmem:[%s2 + $0x4c8] sm:$0xff]
  %v307 = vld [vmem:[%s2 + $0x4d0] sm:$0xff]
  %v308 = vld [vmem:[%s2 + $0x4d8] sm:$0xff]
  %v309 = vld [vmem:[%s2 + $0x4e0] sm:$0xff]
  %v310 = vld [vmem:[%s2 + $0x4e8] sm:$0xff]
  %v311 = vld [vmem:[%s2 + $0x4f0] sm:$0xff]
  %v312 = vld [vmem:[%s2 + $0x4f8] sm:$0xff]
  %v313 = vld [vmem:[%s2 + $0x500] sm:$0xff]
  %v314 = vld [vmem:[%s2 + $0x508] sm:$0xff]
  %v315 = vld [vmem:[%s2 + $0x510] sm:$0xff]
  %v316 = vld [vmem:[%s2 + $0x518] sm:$0xff]
  %v317 = vld [vmem:[%s2 + $0x520] sm:$0xff]
  %v318 = vld [vmem:[%s2 + $0x528] sm:$0xff]
  %v319 = vld [vmem:[%s2 + $0x530] sm:$0xff]
  %v320 = vld [vmem:[%s2 + $0x538] sm:$0xff]
  %v321 = vld [vmem:[%s2 + $0x540] sm:$0xff]
  %v322 = vld [vmem:[%s2 + $0x548] sm:$0xff]
  %v323 = vld [vmem:[%s2 + $0x550] sm:$0xff]
  %v324 = vld [vmem:[%s2 + $0x558] sm:$0xff]
  %v325 = vld [vmem:[%s2 + $0x560] sm:$0xff]
  %v326 = vld [vmem:[%s2 + $0x568] sm:$0xff]
  %v327 = vld [vmem:[%s2 + $0x570] sm:$0xff]
  %v328 = vld [vmem:[%s2 + $0x578] sm:$0xff]
  %v329 = vld [vmem:[%s2 + $0x580] sm:$0xff]
  %v330 = vld [vmem:[%s2 + $0x588] sm:$0xff]
  %v331 = vld [vmem:[%s2 + $0x590] sm:$0xff]
  %v332 = vld [vmem:[%s2 + $0x598] sm:$0xff]
  %v333 = vld [vmem:[%s2 + $0x5a0] sm:$0xff]
  %v334 = vld [vmem:[%s2 + $0x5a8] sm:$0xff]
  %v335 = vld [vmem:[%s2 + $0x5b0] sm:$0xff]
  %v336 = vld [vmem:[%s2 + $0x5b8] sm:$0xff]
  %v337 = vld [vmem:[%s2 + $0x5c0] sm:$0xff]
  %v338 = vld [vmem:[%s2 + $0x5c8] sm:$0xff]
  %v339 = vld [vmem:[%s2 + $0x5d0] sm:$0xff]
  %v340 = vld [vmem:[%s2 + $0x5d8] sm:$0xff]
  %v341 = vld [vmem:[%s2 + $0x5e0] sm:$0xff]
  %v342 = vld [vmem:[%s2 + $0x5e8] sm:$0xff]
  %v343 = vld [vmem:[%s2 + $0x5f0] sm:$0xff]
  %v344 = vld [vmem:[%s2 + $0x5f8] sm:$0xff]
  %v345 = vld [vmem:[%s2 + $0x600] sm:$0xff]
  %v346 = vld [vmem:[%s2 + $0x608] sm:$0xff]
  %v347 = vld [vmem:[%s2 + $0x610] sm:$0xff]
  %v348 = vld [vmem:[%s2 + $0x618] sm:$0xff]
  %v349 = vld [vmem:[%s2 + $0x620] sm:$0xff]
  %v350 = vld [vmem:[%s2 + $0x628] sm:$0xff]
  %v351 = vld [vmem:[%s2 + $0x630] sm:$0xff]
  %v352 = vld [vmem:[%s2 + $0x638] sm:$0xff]
  %v353 = vld [vmem:[%s2 + $0x640] sm:$0xff]
  %v354 = vld [vmem:[%s2 + $0x648] sm:$0xff]
  %v355 = vld [vmem:[%s2 + $0x650] sm:$0xff]
  %v356 = vld [vmem:[%s2 + $0x658] sm:$0xff]
  %v357 = vld [vmem:[%s2 + $0x660] sm:$0xff]
  %v358 = vld [vmem:[%s2 + $0x668] sm:$0xff]
  %v359 = vld [vmem:[%s2 + $0x670] sm:$0xff]
  %v360 = vld [vmem:[%s2 + $0x678] sm:$0xff]
  %v361 = vld [vmem:[%s2 + $0x680] sm:$0xff]
  %v362 = vld [vmem:[%s2 + $0x688] sm:$0xff]
  %v363 = vld [vmem:[%s2 + $0x690] sm:$0xff]
  %v364 = vld [vmem:[%s2 + $0x698] sm:$0xff]
  %v365 = vld [vmem:[%s2 + $0x6a0] sm:$0xff]
  %v366 = vld [vmem:[%s2 + $0x6a8] sm:$0xff]
  %v367 = vld [vmem:[%s2 + $0x6b0] sm:$0xff]
  %v368 = vld [vmem:[%s2 + $0x6b8] sm:$0xff]
  %v369 = vld [vmem:[%s2 + $0x6c0] sm:$0xff]
  %v370 = vld [vmem:[%s2 + $0x6c8] sm:$0xff]
  %v371 = vld [vmem:[%s2 + $0x6d0] sm:$0xff]
  %v372 = vld [vmem:[%s2 + $0x6d8] sm:$0xff]
  %v373 = vld [vmem:[%s2 + $0x6e0] sm:$0xff]
  %v374 = vld [vmem:[%s2 + $0x6e8] sm:$0xff]
  %v375 = vld [vmem:[%s2 + $0x6f0] sm:$0xff]
  %v376 = vld [vmem:[%s2 + $0x6f8] sm:$0xff]
  %v377 = vld [vmem:[%s2 + $0x700] sm:$0xff]
  %v378 = vld [vmem:[%s2 + $0x708] sm:$0xff]
  %v379 = vld [vmem:[%s2 + $0x710] sm:$0xff]
  %v380 = vld [vmem:[%s2 + $0x718] sm:$0xff]
  %v381 = vld [vmem:[%s2 + $0x720] sm:$0xff]
  %v382 = vld [vmem:[%s2 + $0x728] sm:$0xff]
  %v383 = vld [vmem:[%s2 + $0x730] sm:$0xff]
  %v384 = vld [vmem:[%s2 + $0x738] sm:$0xff]
  %v385 = vld [vmem:[%s2 + $0x740] sm:$0xff]
  %v386 = vld [vmem:[%s2 + $0x748] sm:$0xff]
  %v387 = vld [vmem:[%s2 + $0x750] sm:$0xff]
  %v388 = vld [vmem:[%s2 + $0x758] sm:$0xff]
  %v389 = vld [vmem:[%s2 + $0x760] sm:$0xff]
  %v390 = vld [vmem:[%s2 + $0x768] sm:$0xff]
  %v391 = vld [vmem:[%s2 + $0x770] sm:$0xff]
  %v392 = vld [vmem:[%s2 + $0x778] sm:$0xff]
  %v393 = vld [vmem:[%s2 + $0x780] sm:$0xff]
  %v394 = vld [vmem:[%s2 + $0x788] sm:$0xff]
  %v395 = vld [vmem:[%s2 + $0x790] sm:$0xff]
  %v396 = vld [vmem:[%s2 + $0x798] sm:$0xff]
  %v397 = vld [vmem:[%s2 + $0x7a0] sm:$0xff]
  %v398 = vld [vmem:[%s2 + $0x7a8] sm:$0xff]
  %v399 = vld [vmem:[%s2 + $0x7b0] sm:$0xff]
  %v400 = vld [vmem:[%s2 + $0x7b8] sm:$0xff]
  %v401 = vld [vmem:[%s2 + $0x7c0] sm:$0xff]
  %v402 = vld [vmem:[%s2 + $0x7c8] sm:$0xff]
  %v403 = vld [vmem:[%s2 + $0x7d0] sm:$0xff]
  %v404 = vld [vmem:[%s2 + $0x7d8] sm:$0xff]
  %v405 = vld [vmem:[%s2 + $0x7e0] sm:$0xff]
  %v406 = vld [vmem:[%s2 + $0x7e8] sm:$0xff]
  %v407 = vld [vmem:[%s2 + $0x7f0] sm:$0xff]
  %v408 = vld [vmem:[%s2 + $0x7f8] sm:$0xff]
  %v409 = vld [vmem:[%s3] sm:$0xff]
  %v411 = vlaneseq
  %v412 = vshrl.u32 %v411, 7
  %v413 = vsub.s32 0, %v412
  %v414 = vrot.slane %v409, %v413
  %v415 = vlaneseq
  %v416 = vshrl.u32 %v415, 7
  %v417 = vsub.s32 1, %v416
  %v418 = vrot.slane %v409, %v417
  %v419 = vlaneseq
  %v420 = vshrl.u32 %v419, 7
  %v421 = vsub.s32 2, %v420
  %v422 = vrot.slane %v409, %v421
  %v423 = vlaneseq
  %v424 = vshrl.u32 %v423, 7
  %v425 = vsub.s32 3, %v424
  %v426 = vrot.slane %v409, %v425
  %v427 = vlaneseq
  %v428 = vshrl.u32 %v427, 7
  %v429 = vsub.s32 4, %v428
  %v430 = vrot.slane %v409, %v429
  %v431 = vlaneseq
  %v432 = vshrl.u32 %v431, 7
  %v433 = vsub.s32 5, %v432
  %v434 = vrot.slane %v409, %v433
  %v435 = vlaneseq
  %v436 = vshrl.u32 %v435, 7
  %v437 = vsub.s32 6, %v436
  %v438 = vrot.slane %v409, %v437
  %v439 = vlaneseq
  %v440 = vshrl.u32 %v439, 7
  %v441 = vsub.s32 7, %v440
  %v442 = vrot.slane %v409, %v441
  %451 = vmatprep.subr.mxu0 %v26
  %452 = vmatpush1.msra.mxu0 %v25
  %453 = vmatprep.subr.mxu0 %v34
  %454 = vmatpush1.msra.mxu0 %v33
  %455 = vmatprep.subr.mxu0 %v42
  %456 = vmatpush1.msra.mxu0 %v41
  %457 = vmatprep.subr.mxu0 %v50
  %458 = vmatpush1.msra.mxu0 %v49
  %459 = vmatprep.subr.mxu0 %v58
  %460 = vmatpush1.msra.mxu0 %v57
  %461 = vmatprep.subr.mxu0 %v66
  %462 = vmatpush1.msra.mxu0 %v65
  %463 = vmatprep.subr.mxu0 %v74
  %464 = vmatpush1.msra.mxu0 %v73
  %465 = vmatprep.subr.mxu0 %v82
  %466 = vmatpush1.msra.mxu0 %v81
  %467 = vmatprep.subr.mxu0 %v90
  %468 = vmatpush1.msra.mxu0 %v89
  %469 = vmatprep.subr.mxu0 %v98
  %470 = vmatpush1.msra.mxu0 %v97
  %471 = vmatprep.subr.mxu0 %v106
  %472 = vmatpush1.msra.mxu0 %v105
  %473 = vmatprep.subr.mxu0 %v114
  %474 = vmatpush1.msra.mxu0 %v113
  %475 = vmatprep.subr.mxu0 %v122
  %476 = vmatpush1.msra.mxu0 %v121
  %477 = vmatprep.subr.mxu0 %v130
  %478 = vmatpush1.msra.mxu0 %v129
  %479 = vmatprep.subr.mxu0 %v138
  %480 = vmatpush1.msra.mxu0 %v137
  %481 = vmatprep.subr.mxu0 %v146
  %482 = vmatpush1.msra.mxu0 %v145
  %483 = vmatprep.subr.mxu0 0.0
  %484 = vmatpush1.msra.mxu0 0.0
  %485 = vmatprep.subr.mxu0 0.0
  %486 = vmatpush1.msra.mxu0 0.0
  %487 = vmatprep.subr.mxu0 0.0
  %488 = vmatpush1.msra.mxu0 0.0
  %489 = vmatprep.subr.mxu0 0.0
  %490 = vmatpush1.msra.mxu0 0.0
  %491 = vmatprep.subr.mxu0 0.0
  %492 = vmatpush1.msra.mxu0 0.0
  %493 = vmatprep.subr.mxu0 0.0
  %494 = vmatpush1.msra.mxu0 0.0
  %495 = vmatprep.subr.mxu0 0.0
  %496 = vmatpush1.msra.mxu0 0.0
  %497 = vmatprep.subr.mxu0 0.0
  %498 = vmatpush1.msra.mxu0 0.0
  %499 = vmatprep.subr.mxu0 0.0
  %500 = vmatpush1.msra.mxu0 0.0
  %501 = vmatprep.subr.mxu0 0.0
  %502 = vmatpush1.msra.mxu0 0.0
  %503 = vmatprep.subr.mxu0 0.0
  %504 = vmatpush1.msra.mxu0 0.0
  %505 = vmatprep.subr.mxu0 0.0
  %506 = vmatpush1.msra.mxu0 0.0
  %507 = vmatprep.subr.mxu0 0.0
  %508 = vmatpush1.msra.mxu0 0.0
  %509 = vmatprep.subr.mxu0 0.0
  %510 = vmatpush1.msra.mxu0 0.0
  %511 = vmatprep.subr.mxu0 0.0
  %512 = vmatpush1.msra.mxu0 0.0
  %513 = vmatprep.subr.mxu0 0.0
  %514 = vmatpush1.msra.mxu0 0.0
  %515 = vmatprep.mubr.f32.mxu0 0.0
  %516 = vmatmul.mubr.f32.gmra.mrb[0].mxu0 %v23
  %v517 = vpop.f32.mrb[0].mxu0
  %v518 = vadd.f32 %v414, %v517
  %v519 = vpop.f32.mrb[0].mxu0
  %v520 = vadd.f32 %v418, %v519
  %521 = vmatprep.mubr.f32.mxu0 0.0
  %522 = vmatmul.mubr.f32.gmra.mrb[0].mxu0 %v24
  %v523 = vpop.f32.mrb[0].mxu0
  %v524 = vadd.f32 %v414, %v523
  %v525 = vpop.f32.mrb[0].mxu0
  %v526 = vadd.f32 %v418, %v525
  %527 = vdwg.mxu0
  %528 = vmatprep.subr.mxu0 %v28
  %529 = vmatpush1.msra.mxu0 %v27
  %530 = vmatprep.subr.mxu0 %v36
  %531 = vmatpush1.msra.mxu0 %v35
  %532 = vmatprep.subr.mxu0 %v44
  %533 = vmatpush1.msra.mxu0 %v43
  %534 = vmatprep.subr.mxu0 %v52
  %535 = vmatpush1.msra.mxu0 %v51
  %536 = vmatprep.subr.mxu0 %v60
  %537 = vmatpush1.msra.mxu0 %v59
  %538 = vmatprep.subr.mxu0 %v68
  %539 = vmatpush1.msra.mxu0 %v67
  %540 = vmatprep.subr.mxu0 %v76
  %541 = vmatpush1.msra.mxu0 %v75
  %542 = vmatprep.subr.mxu0 %v84
  %543 = vmatpush1.msra.mxu0 %v83
  %544 = vmatprep.subr.mxu0 %v92
  %545 = vmatpush1.msra.mxu0 %v91
  %546 = vmatprep.subr.mxu0 %v100
  %547 = vmatpush1.msra.mxu0 %v99
  %548 = vmatprep.subr.mxu0 %v108
  %549 = vmatpush1.msra.mxu0 %v107
  %550 = vmatprep.subr.mxu0 %v116
  %551 = vmatpush1.msra.mxu0 %v115
  %552 = vmatprep.subr.mxu0 %v124
  %553 = vmatpush1.msra.mxu0 %v123
  %554 = vmatprep.subr.mxu0 %v132
  %555 = vmatpush1.msra.mxu0 %v131
  %556 = vmatprep.subr.mxu0 %v140
  %557 = vmatpush1.msra.mxu0 %v139
  %558 = vmatprep.subr.mxu0 %v148
  %559 = vmatpush1.msra.mxu0 %v147
  %560 = vmatprep.subr.mxu0 0.0
  %561 = vmatpush1.msra.mxu0 0.0
  %562 = vmatprep.subr.mxu0 0.0
  %563 = vmatpush1.msra.mxu0 0.0
  %564 = vmatprep.subr.mxu0 0.0
  %565 = vmatpush1.msra.mxu0 0.0
  %566 = vmatprep.subr.mxu0 0.0
  %567 = vmatpush1.msra.mxu0 0.0
  %568 = vmatprep.subr.mxu0 0.0
  %569 = vmatpush1.msra.mxu0 0.0
  %570 = vmatprep.subr.mxu0 0.0
  %571 = vmatpush1.msra.mxu0 0.0
  %572 = vmatprep.subr.mxu0 0.0
  %573 = vmatpush1.msra.mxu0 0.0
  %574 = vmatprep.subr.mxu0 0.0
  %575 = vmatpush1.msra.mxu0 0.0
  %576 = vmatprep.subr.mxu0 0.0
  %577 = vmatpush1.msra.mxu0 0.0
  %578 = vmatprep.subr.mxu0 0.0
  %579 = vmatpush1.msra.mxu0 0.0
  %580 = vmatprep.subr.mxu0 0.0
  %581 = vmatpush1.msra.mxu0 0.0
  %582 = vmatprep.subr.mxu0 0.0
  %583 = vmatpush1.msra.mxu0 0.0
  %584 = vmatprep.subr.mxu0 0.0
  %585 = vmatpush1.msra.mxu0 0.0
  %586 = vmatprep.subr.mxu0 0.0
  %587 = vmatpush1.msra.mxu0 0.0
  %588 = vmatprep.subr.mxu0 0.0
  %589 = vmatpush1.msra.mxu0 0.0
  %590 = vmatprep.subr.mxu0 0.0
  %591 = vmatpush1.msra.mxu0 0.0
  %592 = vmatprep.mubr.f32.mxu0 0.0
  %593 = vmatmul.mubr.f32.gmra.mrb[0].mxu0 %v23
  %v594 = vpop.f32.mrb[0].mxu0
  %v595 = vadd.f32 %v422, %v594
  %v596 = vpop.f32.mrb[0].mxu0
  %v597 = vadd.f32 %v426, %v596
  %598 = vmatprep.mubr.f32.mxu0 0.0
  %599 = vmatmul.mubr.f32.gmra.mrb[0].mxu0 %v24
  %v600 = vpop.f32.mrb[0].mxu0
  %v601 = vadd.f32 %v422, %v600
  %v602 = vpop.f32.mrb[0].mxu0
  %v603 = vadd.f32 %v426, %v602
  %604 = vdwg.mxu0
  %605 = vmatprep.subr.mxu0 %v30
  %606 = vmatpush1.msra.mxu0 %v29
  %607 = vmatprep.subr.mxu0 %v38
  %608 = vmatpush1.msra.mxu0 %v37
  %609 = vmatprep.subr.mxu0 %v46
  %610 = vmatpush1.msra.mxu0 %v45
  %611 = vmatprep.subr.mxu0 %v54
  %612 = vmatpush1.msra.mxu0 %v53
  %613 = vmatprep.subr.mxu0 %v62
  %614 = vmatpush1.msra.mxu0 %v61
  %615 = vmatprep.subr.mxu0 %v70
  %616 = vmatpush1.msra.mxu0 %v69
  %617 = vmatprep.subr.mxu0 %v78
  %618 = vmatpush1.msra.mxu0 %v77
  %619 = vmatprep.subr.mxu0 %v86
  %620 = vmatpush1.msra.mxu0 %v85
  %621 = vmatprep.subr.mxu0 %v94
  %622 = vmatpush1.msra.mxu0 %v93
  %623 = vmatprep.subr.mxu0 %v102
  %624 = vmatpush1.msra.mxu0 %v101
  %625 = vmatprep.subr.mxu0 %v110
  %626 = vmatpush1.msra.mxu0 %v109
  %627 = vmatprep.subr.mxu0 %v118
  %628 = vmatpush1.msra.mxu0 %v117
  %629 = vmatprep.subr.mxu0 %v126
  %630 = vmatpush1.msra.mxu0 %v125
  %631 = vmatprep.subr.mxu0 %v134
  %632 = vmatpush1.msra.mxu0 %v133
  %633 = vmatprep.subr.mxu0 %v142
  %634 = vmatpush1.msra.mxu0 %v141
  %635 = vmatprep.subr.mxu0 %v150
  %636 = vmatpush1.msra.mxu0 %v149
  %637 = vmatprep.subr.mxu0 0.0
  %638 = vmatpush1.msra.mxu0 0.0
  %639 = vmatprep.subr.mxu0 0.0
  %640 = vmatpush1.msra.mxu0 0.0
  %641 = vmatprep.subr.mxu0 0.0
  %642 = vmatpush1.msra.mxu0 0.0
  %643 = vmatprep.subr.mxu0 0.0
  %644 = vmatpush1.msra.mxu0 0.0
  %645 = vmatprep.subr.mxu0 0.0
  %646 = vmatpush1.msra.mxu0 0.0
  %647 = vmatprep.subr.mxu0 0.0
  %648 = vmatpush1.msra.mxu0 0.0
  %649 = vmatprep.subr.mxu0 0.0
  %650 = vmatpush1.msra.mxu0 0.0
  %651 = vmatprep.subr.mxu0 0.0
  %652 = vmatpush1.msra.mxu0 0.0
  %653 = vmatprep.subr.mxu0 0.0
  %654 = vmatpush1.msra.mxu0 0.0
  %655 = vmatprep.subr.mxu0 0.0
  %656 = vmatpush1.msra.mxu0 0.0
  %657 = vmatprep.subr.mxu0 0.0
  %658 = vmatpush1.msra.mxu0 0.0
  %659 = vmatprep.subr.mxu0 0.0
  %660 = vmatpush1.msra.mxu0 0.0
  %661 = vmatprep.subr.mxu0 0.0
  %662 = vmatpush1.msra.mxu0 0.0
  %663 = vmatprep.subr.mxu0 0.0
  %664 = vmatpush1.msra.mxu0 0.0
  %665 = vmatprep.subr.mxu0 0.0
  %666 = vmatpush1.msra.mxu0 0.0
  %667 = vmatprep.subr.mxu0 0.0
  %668 = vmatpush1.msra.mxu0 0.0
  %669 = vmatprep.mubr.f32.mxu0 0.0
  %670 = vmatmul.mubr.f32.gmra.mrb[0].mxu0 %v23
  %v671 = vpop.f32.mrb[0].mxu0
  %v672 = vadd.f32 %v430, %v671
  %v673 = vpop.f32.mrb[0].mxu0
  %v674 = vadd.f32 %v434, %v673
  %675 = vmatprep.mubr.f32.mxu0 0.0
  %676 = vmatmul.mubr.f32.gmra.mrb[0].mxu0 %v24
  %v677 = vpop.f32.mrb[0].mxu0
  %v678 = vadd.f32 %v430, %v677
  %v679 = vpop.f32.mrb[0].mxu0
  %v680 = vadd.f32 %v434, %v679
  %681 = vdwg.mxu0
  %682 = vmatprep.subr.mxu0 %v32
  %683 = vmatpush1.msra.mxu0 %v31
  %684 = vmatprep.subr.mxu0 %v40
  %685 = vmatpush1.msra.mxu0 %v39
  %686 = vmatprep.subr.mxu0 %v48
  %687 = vmatpush1.msra.mxu0 %v47
  %688 = vmatprep.subr.mxu0 %v56
  %689 = vmatpush1.msra.mxu0 %v55
  %690 = vmatprep.subr.mxu0 %v64
  %691 = vmatpush1.msra.mxu0 %v63
  %692 = vmatprep.subr.mxu0 %v72
  %693 = vmatpush1.msra.mxu0 %v71
  %694 = vmatprep.subr.mxu0 %v80
  %695 = vmatpush1.msra.mxu0 %v79
  %696 = vmatprep.subr.mxu0 %v88
  %697 = vmatpush1.msra.mxu0 %v87
  %698 = vmatprep.subr.mxu0 %v96
  %699 = vmatpush1.msra.mxu0 %v95
  %700 = vmatprep.subr.mxu0 %v104
  %701 = vmatpush1.msra.mxu0 %v103
  %702 = vmatprep.subr.mxu0 %v112
  %703 = vmatpush1.msra.mxu0 %v111
  %704 = vmatprep.subr.mxu0 %v120
  %705 = vmatpush1.msra.mxu0 %v119
  %706 = vmatprep.subr.mxu0 %v128
  %707 = vmatpush1.msra.mxu0 %v127
  %708 = vmatprep.subr.mxu0 %v136
  %709 = vmatpush1.msra.mxu0 %v135
  %710 = vmatprep.subr.mxu0 %v144
  %711 = vmatpush1.msra.mxu0 %v143
  %712 = vmatprep.subr.mxu0 %v152
  %713 = vmatpush1.msra.mxu0 %v151
  %714 = vmatprep.subr.mxu0 0.0
  %715 = vmatpush1.msra.mxu0 0.0
  %716 = vmatprep.subr.mxu0 0.0
  %717 = vmatpush1.msra.mxu0 0.0
  %718 = vmatprep.subr.mxu0 0.0
  %719 = vmatpush1.msra.mxu0 0.0
  %720 = vmatprep.subr.mxu0 0.0
  %721 = vmatpush1.msra.mxu0 0.0
  %722 = vmatprep.subr.mxu0 0.0
  %723 = vmatpush1.msra.mxu0 0.0
  %724 = vmatprep.subr.mxu0 0.0
  %725 = vmatpush1.msra.mxu0 0.0
  %726 = vmatprep.subr.mxu0 0.0
  %727 = vmatpush1.msra.mxu0 0.0
  %728 = vmatprep.subr.mxu0 0.0
  %729 = vmatpush1.msra.mxu0 0.0
  %730 = vmatprep.subr.mxu0 0.0
  %731 = vmatpush1.msra.mxu0 0.0
  %732 = vmatprep.subr.mxu0 0.0
  %733 = vmatpush1.msra.mxu0 0.0
  %734 = vmatprep.subr.mxu0 0.0
  %735 = vmatpush1.msra.mxu0 0.0
  %736 = vmatprep.subr.mxu0 0.0
  %737 = vmatpush1.msra.mxu0 0.0
  %738 = vmatprep.subr.mxu0 0.0
  %739 = vmatpush1.msra.mxu0 0.0
  %740 = vmatprep.subr.mxu0 0.0
  %741 = vmatpush1.msra.mxu0 0.0
  %742 = vmatprep.subr.mxu0 0.0
  %743 = vmatpush1.msra.mxu0 0.0
  %744 = vmatprep.subr.mxu0 0.0
  %745 = vmatpush1.msra.mxu0 0.0
  %746 = vmatprep.mubr.f32.mxu0 0.0
  %747 = vmatmul.mubr.f32.gmra.mrb[0].mxu0 %v23
  %v748 = vpop.f32.mrb[0].mxu0
  %v749 = vadd.f32 %v438, %v748
  %v750 = vpop.f32.mrb[0].mxu0
  %v751 = vadd.f32 %v442, %v750
  %752 = vmatprep.mubr.f32.mxu0 0.0
  %753 = vmatmul.mubr.f32.gmra.mrb[0].mxu0 %v24
  %v754 = vpop.f32.mrb[0].mxu0
  %v755 = vadd.f32 %v438, %v754
  %v756 = vpop.f32.mrb[0].mxu0
  %v757 = vadd.f32 %v442, %v756
  %758 = vdwg.mxu0
  %759 = vmatprep.subr.mxu0 %v154
  %760 = vmatpush1.msra.mxu0 %v153
  %761 = vmatprep.subr.mxu0 %v162
  %762 = vmatpush1.msra.mxu0 %v161
  %763 = vmatprep.subr.mxu0 %v170
  %764 = vmatpush1.msra.mxu0 %v169
  %765 = vmatprep.subr.mxu0 %v178
  %766 = vmatpush1.msra.mxu0 %v177
  %767 = vmatprep.subr.mxu0 %v186
  %768 = vmatpush1.msra.mxu0 %v185
  %769 = vmatprep.subr.mxu0 %v194
  %770 = vmatpush1.msra.mxu0 %v193
  %771 = vmatprep.subr.mxu0 %v202
  %772 = vmatpush1.msra.mxu0 %v201
  %773 = vmatprep.subr.mxu0 %v210
  %774 = vmatpush1.msra.mxu0 %v209
  %775 = vmatprep.subr.mxu0 %v218
  %776 = vmatpush1.msra.mxu0 %v217
  %777 = vmatprep.subr.mxu0 %v226
  %778 = vmatpush1.msra.mxu0 %v225
  %779 = vmatprep.subr.mxu0 %v234
  %780 = vmatpush1.msra.mxu0 %v233
  %781 = vmatprep.subr.mxu0 %v242
  %782 = vmatpush1.msra.mxu0 %v241
  %783 = vmatprep.subr.mxu0 %v250
  %784 = vmatpush1.msra.mxu0 %v249
  %785 = vmatprep.subr.mxu0 %v258
  %786 = vmatpush1.msra.mxu0 %v257
  %787 = vmatprep.subr.mxu0 %v266
  %788 = vmatpush1.msra.mxu0 %v265
  %789 = vmatprep.subr.mxu0 %v274
  %790 = vmatpush1.msra.mxu0 %v273
  %791 = vmatprep.subr.mxu0 %v282
  %792 = vmatpush1.msra.mxu0 %v281
  %793 = vmatprep.subr.mxu0 %v290
  %794 = vmatpush1.msra.mxu0 %v289
  %795 = vmatprep.subr.mxu0 %v298
  %796 = vmatpush1.msra.mxu0 %v297
  %797 = vmatprep.subr.mxu0 %v306
  %798 = vmatpush1.msra.mxu0 %v305
  %799 = vmatprep.subr.mxu0 %v314
  %800 = vmatpush1.msra.mxu0 %v313
  %801 = vmatprep.subr.mxu0 %v322
  %802 = vmatpush1.msra.mxu0 %v321
  %803 = vmatprep.subr.mxu0 %v330
  %804 = vmatpush1.msra.mxu0 %v329
  %805 = vmatprep.subr.mxu0 %v338
  %806 = vmatpush1.msra.mxu0 %v337
  %807 = vmatprep.subr.mxu0 %v346
  %808 = vmatpush1.msra.mxu0 %v345
  %809 = vmatprep.subr.mxu0 %v354
  %810 = vmatpush1.msra.mxu0 %v353
  %811 = vmatprep.subr.mxu0 %v362
  %812 = vmatpush1.msra.mxu0 %v361
  %813 = vmatprep.subr.mxu0 %v370
  %814 = vmatpush1.msra.mxu0 %v369
  %815 = vmatprep.subr.mxu0 %v378
  %816 = vmatpush1.msra.mxu0 %v377
  %817 = vmatprep.subr.mxu0 %v386
  %818 = vmatpush1.msra.mxu0 %v385
  %819 = vmatprep.subr.mxu0 %v394
  %820 = vmatpush1.msra.mxu0 %v393
  %821 = vmatprep.subr.mxu0 %v402
  %822 = vmatpush1.msra.mxu0 %v401
  %823 = vmatprep.mubr.f32.mxu0 0.0
  %824 = vmatmul.mubr.f32.gmra.mrb[0].mxu0 0.0
  %v825 = vpop.f32.mrb[0].mxu0
  %v826 = vadd.f32 0.0, %v825
  %v827 = vpop.f32.mrb[0].mxu0
  %v828 = vadd.f32 0.0, %v827
  %829 = vdwg.mxu0
  %830 = vmatprep.subr.mxu0 %v156
  %831 = vmatpush1.msra.mxu0 %v155
  %832 = vmatprep.subr.mxu0 %v164
  %833 = vmatpush1.msra.mxu0 %v163
  %834 = vmatprep.subr.mxu0 %v172
  %835 = vmatpush1.msra.mxu0 %v171
  %836 = vmatprep.subr.mxu0 %v180
  %837 = vmatpush1.msra.mxu0 %v179
  %838 = vmatprep.subr.mxu0 %v188
  %839 = vmatpush1.msra.mxu0 %v187
  %840 = vmatprep.subr.mxu0 %v196
  %841 = vmatpush1.msra.mxu0 %v195
  %842 = vmatprep.subr.mxu0 %v204
  %843 = vmatpush1.msra.mxu0 %v203
  %844 = vmatprep.subr.mxu0 %v212
  %845 = vmatpush1.msra.mxu0 %v211
  %846 = vmatprep.subr.mxu0 %v220
  %847 = vmatpush1.msra.mxu0 %v219
  %848 = vmatprep.subr.mxu0 %v228
  %849 = vmatpush1.msra.mxu0 %v227
  %850 = vmatprep.subr.mxu0 %v236
  %851 = vmatpush1.msra.mxu0 %v235
  %852 = vmatprep.subr.mxu0 %v244
  %853 = vmatpush1.msra.mxu0 %v243
  %854 = vmatprep.subr.mxu0 %v252
  %855 = vmatpush1.msra.mxu0 %v251
  %856 = vmatprep.subr.mxu0 %v260
  %857 = vmatpush1.msra.mxu0 %v259
  %858 = vmatprep.subr.mxu0 %v268
  %859 = vmatpush1.msra.mxu0 %v267
  %860 = vmatprep.subr.mxu0 %v276
  %861 = vmatpush1.msra.mxu0 %v275
  %862 = vmatprep.subr.mxu0 %v284
  %863 = vmatpush1.msra.mxu0 %v283
  %864 = vmatprep.subr.mxu0 %v292
  %865 = vmatpush1.msra.mxu0 %v291
  %866 = vmatprep.subr.mxu0 %v300
  %867 = vmatpush1.msra.mxu0 %v299
  %868 = vmatprep.subr.mxu0 %v308
  %869 = vmatpush1.msra.mxu0 %v307
  %870 = vmatprep.subr.mxu0 %v316
  %871 = vmatpush1.msra.mxu0 %v315
  %872 = vmatprep.subr.mxu0 %v324
  %873 = vmatpush1.msra.mxu0 %v323
  %874 = vmatprep.subr.mxu0 %v332
  %875 = vmatpush1.msra.mxu0 %v331
  %876 = vmatprep.subr.mxu0 %v340
  %877 = vmatpush1.msra.mxu0 %v339
  %878 = vmatprep.subr.mxu0 %v348
  %879 = vmatpush1.msra.mxu0 %v347
  %880 = vmatprep.subr.mxu0 %v356
  %881 = vmatpush1.msra.mxu0 %v355
  %882 = vmatprep.subr.mxu0 %v364
  %883 = vmatpush1.msra.mxu0 %v363
  %884 = vmatprep.subr.mxu0 %v372
  %885 = vmatpush1.msra.mxu0 %v371
  %886 = vmatprep.subr.mxu0 %v380
  %887 = vmatpush1.msra.mxu0 %v379
  %888 = vmatprep.subr.mxu0 %v388
  %889 = vmatpush1.msra.mxu0 %v387
  %890 = vmatprep.subr.mxu0 %v396
  %891 = vmatpush1.msra.mxu0 %v395
  %892 = vmatprep.subr.mxu0 %v404
  %893 = vmatpush1.msra.mxu0 %v403
  %894 = vmatprep.mubr.f32.mxu0 0.0
  %895 = vmatmul.mubr.f32.gmra.mrb[0].mxu0 0.0
  %v896 = vpop.f32.mrb[0].mxu0
  %v897 = vadd.f32 0.0, %v896
  %v898 = vpop.f32.mrb[0].mxu0
  %v899 = vadd.f32 0.0, %v898
  %900 = vdwg.mxu0
  %901 = vmatprep.subr.mxu0 %v158
  %902 = vmatpush1.msra.mxu0 %v157
  %903 = vmatprep.subr.mxu0 %v166
  %904 = vmatpush1.msra.mxu0 %v165
  %905 = vmatprep.subr.mxu0 %v174
  %906 = vmatpush1.msra.mxu0 %v173
  %907 = vmatprep.subr.mxu0 %v182
  %908 = vmatpush1.msra.mxu0 %v181
  %909 = vmatprep.subr.mxu0 %v190
  %910 = vmatpush1.msra.mxu0 %v189
  %911 = vmatprep.subr.mxu0 %v198
  %912 = vmatpush1.msra.mxu0 %v197
  %913 = vmatprep.subr.mxu0 %v206
  %914 = vmatpush1.msra.mxu0 %v205
  %915 = vmatprep.subr.mxu0 %v214
  %916 = vmatpush1.msra.mxu0 %v213
  %917 = vmatprep.subr.mxu0 %v222
  %918 = vmatpush1.msra.mxu0 %v221
  %919 = vmatprep.subr.mxu0 %v230
  %920 = vmatpush1.msra.mxu0 %v229
  %921 = vmatprep.subr.mxu0 %v238
  %922 = vmatpush1.msra.mxu0 %v237
  %923 = vmatprep.subr.mxu0 %v246
  %924 = vmatpush1.msra.mxu0 %v245
  %925 = vmatprep.subr.mxu0 %v254
  %926 = vmatpush1.msra.mxu0 %v253
  %927 = vmatprep.subr.mxu0 %v262
  %928 = vmatpush1.msra.mxu0 %v261
  %929 = vmatprep.subr.mxu0 %v270
  %930 = vmatpush1.msra.mxu0 %v269
  %931 = vmatprep.subr.mxu0 %v278
  %932 = vmatpush1.msra.mxu0 %v277
  %933 = vmatprep.subr.mxu0 %v286
  %934 = vmatpush1.msra.mxu0 %v285
  %935 = vmatprep.subr.mxu0 %v294
  %936 = vmatpush1.msra.mxu0 %v293
  %937 = vmatprep.subr.mxu0 %v302
  %938 = vmatpush1.msra.mxu0 %v301
  %939 = vmatprep.subr.mxu0 %v310
  %940 = vmatpush1.msra.mxu0 %v309
  %941 = vmatprep.subr.mxu0 %v318
  %942 = vmatpush1.msra.mxu0 %v317
  %943 = vmatprep.subr.mxu0 %v326
  %944 = vmatpush1.msra.mxu0 %v325
  %945 = vmatprep.subr.mxu0 %v334
  %946 = vmatpush1.msra.mxu0 %v333
  %947 = vmatprep.subr.mxu0 %v342
  %948 = vmatpush1.msra.mxu0 %v341
  %949 = vmatprep.subr.mxu0 %v350
  %950 = vmatpush1.msra.mxu0 %v349
  %951 = vmatprep.subr.mxu0 %v358
  %952 = vmatpush1.msra.mxu0 %v357
  %953 = vmatprep.subr.mxu0 %v366
  %954 = vmatpush1.msra.mxu0 %v365
  %955 = vmatprep.subr.mxu0 %v374
  %956 = vmatpush1.msra.mxu0 %v373
  %957 = vmatprep.subr.mxu0 %v382
  %958 = vmatpush1.msra.mxu0 %v381
  %959 = vmatprep.subr.mxu0 %v390
  %960 = vmatpush1.msra.mxu0 %v389
  %961 = vmatprep.subr.mxu0 %v398
  %962 = vmatpush1.msra.mxu0 %v397
  %963 = vmatprep.subr.mxu0 %v406
  %964 = vmatpush1.msra.mxu0 %v405
  %965 = vmatprep.mubr.f32.mxu0 0.0
  %966 = vmatmul.mubr.f32.gmra.mrb[0].mxu0 0.0
  %v967 = vpop.f32.mrb[0].mxu0
  %v968 = vadd.f32 0.0, %v967
  %v969 = vpop.f32.mrb[0].mxu0
  %v970 = vadd.f32 0.0, %v969
  %971 = vdwg.mxu0
  %972 = vmatprep.subr.mxu0 %v160
  %973 = vmatpush1.msra.mxu0 %v159
  %974 = vmatprep.subr.mxu0 %v168
  %975 = vmatpush1.msra.mxu0 %v167
  %976 = vmatprep.subr.mxu0 %v176
  %977 = vmatpush1.msra.mxu0 %v175
  %978 = vmatprep.subr.mxu0 %v184
  %979 = vmatpush1.msra.mxu0 %v183
  %980 = vmatprep.subr.mxu0 %v192
  %981 = vmatpush1.msra.mxu0 %v191
  %982 = vmatprep.subr.mxu0 %v200
  %983 = vmatpush1.msra.mxu0 %v199
  %984 = vmatprep.subr.mxu0 %v208
  %985 = vmatpush1.msra.mxu0 %v207
  %986 = vmatprep.subr.mxu0 %v216
  %987 = vmatpush1.msra.mxu0 %v215
  %988 = vmatprep.subr.mxu0 %v224
  %989 = vmatpush1.msra.mxu0 %v223
  %990 = vmatprep.subr.mxu0 %v232
  %991 = vmatpush1.msra.mxu0 %v231
  %992 = vmatprep.subr.mxu0 %v240
  %993 = vmatpush1.msra.mxu0 %v239
  %994 = vmatprep.subr.mxu0 %v248
  %995 = vmatpush1.msra.mxu0 %v247
  %996 = vmatprep.subr.mxu0 %v256
  %997 = vmatpush1.msra.mxu0 %v255
  %998 = vmatprep.subr.mxu0 %v264
  %999 = vmatpush1.msra.mxu0 %v263
  %1000 = vmatprep.subr.mxu0 %v272
  %1001 = vmatpush1.msra.mxu0 %v271
  %1002 = vmatprep.subr.mxu0 %v280
  %1003 = vmatpush1.msra.mxu0 %v279
  %1004 = vmatprep.subr.mxu0 %v288
  %1005 = vmatpush1.msra.mxu0 %v287
  %1006 = vmatprep.subr.mxu0 %v296
  %1007 = vmatpush1.msra.mxu0 %v295
  %1008 = vmatprep.subr.mxu0 %v304
  %1009 = vmatpush1.msra.mxu0 %v303
  %1010 = vmatprep.subr.mxu0 %v312
  %1011 = vmatpush1.msra.mxu0 %v311
  %1012 = vmatprep.subr.mxu0 %v320
  %1013 = vmatpush1.msra.mxu0 %v319
  %1014 = vmatprep.subr.mxu0 %v328
  %1015 = vmatpush1.msra.mxu0 %v327
  %1016 = vmatprep.subr.mxu0 %v336
  %1017 = vmatpush1.msra.mxu0 %v335
  %1018 = vmatprep.subr.mxu0 %v344
  %1019 = vmatpush1.msra.mxu0 %v343
  %1020 = vmatprep.subr.mxu0 %v352
  %1021 = vmatpush1.msra.mxu0 %v351
  %1022 = vmatprep.subr.mxu0 %v360
  %1023 = vmatpush1.msra.mxu0 %v359
  %1024 = vmatprep.subr.mxu0 %v368
  %1025 = vmatpush1.msra.mxu0 %v367
  %1026 = vmatprep.subr.mxu0 %v376
  %1027 = vmatpush1.msra.mxu0 %v375
  %1028 = vmatprep.subr.mxu0 %v384
  %1029 = vmatpush1.msra.mxu0 %v383
  %1030 = vmatprep.subr.mxu0 %v392
  %1031 = vmatpush1.msra.mxu0 %v391
  %1032 = vmatprep.subr.mxu0 %v400
  %1033 = vmatpush1.msra.mxu0 %v399
  %1034 = vmatprep.subr.mxu0 %v408
  %1035 = vmatpush1.msra.mxu0 %v407
  %1036 = vmatprep.mubr.f32.mxu0 0.0
  %1037 = vmatmul.mubr.f32.gmra.mrb[0].mxu0 0.0
  %v1038 = vpop.f32.mrb[0].mxu0
  %v1039 = vadd.f32 0.0, %v1038
  %v1040 = vpop.f32.mrb[0].mxu0
  %v1041 = vadd.f32 0.0, %v1040
  %1042 = vdwg.mxu0
  %v1043 = vadd.f32 %v518, %v826
  %v1044 = vadd.f32 %v520, %v828
  %v1045 = vadd.f32 %v595, %v897
  %v1046 = vadd.f32 %v597, %v899
  %v1047 = vadd.f32 %v672, %v968
  %v1048 = vadd.f32 %v674, %v970
  %v1049 = vadd.f32 %v749, %v1039
  %v1050 = vadd.f32 %v751, %v1041
  %v1051 = vsub.f32 0.0, %v1043
  %v1052 = vsub.f32 0.0, %v1044
  %v1053 = vmul.f32 %v1051, 1.442695
  %v1054 = vpow.pop %v1053
  %v1055 = vmul.f32 %v1052, 1.442695
  %v1056 = vpow.pop %v1055
  %v1057 = vadd.f32 %v1054, 1.0
  %v1058 = vadd.f32 %v1056, 1.0
  %v1059 = vrcp.pop %v1057
  %v1060 = vmul.f32 1.0, %v1059
  %v1061 = vrcp.pop %v1058
  %v1062 = vmul.f32 1.0, %v1061
  %v1063 = vsub.f32 0.0, %v1045
  %v1064 = vsub.f32 0.0, %v1046
  %v1065 = vmul.f32 %v1063, 1.442695
  %v1066 = vpow.pop %v1065
  %v1067 = vmul.f32 %v1064, 1.442695
  %v1068 = vpow.pop %v1067
  %v1069 = vadd.f32 %v1066, 1.0
  %v1070 = vadd.f32 %v1068, 1.0
  %v1071 = vrcp.pop %v1069
  %v1072 = vmul.f32 1.0, %v1071
  %v1073 = vrcp.pop %v1070
  %v1074 = vmul.f32 1.0, %v1073
  %v1075 = vtanh.pop %v1047
  %v1076 = vtanh.pop %v1048
  %v1077 = vsub.f32 0.0, %v1049
  %v1078 = vsub.f32 0.0, %v1050
  %v1079 = vmul.f32 %v1077, 1.442695
  %v1080 = vpow.pop %v1079
  %v1081 = vmul.f32 %v1078, 1.442695
  %v1082 = vpow.pop %v1081
  %v1083 = vadd.f32 %v1080, 1.0
  %v1084 = vadd.f32 %v1082, 1.0
  %v1085 = vrcp.pop %v1083
  %v1086 = vmul.f32 1.0, %v1085
  %v1087 = vrcp.pop %v1084
  %v1088 = vmul.f32 1.0, %v1087
  %v1089 = vmul.f32 %v1072, 0.0
  %v1090 = vmul.f32 %v1074, 0.0
  %v1091 = vmul.f32 %v1060, %v1075
  %v1092 = vmul.f32 %v1062, %v1076
  %v1093 = vadd.f32 %v1089, %v1091
  %v1094 = vadd.f32 %v1090, %v1092
  %v1095 = vtanh.pop %v1093
  %v1096 = vtanh.pop %v1094
  %v1097 = vmul.f32 %v1086, %v1095
  %v1098 = vmul.f32 %v1088, %v1096
  %1099 = vst [vmem:[#allocation2] sm:$0x3] %v1097
  %1100 = vst [vmem:[#allocation2 + $0x8] sm:$0x3] %v1098
  %1101 = vmatprep.subr.mxu0 %v154
  %1102 = vmatpush1.msra.mxu0 %v153
  %1103 = vmatprep.subr.mxu0 %v162
  %1104 = vmatpush1.msra.mxu0 %v161
  %1105 = vmatprep.subr.mxu0 %v170
  %1106 = vmatpush1.msra.mxu0 %v169
  %1107 = vmatprep.subr.mxu0 %v178
  %1108 = vmatpush1.msra.mxu0 %v177
  %1109 = vmatprep.subr.mxu0 %v186
  %1110 = vmatpush1.msra.mxu0 %v185
  %1111 = vmatprep.subr.mxu0 %v194
  %1112 = vmatpush1.msra.mxu0 %v193
  %1113 = vmatprep.subr.mxu0 %v202
  %1114 = vmatpush1.msra.mxu0 %v201
  %1115 = vmatprep.subr.mxu0 %v210
  %1116 = vmatpush1.msra.mxu0 %v209
  %1117 = vmatprep.subr.mxu0 %v218
  %1118 = vmatpush1.msra.mxu0 %v217
  %1119 = vmatprep.subr.mxu0 %v226
  %1120 = vmatpush1.msra.mxu0 %v225
  %1121 = vmatprep.subr.mxu0 %v234
  %1122 = vmatpush1.msra.mxu0 %v233
  %1123 = vmatprep.subr.mxu0 %v242
  %1124 = vmatpush1.msra.mxu0 %v241
  %1125 = vmatprep.subr.mxu0 %v250
  %1126 = vmatpush1.msra.mxu0 %v249
  %1127 = vmatprep.subr.mxu0 %v258
  %1128 = vmatpush1.msra.mxu0 %v257
  %1129 = vmatprep.subr.mxu0 %v266
  %1130 = vmatpush1.msra.mxu0 %v265
  %1131 = vmatprep.subr.mxu0 %v274
  %1132 = vmatpush1.msra.mxu0 %v273
  %1133 = vmatprep.subr.mxu0 %v282
  %1134 = vmatpush1.msra.mxu0 %v281
  %1135 = vmatprep.subr.mxu0 %v290
  %1136 = vmatpush1.msra.mxu0 %v289
  %1137 = vmatprep.subr.mxu0 %v298
  %1138 = vmatpush1.msra.mxu0 %v297
  %1139 = vmatprep.subr.mxu0 %v306
  %1140 = vmatpush1.msra.mxu0 %v305
  %1141 = vmatprep.subr.mxu0 %v314
  %1142 = vmatpush1.msra.mxu0 %v313
  %1143 = vmatprep.subr.mxu0 %v322
  %1144 = vmatpush1.msra.mxu0 %v321
  %1145 = vmatprep.subr.mxu0 %v330
  %1146 = vmatpush1.msra.mxu0 %v329
  %1147 = vmatprep.subr.mxu0 %v338
  %1148 = vmatpush1.msra.mxu0 %v337
  %1149 = vmatprep.subr.mxu0 %v346
  %1150 = vmatpush1.msra.mxu0 %v345
  %1151 = vmatprep.subr.mxu0 %v354
  %1152 = vmatpush1.msra.mxu0 %v353
  %1153 = vmatprep.subr.mxu0 %v362
  %1154 = vmatpush1.msra.mxu0 %v361
  %1155 = vmatprep.subr.mxu0 %v370
  %1156 = vmatpush1.msra.mxu0 %v369
  %1157 = vmatprep.subr.mxu0 %v378
  %1158 = vmatpush1.msra.mxu0 %v377
  %1159 = vmatprep.subr.mxu0 %v386
  %1160 = vmatpush1.msra.mxu0 %v385
  %1161 = vmatprep.subr.mxu0 %v394
  %1162 = vmatpush1.msra.mxu0 %v393
  %1163 = vmatprep.subr.mxu0 %v402
  %1164 = vmatpush1.msra.mxu0 %v401
  %1165 = vmatprep.mubr.f32.mxu0 %v1098
  %1166 = vmatmul.mubr.f32.gmra.mrb[0].mxu0 %v1097
  %v1167 = vpop.f32.mrb[0].mxu0
  %v1168 = vadd.f32 0.0, %v1167
  %v1169 = vpop.f32.mrb[0].mxu0
  %v1170 = vadd.f32 0.0, %v1169
  %1171 = vdwg.mxu0
  %1172 = vmatprep.subr.mxu0 %v156
  %1173 = vmatpush1.msra.mxu0 %v155
  %1174 = vmatprep.subr.mxu0 %v164
  %1175 = vmatpush1.msra.mxu0 %v163
  %1176 = vmatprep.subr.mxu0 %v172
  %1177 = vmatpush1.msra.mxu0 %v171
  %1178 = vmatprep.subr.mxu0 %v180
  %1179 = vmatpush1.msra.mxu0 %v179
  %1180 = vmatprep.subr.mxu0 %v188
  %1181 = vmatpush1.msra.mxu0 %v187
  %1182 = vmatprep.subr.mxu0 %v196
  %1183 = vmatpush1.msra.mxu0 %v195
  %1184 = vmatprep.subr.mxu0 %v204
  %1185 = vmatpush1.msra.mxu0 %v203
  %1186 = vmatprep.subr.mxu0 %v212
  %1187 = vmatpush1.msra.mxu0 %v211
  %1188 = vmatprep.subr.mxu0 %v220
  %1189 = vmatpush1.msra.mxu0 %v219
  %1190 = vmatprep.subr.mxu0 %v228
  %1191 = vmatpush1.msra.mxu0 %v227
  %1192 = vmatprep.subr.mxu0 %v236
  %1193 = vmatpush1.msra.mxu0 %v235
  %1194 = vmatprep.subr.mxu0 %v244
  %1195 = vmatpush1.msra.mxu0 %v243
  %1196 = vmatprep.subr.mxu0 %v252
  %1197 = vmatpush1.msra.mxu0 %v251
  %1198 = vmatprep.subr.mxu0 %v260
  %1199 = vmatpush1.msra.mxu0 %v259
  %1200 = vmatprep.subr.mxu0 %v268
  %1201 = vmatpush1.msra.mxu0 %v267
  %1202 = vmatprep.subr.mxu0 %v276
  %1203 = vmatpush1.msra.mxu0 %v275
  %1204 = vmatprep.subr.mxu0 %v284
  %1205 = vmatpush1.msra.mxu0 %v283
  %1206 = vmatprep.subr.mxu0 %v292
  %1207 = vmatpush1.msra.mxu0 %v291
  %1208 = vmatprep.subr.mxu0 %v300
  %1209 = vmatpush1.msra.mxu0 %v299
  %1210 = vmatprep.subr.mxu0 %v308
  %1211 = vmatpush1.msra.mxu0 %v307
  %1212 = vmatprep.subr.mxu0 %v316
  %1213 = vmatpush1.msra.mxu0 %v315
  %1214 = vmatprep.subr.mxu0 %v324
  %1215 = vmatpush1.msra.mxu0 %v323
  %1216 = vmatprep.subr.mxu0 %v332
  %1217 = vmatpush1.msra.mxu0 %v331
  %1218 = vmatprep.subr.mxu0 %v340
  %1219 = vmatpush1.msra.mxu0 %v339
  %1220 = vmatprep.subr.mxu0 %v348
  %1221 = vmatpush1.msra.mxu0 %v347
  %1222 = vmatprep.subr.mxu0 %v356
  %1223 = vmatpush1.msra.mxu0 %v355
  %1224 = vmatprep.subr.mxu0 %v364
  %1225 = vmatpush1.msra.mxu0 %v363
  %1226 = vmatprep.subr.mxu0 %v372
  %1227 = vmatpush1.msra.mxu0 %v371
  %1228 = vmatprep.subr.mxu0 %v380
  %1229 = vmatpush1.msra.mxu0 %v379
  %1230 = vmatprep.subr.mxu0 %v388
  %1231 = vmatpush1.msra.mxu0 %v387
  %1232 = vmatprep.subr.mxu0 %v396
  %1233 = vmatpush1.msra.mxu0 %v395
  %1234 = vmatprep.subr.mxu0 %v404
  %1235 = vmatpush1.msra.mxu0 %v403
  %1236 = vmatprep.mubr.f32.mxu0 %v1098
  %1237 = vmatmul.mubr.f32.gmra.mrb[0].mxu0 %v1097
  %v1238 = vpop.f32.mrb[0].mxu0
  %v1239 = vadd.f32 0.0, %v1238
  %v1240 = vpop.f32.mrb[0].mxu0
  %v1241 = vadd.f32 0.0, %v1240
  %1242 = vdwg.mxu0
  %1243 = vmatprep.subr.mxu0 %v158
  %1244 = vmatpush1.msra.mxu0 %v157
  %1245 = vmatprep.subr.mxu0 %v166
  %1246 = vmatpush1.msra.mxu0 %v165
  %1247 = vmatprep.subr.mxu0 %v174
  %1248 = vmatpush1.msra.mxu0 %v173
  %1249 = vmatprep.subr.mxu0 %v182
  %1250 = vmatpush1.msra.mxu0 %v181
  %1251 = vmatprep.subr.mxu0 %v190
  %1252 = vmatpush1.msra.mxu0 %v189
  %1253 = vmatprep.subr.mxu0 %v198
  %1254 = vmatpush1.msra.mxu0 %v197
  %1255 = vmatprep.subr.mxu0 %v206
  %1256 = vmatpush1.msra.mxu0 %v205
  %1257 = vmatprep.subr.mxu0 %v214
  %1258 = vmatpush1.msra.mxu0 %v213
  %1259 = vmatprep.subr.mxu0 %v222
  %1260 = vmatpush1.msra.mxu0 %v221
  %1261 = vmatprep.subr.mxu0 %v230
  %1262 = vmatpush1.msra.mxu0 %v229
  %1263 = vmatprep.subr.mxu0 %v238
  %1264 = vmatpush1.msra.mxu0 %v237
  %1265 = vmatprep.subr.mxu0 %v246
  %1266 = vmatpush1.msra.mxu0 %v245
  %1267 = vmatprep.subr.mxu0 %v254
  %1268 = vmatpush1.msra.mxu0 %v253
  %1269 = vmatprep.subr.mxu0 %v262
  %1270 = vmatpush1.msra.mxu0 %v261
  %1271 = vmatprep.subr.mxu0 %v270
  %1272 = vmatpush1.msra.mxu0 %v269
  %1273 = vmatprep.subr.mxu0 %v278
  %1274 = vmatpush1.msra.mxu0 %v277
  %1275 = vmatprep.subr.mxu0 %v286
  %1276 = vmatpush1.msra.mxu0 %v285
  %1277 = vmatprep.subr.mxu0 %v294
  %1278 = vmatpush1.msra.mxu0 %v293
  %1279 = vmatprep.subr.mxu0 %v302
  %1280 = vmatpush1.msra.mxu0 %v301
  %1281 = vmatprep.subr.mxu0 %v310
  %1282 = vmatpush1.msra.mxu0 %v309
  %1283 = vmatprep.subr.mxu0 %v318
  %1284 = vmatpush1.msra.mxu0 %v317
  %1285 = vmatprep.subr.mxu0 %v326
  %1286 = vmatpush1.msra.mxu0 %v325
  %1287 = vmatprep.subr.mxu0 %v334
  %1288 = vmatpush1.msra.mxu0 %v333
  %1289 = vmatprep.subr.mxu0 %v342
  %1290 = vmatpush1.msra.mxu0 %v341
  %1291 = vmatprep.subr.mxu0 %v350
  %1292 = vmatpush1.msra.mxu0 %v349
  %1293 = vmatprep.subr.mxu0 %v358
  %1294 = vmatpush1.msra.mxu0 %v357
  %1295 = vmatprep.subr.mxu0 %v366
  %1296 = vmatpush1.msra.mxu0 %v365
  %1297 = vmatprep.subr.mxu0 %v374
  %1298 = vmatpush1.msra.mxu0 %v373
  %1299 = vmatprep.subr.mxu0 %v382
  %1300 = vmatpush1.msra.mxu0 %v381
  %1301 = vmatprep.subr.mxu0 %v390
  %1302 = vmatpush1.msra.mxu0 %v389
  %1303 = vmatprep.subr.mxu0 %v398
  %1304 = vmatpush1.msra.mxu0 %v397
  %1305 = vmatprep.subr.mxu0 %v406
  %1306 = vmatpush1.msra.mxu0 %v405
  %1307 = vmatprep.mubr.f32.mxu0 %v1098
  %1308 = vmatmul.mubr.f32.gmra.mrb[0].mxu0 %v1097
  %v1309 = vpop.f32.mrb[0].mxu0
  %v1310 = vadd.f32 0.0, %v1309
  %v1311 = vpop.f32.mrb[0].mxu0
  %v1312 = vadd.f32 0.0, %v1311
  %1313 = vdwg.mxu0
  %1314 = vmatprep.subr.mxu0 %v160
  %1315 = vmatpush1.msra.mxu0 %v159
  %1316 = vmatprep.subr.mxu0 %v168
  %1317 = vmatpush1.msra.mxu0 %v167
  %1318 = vmatprep.subr.mxu0 %v176
  %1319 = vmatpush1.msra.mxu0 %v175
  %1320 = vmatprep.subr.mxu0 %v184
  %1321 = vmatpush1.msra.mxu0 %v183
  %1322 = vmatprep.subr.mxu0 %v192
  %1323 = vmatpush1.msra.mxu0 %v191
  %1324 = vmatprep.subr.mxu0 %v200
  %1325 = vmatpush1.msra.mxu0 %v199
  %1326 = vmatprep.subr.mxu0 %v208
  %1327 = vmatpush1.msra.mxu0 %v207
  %1328 = vmatprep.subr.mxu0 %v216
  %1329 = vmatpush1.msra.mxu0 %v215
  %1330 = vmatprep.subr.mxu0 %v224
  %1331 = vmatpush1.msra.mxu0 %v223
  %1332 = vmatprep.subr.mxu0 %v232
  %1333 = vmatpush1.msra.mxu0 %v231
  %1334 = vmatprep.subr.mxu0 %v240
  %1335 = vmatpush1.msra.mxu0 %v239
  %1336 = vmatprep.subr.mxu0 %v248
  %1337 = vmatpush1.msra.mxu0 %v247
  %1338 = vmatprep.subr.mxu0 %v256
  %1339 = vmatpush1.msra.mxu0 %v255
  %1340 = vmatprep.subr.mxu0 %v264
  %1341 = vmatpush1.msra.mxu0 %v263
  %1342 = vmatprep.subr.mxu0 %v272
  %1343 = vmatpush1.msra.mxu0 %v271
  %1344 = vmatprep.subr.mxu0 %v280
  %1345 = vmatpush1.msra.mxu0 %v279
  %1346 = vmatprep.subr.mxu0 %v288
  %1347 = vmatpush1.msra.mxu0 %v287
  %1348 = vmatprep.subr.mxu0 %v296
  %1349 = vmatpush1.msra.mxu0 %v295
  %1350 = vmatprep.subr.mxu0 %v304
  %1351 = vmatpush1.msra.mxu0 %v303
  %1352 = vmatprep.subr.mxu0 %v312
  %1353 = vmatpush1.msra.mxu0 %v311
  %1354 = vmatprep.subr.mxu0 %v320
  %1355 = vmatpush1.msra.mxu0 %v319
  %1356 = vmatprep.subr.mxu0 %v328
  %1357 = vmatpush1.msra.mxu0 %v327
  %1358 = vmatprep.subr.mxu0 %v336
  %1359 = vmatpush1.msra.mxu0 %v335
  %1360 = vmatprep.subr.mxu0 %v344
  %1361 = vmatpush1.msra.mxu0 %v343
  %1362 = vmatprep.subr.mxu0 %v352
  %1363 = vmatpush1.msra.mxu0 %v351
  %1364 = vmatprep.subr.mxu0 %v360
  %1365 = vmatpush1.msra.mxu0 %v359
  %1366 = vmatprep.subr.mxu0 %v368
  %1367 = vmatpush1.msra.mxu0 %v367
  %1368 = vmatprep.subr.mxu0 %v376
  %1369 = vmatpush1.msra.mxu0 %v375
  %1370 = vmatprep.subr.mxu0 %v384
  %1371 = vmatpush1.msra.mxu0 %v383
  %1372 = vmatprep.subr.mxu0 %v392
  %1373 = vmatpush1.msra.mxu0 %v391
  %1374 = vmatprep.subr.mxu0 %v400
  %1375 = vmatpush1.msra.mxu0 %v399
  %1376 = vmatprep.subr.mxu0 %v408
  %1377 = vmatpush1.msra.mxu0 %v407
  %1378 = vmatprep.mubr.f32.mxu0 %v1098
  %1379 = vmatmul.mubr.f32.gmra.mrb[0].mxu0 %v1097
  %v1380 = vpop.f32.mrb[0].mxu0
  %v1381 = vadd.f32 0.0, %v1380
  %v1382 = vpop.f32.mrb[0].mxu0
  %v1383 = vadd.f32 0.0, %v1382
  %1384 = vdwg.mxu0
  %v1393 = vrot.slane %v1168, 6
  %v1394 = vrot.slane %v1170, 6
  %v1395 = vrot.slane %v1239, 6
  %v1396 = vrot.slane %v1241, 6
  %v1397 = vrot.slane %v1310, 6
  %v1398 = vrot.slane %v1312, 6
  %v1399 = vrot.slane %v1381, 6
  %v1400 = vrot.slane %v1383, 6
  %v1409 = vadd.f32 %v518, %v1393
  %v1410 = vadd.f32 %v520, %v1394
  %v1411 = vadd.f32 %v595, %v1395
  %v1412 = vadd.f32 %v597, %v1396
  %v1413 = vadd.f32 %v672, %v1397
  %v1414 = vadd.f32 %v674, %v1398
  %v1415 = vadd.f32 %v749, %v1399
  %v1416 = vadd.f32 %v751, %v1400
  %v1417 = vsub.f32 0.0, %v1409
  %v1418 = vsub.f32 0.0, %v1410
  %v1419 = vmul.f32 %v1417, 1.442695
  %v1420 = vpow.pop %v1419
  %v1421 = vmul.f32 %v1418, 1.442695
  %v1422 = vpow.pop %v1421
  %v1423 = vadd.f32 %v1420, 1.0
  %v1424 = vadd.f32 %v1422, 1.0
  %v1425 = vrcp.pop %v1423
  %v1426 = vmul.f32 1.0, %v1425
  %v1427 = vrcp.pop %v1424
  %v1428 = vmul.f32 1.0, %v1427
  %v1429 = vsub.f32 0.0, %v1411
  %v1430 = vsub.f32 0.0, %v1412
  %v1431 = vmul.f32 %v1429, 1.442695
  %v1432 = vpow.pop %v1431
  %v1433 = vmul.f32 %v1430, 1.442695
  %v1434 = vpow.pop %v1433
  %v1435 = vadd.f32 %v1432, 1.0
  %v1436 = vadd.f32 %v1434, 1.0
  %v1437 = vrcp.pop %v1435
  %v1438 = vmul.f32 1.0, %v1437
  %v1439 = vrcp.pop %v1436
  %v1440 = vmul.f32 1.0, %v1439
  %v1441 = vtanh.pop %v1413
  %v1442 = vtanh.pop %v1414
  %v1443 = vsub.f32 0.0, %v1415
  %v1444 = vsub.f32 0.0, %v1416
  %v1445 = vmul.f32 %v1443, 1.442695
  %v1446 = vpow.pop %v1445
  %v1447 = vmul.f32 %v1444, 1.442695
  %v1448 = vpow.pop %v1447
  %v1449 = vadd.f32 %v1446, 1.0
  %v1450 = vadd.f32 %v1448, 1.0
  %v1451 = vrcp.pop %v1449
  %v1452 = vmul.f32 1.0, %v1451
  %v1453 = vrcp.pop %v1450
  %v1454 = vmul.f32 1.0, %v1453
  %v1457 = vrot.slane %v1093, 6
  %v1458 = vrot.slane %v1094, 6
  %v1461 = vmul.f32 %v1438, %v1457
  %v1462 = vmul.f32 %v1440, %v1458
  %v1463 = vmul.f32 %v1426, %v1441
  %v1464 = vmul.f32 %v1428, %v1442
  %v1465 = vadd.f32 %v1461, %v1463
  %v1466 = vadd.f32 %v1462, %v1464
  %v1467 = vtanh.pop %v1465
  %v1468 = vtanh.pop %v1466
  %v1469 = vmul.f32 %v1452, %v1467
  %v1470 = vmul.f32 %v1454, %v1468
  %1471 = vst [vmem:[#allocation2] sm:$0xc] %v1469
  %1472 = vst [vmem:[#allocation2 + $0x8] sm:$0xc] %v1470
  %v1475 = vrot.slane %v1469, 2
  %v1476 = vrot.slane %v1470, 2
  %1479 = vmatprep.subr.mxu0 %v154
  %1480 = vmatpush1.msra.mxu0 %v153
  %1481 = vmatprep.subr.mxu0 %v162
  %1482 = vmatpush1.msra.mxu0 %v161
  %1483 = vmatprep.subr.mxu0 %v170
  %1484 = vmatpush1.msra.mxu0 %v169
  %1485 = vmatprep.subr.mxu0 %v178
  %1486 = vmatpush1.msra.mxu0 %v177
  %1487 = vmatprep.subr.mxu0 %v186
  %1488 = vmatpush1.msra.mxu0 %v185
  %1489 = vmatprep.subr.mxu0 %v194
  %1490 = vmatpush1.msra.mxu0 %v193
  %1491 = vmatprep.subr.mxu0 %v202
  %1492 = vmatpush1.msra.mxu0 %v201
  %1493 = vmatprep.subr.mxu0 %v210
  %1494 = vmatpush1.msra.mxu0 %v209
  %1495 = vmatprep.subr.mxu0 %v218
  %1496 = vmatpush1.msra.mxu0 %v217
  %1497 = vmatprep.subr.mxu0 %v226
  %1498 = vmatpush1.msra.mxu0 %v225
  %1499 = vmatprep.subr.mxu0 %v234
  %1500 = vmatpush1.msra.mxu0 %v233
  %1501 = vmatprep.subr.mxu0 %v242
  %1502 = vmatpush1.msra.mxu0 %v241
  %1503 = vmatprep.subr.mxu0 %v250
  %1504 = vmatpush1.msra.mxu0 %v249
  %1505 = vmatprep.subr.mxu0 %v258
  %1506 = vmatpush1.msra.mxu0 %v257
  %1507 = vmatprep.subr.mxu0 %v266
  %1508 = vmatpush1.msra.mxu0 %v265
  %1509 = vmatprep.subr.mxu0 %v274
  %1510 = vmatpush1.msra.mxu0 %v273
  %1511 = vmatprep.subr.mxu0 %v282
  %1512 = vmatpush1.msra.mxu0 %v281
  %1513 = vmatprep.subr.mxu0 %v290
  %1514 = vmatpush1.msra.mxu0 %v289
  %1515 = vmatprep.subr.mxu0 %v298
  %1516 = vmatpush1.msra.mxu0 %v297
  %1517 = vmatprep.subr.mxu0 %v306
  %1518 = vmatpush1.msra.mxu0 %v305
  %1519 = vmatprep.subr.mxu0 %v314
  %1520 = vmatpush1.msra.mxu0 %v313
  %1521 = vmatprep.subr.mxu0 %v322
  %1522 = vmatpush1.msra.mxu0 %v321
  %1523 = vmatprep.subr.mxu0 %v330
  %1524 = vmatpush1.msra.mxu0 %v329
  %1525 = vmatprep.subr.mxu0 %v338
  %1526 = vmatpush1.msra.mxu0 %v337
  %1527 = vmatprep.subr.mxu0 %v346
  %1528 = vmatpush1.msra.mxu0 %v345
  %1529 = vmatprep.subr.mxu0 %v354
  %1530 = vmatpush1.msra.mxu0 %v353
  %1531 = vmatprep.subr.mxu0 %v362
  %1532 = vmatpush1.msra.mxu0 %v361
  %1533 = vmatprep.subr.mxu0 %v370
  %1534 = vmatpush1.msra.mxu0 %v369
  %1535 = vmatprep.subr.mxu0 %v378
  %1536 = vmatpush1.msra.mxu0 %v377
  %1537 = vmatprep.subr.mxu0 %v386
  %1538 = vmatpush1.msra.mxu0 %v385
  %1539 = vmatprep.subr.mxu0 %v394
  %1540 = vmatpush1.msra.mxu0 %v393
  %1541 = vmatprep.subr.mxu0 %v402
  %1542 = vmatpush1.msra.mxu0 %v401
  %1543 = vmatprep.mubr.f32.mxu0 %v1476
  %1544 = vmatmul.mubr.f32.gmra.mrb[0].mxu0 %v1475
  %v1545 = vpop.f32.mrb[0].mxu0
  %v1546 = vadd.f32 0.0, %v1545
  %v1547 = vpop.f32.mrb[0].mxu0
  %v1548 = vadd.f32 0.0, %v1547
  %1549 = vdwg.mxu0
  %1550 = vmatprep.subr.mxu0 %v156
  %1551 = vmatpush1.msra.mxu0 %v155
  %1552 = vmatprep.subr.mxu0 %v164
  %1553 = vmatpush1.msra.mxu0 %v163
  %1554 = vmatprep.subr.mxu0 %v172
  %1555 = vmatpush1.msra.mxu0 %v171
  %1556 = vmatprep.subr.mxu0 %v180
  %1557 = vmatpush1.msra.mxu0 %v179
  %1558 = vmatprep.subr.mxu0 %v188
  %1559 = vmatpush1.msra.mxu0 %v187
  %1560 = vmatprep.subr.mxu0 %v196
  %1561 = vmatpush1.msra.mxu0 %v195
  %1562 = vmatprep.subr.mxu0 %v204
  %1563 = vmatpush1.msra.mxu0 %v203
  %1564 = vmatprep.subr.mxu0 %v212
  %1565 = vmatpush1.msra.mxu0 %v211
  %1566 = vmatprep.subr.mxu0 %v220
  %1567 = vmatpush1.msra.mxu0 %v219
  %1568 = vmatprep.subr.mxu0 %v228
  %1569 = vmatpush1.msra.mxu0 %v227
  %1570 = vmatprep.subr.mxu0 %v236
  %1571 = vmatpush1.msra.mxu0 %v235
  %1572 = vmatprep.subr.mxu0 %v244
  %1573 = vmatpush1.msra.mxu0 %v243
  %1574 = vmatprep.subr.mxu0 %v252
  %1575 = vmatpush1.msra.mxu0 %v251
  %1576 = vmatprep.subr.mxu0 %v260
  %1577 = vmatpush1.msra.mxu0 %v259
  %1578 = vmatprep.subr.mxu0 %v268
  %1579 = vmatpush1.msra.mxu0 %v267
  %1580 = vmatprep.subr.mxu0 %v276
  %1581 = vmatpush1.msra.mxu0 %v275
  %1582 = vmatprep.subr.mxu0 %v284
  %1583 = vmatpush1.msra.mxu0 %v283
  %1584 = vmatprep.subr.mxu0 %v292
  %1585 = vmatpush1.msra.mxu0 %v291
  %1586 = vmatprep.subr.mxu0 %v300
  %1587 = vmatpush1.msra.mxu0 %v299
  %1588 = vmatprep.subr.mxu0 %v308
  %1589 = vmatpush1.msra.mxu0 %v307
  %1590 = vmatprep.subr.mxu0 %v316
  %1591 = vmatpush1.msra.mxu0 %v315
  %1592 = vmatprep.subr.mxu0 %v324
  %1593 = vmatpush1.msra.mxu0 %v323
  %1594 = vmatprep.subr.mxu0 %v332
  %1595 = vmatpush1.msra.mxu0 %v331
  %1596 = vmatprep.subr.mxu0 %v340
  %1597 = vmatpush1.msra.mxu0 %v339
  %1598 = vmatprep.subr.mxu0 %v348
  %1599 = vmatpush1.msra.mxu0 %v347
  %1600 = vmatprep.subr.mxu0 %v356
  %1601 = vmatpush1.msra.mxu0 %v355
  %1602 = vmatprep.subr.mxu0 %v364
  %1603 = vmatpush1.msra.mxu0 %v363
  %1604 = vmatprep.subr.mxu0 %v372
  %1605 = vmatpush1.msra.mxu0 %v371
  %1606 = vmatprep.subr.mxu0 %v380
  %1607 = vmatpush1.msra.mxu0 %v379
  %1608 = vmatprep.subr.mxu0 %v388
  %1609 = vmatpush1.msra.mxu0 %v387
  %1610 = vmatprep.subr.mxu0 %v396
  %1611 = vmatpush1.msra.mxu0 %v395
  %1612 = vmatprep.subr.mxu0 %v404
  %1613 = vmatpush1.msra.mxu0 %v403
  %1614 = vmatprep.mubr.f32.mxu0 %v1476
  %1615 = vmatmul.mubr.f32.gmra.mrb[0].mxu0 %v1475
  %v1616 = vpop.f32.mrb[0].mxu0
  %v1617 = vadd.f32 0.0, %v1616
  %v1618 = vpop.f32.mrb[0].mxu0
  %v1619 = vadd.f32 0.0, %v1618
  %1620 = vdwg.mxu0
  %1621 = vmatprep.subr.mxu0 %v158
  %1622 = vmatpush1.msra.mxu0 %v157
  %1623 = vmatprep.subr.mxu0 %v166
  %1624 = vmatpush1.msra.mxu0 %v165
  %1625 = vmatprep.subr.mxu0 %v174
  %1626 = vmatpush1.msra.mxu0 %v173
  %1627 = vmatprep.subr.mxu0 %v182
  %1628 = vmatpush1.msra.mxu0 %v181
  %1629 = vmatprep.subr.mxu0 %v190
  %1630 = vmatpush1.msra.mxu0 %v189
  %1631 = vmatprep.subr.mxu0 %v198
  %1632 = vmatpush1.msra.mxu0 %v197
  %1633 = vmatprep.subr.mxu0 %v206
  %1634 = vmatpush1.msra.mxu0 %v205
  %1635 = vmatprep.subr.mxu0 %v214
  %1636 = vmatpush1.msra.mxu0 %v213
  %1637 = vmatprep.subr.mxu0 %v222
  %1638 = vmatpush1.msra.mxu0 %v221
  %1639 = vmatprep.subr.mxu0 %v230
  %1640 = vmatpush1.msra.mxu0 %v229
  %1641 = vmatprep.subr.mxu0 %v238
  %1642 = vmatpush1.msra.mxu0 %v237
  %1643 = vmatprep.subr.mxu0 %v246
  %1644 = vmatpush1.msra.mxu0 %v245
  %1645 = vmatprep.subr.mxu0 %v254
  %1646 = vmatpush1.msra.mxu0 %v253
  %1647 = vmatprep.subr.mxu0 %v262
  %1648 = vmatpush1.msra.mxu0 %v261
  %1649 = vmatprep.subr.mxu0 %v270
  %1650 = vmatpush1.msra.mxu0 %v269
  %1651 = vmatprep.subr.mxu0 %v278
  %1652 = vmatpush1.msra.mxu0 %v277
  %1653 = vmatprep.subr.mxu0 %v286
  %1654 = vmatpush1.msra.mxu0 %v285
  %1655 = vmatprep.subr.mxu0 %v294
  %1656 = vmatpush1.msra.mxu0 %v293
  %1657 = vmatprep.subr.mxu0 %v302
  %1658 = vmatpush1.msra.mxu0 %v301
  %1659 = vmatprep.subr.mxu0 %v310
  %1660 = vmatpush1.msra.mxu0 %v309
  %1661 = vmatprep.subr.mxu0 %v318
  %1662 = vmatpush1.msra.mxu0 %v317
  %1663 = vmatprep.subr.mxu0 %v326
  %1664 = vmatpush1.msra.mxu0 %v325
  %1665 = vmatprep.subr.mxu0 %v334
  %1666 = vmatpush1.msra.mxu0 %v333
  %1667 = vmatprep.subr.mxu0 %v342
  %1668 = vmatpush1.msra.mxu0 %v341
  %1669 = vmatprep.subr.mxu0 %v350
  %1670 = vmatpush1.msra.mxu0 %v349
  %1671 = vmatprep.subr.mxu0 %v358
  %1672 = vmatpush1.msra.mxu0 %v357
  %1673 = vmatprep.subr.mxu0 %v366
  %1674 = vmatpush1.msra.mxu0 %v365
  %1675 = vmatprep.subr.mxu0 %v374
  %1676 = vmatpush1.msra.mxu0 %v373
  %1677 = vmatprep.subr.mxu0 %v382
  %1678 = vmatpush1.msra.mxu0 %v381
  %1679 = vmatprep.subr.mxu0 %v390
  %1680 = vmatpush1.msra.mxu0 %v389
  %1681 = vmatprep.subr.mxu0 %v398
  %1682 = vmatpush1.msra.mxu0 %v397
  %1683 = vmatprep.subr.mxu0 %v406
  %1684 = vmatpush1.msra.mxu0 %v405
  %1685 = vmatprep.mubr.f32.mxu0 %v1476
  %1686 = vmatmul.mubr.f32.gmra.mrb[0].mxu0 %v1475
  %v1687 = vpop.f32.mrb[0].mxu0
  %v1688 = vadd.f32 0.0, %v1687
  %v1689 = vpop.f32.mrb[0].mxu0
  %v1690 = vadd.f32 0.0, %v1689
  %1691 = vdwg.mxu0
  %1692 = vmatprep.subr.mxu0 %v160
  %1693 = vmatpush1.msra.mxu0 %v159
  %1694 = vmatprep.subr.mxu0 %v168
  %1695 = vmatpush1.msra.mxu0 %v167
  %1696 = vmatprep.subr.mxu0 %v176
  %1697 = vmatpush1.msra.mxu0 %v175
  %1698 = vmatprep.subr.mxu0 %v184
  %1699 = vmatpush1.msra.mxu0 %v183
  %1700 = vmatprep.subr.mxu0 %v192
  %1701 = vmatpush1.msra.mxu0 %v191
  %1702 = vmatprep.subr.mxu0 %v200
  %1703 = vmatpush1.msra.mxu0 %v199
  %1704 = vmatprep.subr.mxu0 %v208
  %1705 = vmatpush1.msra.mxu0 %v207
  %1706 = vmatprep.subr.mxu0 %v216
  %1707 = vmatpush1.msra.mxu0 %v215
  %1708 = vmatprep.subr.mxu0 %v224
  %1709 = vmatpush1.msra.mxu0 %v223
  %1710 = vmatprep.subr.mxu0 %v232
  %1711 = vmatpush1.msra.mxu0 %v231
  %1712 = vmatprep.subr.mxu0 %v240
  %1713 = vmatpush1.msra.mxu0 %v239
  %1714 = vmatprep.subr.mxu0 %v248
  %1715 = vmatpush1.msra.mxu0 %v247
  %1716 = vmatprep.subr.mxu0 %v256
  %1717 = vmatpush1.msra.mxu0 %v255
  %1718 = vmatprep.subr.mxu0 %v264
  %1719 = vmatpush1.msra.mxu0 %v263
  %1720 = vmatprep.subr.mxu0 %v272
  %1721 = vmatpush1.msra.mxu0 %v271
  %1722 = vmatprep.subr.mxu0 %v280
  %1723 = vmatpush1.msra.mxu0 %v279
  %1724 = vmatprep.subr.mxu0 %v288
  %1725 = vmatpush1.msra.mxu0 %v287
  %1726 = vmatprep.subr.mxu0 %v296
  %1727 = vmatpush1.msra.mxu0 %v295
  %1728 = vmatprep.subr.mxu0 %v304
  %1729 = vmatpush1.msra.mxu0 %v303
  %1730 = vmatprep.subr.mxu0 %v312
  %1731 = vmatpush1.msra.mxu0 %v311
  %1732 = vmatprep.subr.mxu0 %v320
  %1733 = vmatpush1.msra.mxu0 %v319
  %1734 = vmatprep.subr.mxu0 %v328
  %1735 = vmatpush1.msra.mxu0 %v327
  %1736 = vmatprep.subr.mxu0 %v336
  %1737 = vmatpush1.msra.mxu0 %v335
  %1738 = vmatprep.subr.mxu0 %v344
  %1739 = vmatpush1.msra.mxu0 %v343
  %1740 = vmatprep.subr.mxu0 %v352
  %1741 = vmatpush1.msra.mxu0 %v351
  %1742 = vmatprep.subr.mxu0 %v360
  %1743 = vmatpush1.msra.mxu0 %v359
  %1744 = vmatprep.subr.mxu0 %v368
  %1745 = vmatpush1.msra.mxu0 %v367
  %1746 = vmatprep.subr.mxu0 %v376
  %1747 = vmatpush1.msra.mxu0 %v375
  %1748 = vmatprep.subr.mxu0 %v384
  %1749 = vmatpush1.msra.mxu0 %v383
  %1750 = vmatprep.subr.mxu0 %v392
  %1751 = vmatpush1.msra.mxu0 %v391
  %1752 = vmatprep.subr.mxu0 %v400
  %1753 = vmatpush1.msra.mxu0 %v399
  %1754 = vmatprep.subr.mxu0 %v408
  %1755 = vmatpush1.msra.mxu0 %v407
  %1756 = vmatprep.mubr.f32.mxu0 %v1476
  %1757 = vmatmul.mubr.f32.gmra.mrb[0].mxu0 %v1475
  %v1758 = vpop.f32.mrb[0].mxu0
  %v1759 = vadd.f32 0.0, %v1758
  %v1760 = vpop.f32.mrb[0].mxu0
  %v1761 = vadd.f32 0.0, %v1760
  %1762 = vdwg.mxu0
  %v1771 = vrot.slane %v1546, 4
  %v1772 = vrot.slane %v1548, 4
  %v1773 = vrot.slane %v1617, 4
  %v1774 = vrot.slane %v1619, 4
  %v1775 = vrot.slane %v1688, 4
  %v1776 = vrot.slane %v1690, 4
  %v1777 = vrot.slane %v1759, 4
  %v1778 = vrot.slane %v1761, 4
  %v1787 = vadd.f32 %v518, %v1771
  %v1788 = vadd.f32 %v520, %v1772
  %v1789 = vadd.f32 %v595, %v1773
  %v1790 = vadd.f32 %v597, %v1774
  %v1791 = vadd.f32 %v672, %v1775
  %v1792 = vadd.f32 %v674, %v1776
  %v1793 = vadd.f32 %v749, %v1777
  %v1794 = vadd.f32 %v751, %v1778
  %v1795 = vsub.f32 0.0, %v1787
  %v1796 = vsub.f32 0.0, %v1788
  %v1797 = vmul.f32 %v1795, 1.442695
  %v1798 = vpow.pop %v1797
  %v1799 = vmul.f32 %v1796, 1.442695
  %v1800 = vpow.pop %v1799
  %v1801 = vadd.f32 %v1798, 1.0
  %v1802 = vadd.f32 %v1800, 1.0
  %v1803 = vrcp.pop %v1801
  %v1804 = vmul.f32 1.0, %v1803
  %v1805 = vrcp.pop %v1802
  %v1806 = vmul.f32 1.0, %v1805
  %v1807 = vsub.f32 0.0, %v1789
  %v1808 = vsub.f32 0.0, %v1790
  %v1809 = vmul.f32 %v1807, 1.442695
  %v1810 = vpow.pop %v1809
  %v1811 = vmul.f32 %v1808, 1.442695
  %v1812 = vpow.pop %v1811
  %v1813 = vadd.f32 %v1810, 1.0
  %v1814 = vadd.f32 %v1812, 1.0
  %v1815 = vrcp.pop %v1813
  %v1816 = vmul.f32 1.0, %v1815
  %v1817 = vrcp.pop %v1814
  %v1818 = vmul.f32 1.0, %v1817
  %v1819 = vtanh.pop %v1791
  %v1820 = vtanh.pop %v1792
  %v1821 = vsub.f32 0.0, %v1793
  %v1822 = vsub.f32 0.0, %v1794
  %v1823 = vmul.f32 %v1821, 1.442695
  %v1824 = vpow.pop %v1823
  %v1825 = vmul.f32 %v1822, 1.442695
  %v1826 = vpow.pop %v1825
  %v1827 = vadd.f32 %v1824, 1.0
  %v1828 = vadd.f32 %v1826, 1.0
  %v1829 = vrcp.pop %v1827
  %v1830 = vmul.f32 1.0, %v1829
  %v1831 = vrcp.pop %v1828
  %v1832 = vmul.f32 1.0, %v1831
  %v1835 = vrot.slane %v1465, 6
  %v1836 = vrot.slane %v1466, 6
  %v1839 = vmul.f32 %v1816, %v1835
  %v1840 = vmul.f32 %v1818, %v1836
  %v1841 = vmul.f32 %v1804, %v1819
  %v1842 = vmul.f32 %v1806, %v1820
  %v1843 = vadd.f32 %v1839, %v1841
  %v1844 = vadd.f32 %v1840, %v1842
  %v1845 = vtanh.pop %v1843
  %v1846 = vtanh.pop %v1844
  %v1847 = vmul.f32 %v1830, %v1845
  %v1848 = vmul.f32 %v1832, %v1846
  %1849 = vst [vmem:[#allocation2] sm:$0x30] %v1847
  %1850 = vst [vmem:[#allocation2 + $0x8] sm:$0x30] %v1848
  %v1853 = vrot.slane %v1847, 4
  %v1854 = vrot.slane %v1848, 4
  %1857 = vmatprep.subr.mxu0 %v154
  %1858 = vmatpush1.msra.mxu0 %v153
  %1859 = vmatprep.subr.mxu0 %v162
  %1860 = vmatpush1.msra.mxu0 %v161
  %1861 = vmatprep.subr.mxu0 %v170
  %1862 = vmatpush1.msra.mxu0 %v169
  %1863 = vmatprep.subr.mxu0 %v178
  %1864 = vmatpush1.msra.mxu0 %v177
  %1865 = vmatprep.subr.mxu0 %v186
  %1866 = vmatpush1.msra.mxu0 %v185
  %1867 = vmatprep.subr.mxu0 %v194
  %1868 = vmatpush1.msra.mxu0 %v193
  %1869 = vmatprep.subr.mxu0 %v202
  %1870 = vmatpush1.msra.mxu0 %v201
  %1871 = vmatprep.subr.mxu0 %v210
  %1872 = vmatpush1.msra.mxu0 %v209
  %1873 = vmatprep.subr.mxu0 %v218
  %1874 = vmatpush1.msra.mxu0 %v217
  %1875 = vmatprep.subr.mxu0 %v226
  %1876 = vmatpush1.msra.mxu0 %v225
  %1877 = vmatprep.subr.mxu0 %v234
  %1878 = vmatpush1.msra.mxu0 %v233
  %1879 = vmatprep.subr.mxu0 %v242
  %1880 = vmatpush1.msra.mxu0 %v241
  %1881 = vmatprep.subr.mxu0 %v250
  %1882 = vmatpush1.msra.mxu0 %v249
  %1883 = vmatprep.subr.mxu0 %v258
  %1884 = vmatpush1.msra.mxu0 %v257
  %1885 = vmatprep.subr.mxu0 %v266
  %1886 = vmatpush1.msra.mxu0 %v265
  %1887 = vmatprep.subr.mxu0 %v274
  %1888 = vmatpush1.msra.mxu0 %v273
  %1889 = vmatprep.subr.mxu0 %v282
  %1890 = vmatpush1.msra.mxu0 %v281
  %1891 = vmatprep.subr.mxu0 %v290
  %1892 = vmatpush1.msra.mxu0 %v289
  %1893 = vmatprep.subr.mxu0 %v298
  %1894 = vmatpush1.msra.mxu0 %v297
  %1895 = vmatprep.subr.mxu0 %v306
  %1896 = vmatpush1.msra.mxu0 %v305
  %1897 = vmatprep.subr.mxu0 %v314
  %1898 = vmatpush1.msra.mxu0 %v313
  %1899 = vmatprep.subr.mxu0 %v322
  %1900 = vmatpush1.msra.mxu0 %v321
  %1901 = vmatprep.subr.mxu0 %v330
  %1902 = vmatpush1.msra.mxu0 %v329
  %1903 = vmatprep.subr.mxu0 %v338
  %1904 = vmatpush1.msra.mxu0 %v337
  %1905 = vmatprep.subr.mxu0 %v346
  %1906 = vmatpush1.msra.mxu0 %v345
  %1907 = vmatprep.subr.mxu0 %v354
  %1908 = vmatpush1.msra.mxu0 %v353
  %1909 = vmatprep.subr.mxu0 %v362
  %1910 = vmatpush1.msra.mxu0 %v361
  %1911 = vmatprep.subr.mxu0 %v370
  %1912 = vmatpush1.msra.mxu0 %v369
  %1913 = vmatprep.subr.mxu0 %v378
  %1914 = vmatpush1.msra.mxu0 %v377
  %1915 = vmatprep.subr.mxu0 %v386
  %1916 = vmatpush1.msra.mxu0 %v385
  %1917 = vmatprep.subr.mxu0 %v394
  %1918 = vmatpush1.msra.mxu0 %v393
  %1919 = vmatprep.subr.mxu0 %v402
  %1920 = vmatpush1.msra.mxu0 %v401
  %1921 = vmatprep.mubr.f32.mxu0 %v1854
  %1922 = vmatmul.mubr.f32.gmra.mrb[0].mxu0 %v1853
  %v1923 = vpop.f32.mrb[0].mxu0
  %v1924 = vadd.f32 0.0, %v1923
  %v1925 = vpop.f32.mrb[0].mxu0
  %v1926 = vadd.f32 0.0, %v1925
  %1927 = vdwg.mxu0
  %1928 = vmatprep.subr.mxu0 %v156
  %1929 = vmatpush1.msra.mxu0 %v155
  %1930 = vmatprep.subr.mxu0 %v164
  %1931 = vmatpush1.msra.mxu0 %v163
  %1932 = vmatprep.subr.mxu0 %v172
  %1933 = vmatpush1.msra.mxu0 %v171
  %1934 = vmatprep.subr.mxu0 %v180
  %1935 = vmatpush1.msra.mxu0 %v179
  %1936 = vmatprep.subr.mxu0 %v188
  %1937 = vmatpush1.msra.mxu0 %v187
  %1938 = vmatprep.subr.mxu0 %v196
  %1939 = vmatpush1.msra.mxu0 %v195
  %1940 = vmatprep.subr.mxu0 %v204
  %1941 = vmatpush1.msra.mxu0 %v203
  %1942 = vmatprep.subr.mxu0 %v212
  %1943 = vmatpush1.msra.mxu0 %v211
  %1944 = vmatprep.subr.mxu0 %v220
  %1945 = vmatpush1.msra.mxu0 %v219
  %1946 = vmatprep.subr.mxu0 %v228
  %1947 = vmatpush1.msra.mxu0 %v227
  %1948 = vmatprep.subr.mxu0 %v236
  %1949 = vmatpush1.msra.mxu0 %v235
  %1950 = vmatprep.subr.mxu0 %v244
  %1951 = vmatpush1.msra.mxu0 %v243
  %1952 = vmatprep.subr.mxu0 %v252
  %1953 = vmatpush1.msra.mxu0 %v251
  %1954 = vmatprep.subr.mxu0 %v260
  %1955 = vmatpush1.msra.mxu0 %v259
  %1956 = vmatprep.subr.mxu0 %v268
  %1957 = vmatpush1.msra.mxu0 %v267
  %1958 = vmatprep.subr.mxu0 %v276
  %1959 = vmatpush1.msra.mxu0 %v275
  %1960 = vmatprep.subr.mxu0 %v284
  %1961 = vmatpush1.msra.mxu0 %v283
  %1962 = vmatprep.subr.mxu0 %v292
  %1963 = vmatpush1.msra.mxu0 %v291
  %1964 = vmatprep.subr.mxu0 %v300
  %1965 = vmatpush1.msra.mxu0 %v299
  %1966 = vmatprep.subr.mxu0 %v308
  %1967 = vmatpush1.msra.mxu0 %v307
  %1968 = vmatprep.subr.mxu0 %v316
  %1969 = vmatpush1.msra.mxu0 %v315
  %1970 = vmatprep.subr.mxu0 %v324
  %1971 = vmatpush1.msra.mxu0 %v323
  %1972 = vmatprep.subr.mxu0 %v332
  %1973 = vmatpush1.msra.mxu0 %v331
  %1974 = vmatprep.subr.mxu0 %v340
  %1975 = vmatpush1.msra.mxu0 %v339
  %1976 = vmatprep.subr.mxu0 %v348
  %1977 = vmatpush1.msra.mxu0 %v347
  %1978 = vmatprep.subr.mxu0 %v356
  %1979 = vmatpush1.msra.mxu0 %v355
  %1980 = vmatprep.subr.mxu0 %v364
  %1981 = vmatpush1.msra.mxu0 %v363
  %1982 = vmatprep.subr.mxu0 %v372
  %1983 = vmatpush1.msra.mxu0 %v371
  %1984 = vmatprep.subr.mxu0 %v380
  %1985 = vmatpush1.msra.mxu0 %v379
  %1986 = vmatprep.subr.mxu0 %v388
  %1987 = vmatpush1.msra.mxu0 %v387
  %1988 = vmatprep.subr.mxu0 %v396
  %1989 = vmatpush1.msra.mxu0 %v395
  %1990 = vmatprep.subr.mxu0 %v404
  %1991 = vmatpush1.msra.mxu0 %v403
  %1992 = vmatprep.mubr.f32.mxu0 %v1854
  %1993 = vmatmul.mubr.f32.gmra.mrb[0].mxu0 %v1853
  %v1994 = vpop.f32.mrb[0].mxu0
  %v1995 = vadd.f32 0.0, %v1994
  %v1996 = vpop.f32.mrb[0].mxu0
  %v1997 = vadd.f32 0.0, %v1996
  %1998 = vdwg.mxu0
  %1999 = vmatprep.subr.mxu0 %v158
  %2000 = vmatpush1.msra.mxu0 %v157
  %2001 = vmatprep.subr.mxu0 %v166
  %2002 = vmatpush1.msra.mxu0 %v165
  %2003 = vmatprep.subr.mxu0 %v174
  %2004 = vmatpush1.msra.mxu0 %v173
  %2005 = vmatprep.subr.mxu0 %v182
  %2006 = vmatpush1.msra.mxu0 %v181
  %2007 = vmatprep.subr.mxu0 %v190
  %2008 = vmatpush1.msra.mxu0 %v189
  %2009 = vmatprep.subr.mxu0 %v198
  %2010 = vmatpush1.msra.mxu0 %v197
  %2011 = vmatprep.subr.mxu0 %v206
  %2012 = vmatpush1.msra.mxu0 %v205
  %2013 = vmatprep.subr.mxu0 %v214
  %2014 = vmatpush1.msra.mxu0 %v213
  %2015 = vmatprep.subr.mxu0 %v222
  %2016 = vmatpush1.msra.mxu0 %v221
  %2017 = vmatprep.subr.mxu0 %v230
  %2018 = vmatpush1.msra.mxu0 %v229
  %2019 = vmatprep.subr.mxu0 %v238
  %2020 = vmatpush1.msra.mxu0 %v237
  %2021 = vmatprep.subr.mxu0 %v246
  %2022 = vmatpush1.msra.mxu0 %v245
  %2023 = vmatprep.subr.mxu0 %v254
  %2024 = vmatpush1.msra.mxu0 %v253
  %2025 = vmatprep.subr.mxu0 %v262
  %2026 = vmatpush1.msra.mxu0 %v261
  %2027 = vmatprep.subr.mxu0 %v270
  %2028 = vmatpush1.msra.mxu0 %v269
  %2029 = vmatprep.subr.mxu0 %v278
  %2030 = vmatpush1.msra.mxu0 %v277
  %2031 = vmatprep.subr.mxu0 %v286
  %2032 = vmatpush1.msra.mxu0 %v285
  %2033 = vmatprep.subr.mxu0 %v294
  %2034 = vmatpush1.msra.mxu0 %v293
  %2035 = vmatprep.subr.mxu0 %v302
  %2036 = vmatpush1.msra.mxu0 %v301
  %2037 = vmatprep.subr.mxu0 %v310
  %2038 = vmatpush1.msra.mxu0 %v309
  %2039 = vmatprep.subr.mxu0 %v318
  %2040 = vmatpush1.msra.mxu0 %v317
  %2041 = vmatprep.subr.mxu0 %v326
  %2042 = vmatpush1.msra.mxu0 %v325
  %2043 = vmatprep.subr.mxu0 %v334
  %2044 = vmatpush1.msra.mxu0 %v333
  %2045 = vmatprep.subr.mxu0 %v342
  %2046 = vmatpush1.msra.mxu0 %v341
  %2047 = vmatprep.subr.mxu0 %v350
  %2048 = vmatpush1.msra.mxu0 %v349
  %2049 = vmatprep.subr.mxu0 %v358
  %2050 = vmatpush1.msra.mxu0 %v357
  %2051 = vmatprep.subr.mxu0 %v366
  %2052 = vmatpush1.msra.mxu0 %v365
  %2053 = vmatprep.subr.mxu0 %v374
  %2054 = vmatpush1.msra.mxu0 %v373
  %2055 = vmatprep.subr.mxu0 %v382
  %2056 = vmatpush1.msra.mxu0 %v381
  %2057 = vmatprep.subr.mxu0 %v390
  %2058 = vmatpush1.msra.mxu0 %v389
  %2059 = vmatprep.subr.mxu0 %v398
  %2060 = vmatpush1.msra.mxu0 %v397
  %2061 = vmatprep.subr.mxu0 %v406
  %2062 = vmatpush1.msra.mxu0 %v405
  %2063 = vmatprep.mubr.f32.mxu0 %v1854
  %2064 = vmatmul.mubr.f32.gmra.mrb[0].mxu0 %v1853
  %v2065 = vpop.f32.mrb[0].mxu0
  %v2066 = vadd.f32 0.0, %v2065
  %v2067 = vpop.f32.mrb[0].mxu0
  %v2068 = vadd.f32 0.0, %v2067
  %2069 = vdwg.mxu0
  %2070 = vmatprep.subr.mxu0 %v160
  %2071 = vmatpush1.msra.mxu0 %v159
  %2072 = vmatprep.subr.mxu0 %v168
  %2073 = vmatpush1.msra.mxu0 %v167
  %2074 = vmatprep.subr.mxu0 %v176
  %2075 = vmatpush1.msra.mxu0 %v175
  %2076 = vmatprep.subr.mxu0 %v184
  %2077 = vmatpush1.msra.mxu0 %v183
  %2078 = vmatprep.subr.mxu0 %v192
  %2079 = vmatpush1.msra.mxu0 %v191
  %2080 = vmatprep.subr.mxu0 %v200
  %2081 = vmatpush1.msra.mxu0 %v199
  %2082 = vmatprep.subr.mxu0 %v208
  %2083 = vmatpush1.msra.mxu0 %v207
  %2084 = vmatprep.subr.mxu0 %v216
  %2085 = vmatpush1.msra.mxu0 %v215
  %2086 = vmatprep.subr.mxu0 %v224
  %2087 = vmatpush1.msra.mxu0 %v223
  %2088 = vmatprep.subr.mxu0 %v232
  %2089 = vmatpush1.msra.mxu0 %v231
  %2090 = vmatprep.subr.mxu0 %v240
  %2091 = vmatpush1.msra.mxu0 %v239
  %2092 = vmatprep.subr.mxu0 %v248
  %2093 = vmatpush1.msra.mxu0 %v247
  %2094 = vmatprep.subr.mxu0 %v256
  %2095 = vmatpush1.msra.mxu0 %v255
  %2096 = vmatprep.subr.mxu0 %v264
  %2097 = vmatpush1.msra.mxu0 %v263
  %2098 = vmatprep.subr.mxu0 %v272
  %2099 = vmatpush1.msra.mxu0 %v271
  %2100 = vmatprep.subr.mxu0 %v280
  %2101 = vmatpush1.msra.mxu0 %v279
  %2102 = vmatprep.subr.mxu0 %v288
  %2103 = vmatpush1.msra.mxu0 %v287
  %2104 = vmatprep.subr.mxu0 %v296
  %2105 = vmatpush1.msra.mxu0 %v295
  %2106 = vmatprep.subr.mxu0 %v304
  %2107 = vmatpush1.msra.mxu0 %v303
  %2108 = vmatprep.subr.mxu0 %v312
  %2109 = vmatpush1.msra.mxu0 %v311
  %2110 = vmatprep.subr.mxu0 %v320
  %2111 = vmatpush1.msra.mxu0 %v319
  %2112 = vmatprep.subr.mxu0 %v328
  %2113 = vmatpush1.msra.mxu0 %v327
  %2114 = vmatprep.subr.mxu0 %v336
  %2115 = vmatpush1.msra.mxu0 %v335
  %2116 = vmatprep.subr.mxu0 %v344
  %2117 = vmatpush1.msra.mxu0 %v343
  %2118 = vmatprep.subr.mxu0 %v352
  %2119 = vmatpush1.msra.mxu0 %v351
  %2120 = vmatprep.subr.mxu0 %v360
  %2121 = vmatpush1.msra.mxu0 %v359
  %2122 = vmatprep.subr.mxu0 %v368
  %2123 = vmatpush1.msra.mxu0 %v367
  %2124 = vmatprep.subr.mxu0 %v376
  %2125 = vmatpush1.msra.mxu0 %v375
  %2126 = vmatprep.subr.mxu0 %v384
  %2127 = vmatpush1.msra.mxu0 %v383
  %2128 = vmatprep.subr.mxu0 %v392
  %2129 = vmatpush1.msra.mxu0 %v391
  %2130 = vmatprep.subr.mxu0 %v400
  %2131 = vmatpush1.msra.mxu0 %v399
  %2132 = vmatprep.subr.mxu0 %v408
  %2133 = vmatpush1.msra.mxu0 %v407
  %2134 = vmatprep.mubr.f32.mxu0 %v1854
  %2135 = vmatmul.mubr.f32.gmra.mrb[0].mxu0 %v1853
  %v2136 = vpop.f32.mrb[0].mxu0
  %v2137 = vadd.f32 0.0, %v2136
  %v2138 = vpop.f32.mrb[0].mxu0
  %v2139 = vadd.f32 0.0, %v2138
  %2140 = vdwg.mxu0
  %v2149 = vrot.slane %v1924, 2
  %v2150 = vrot.slane %v1926, 2
  %v2151 = vrot.slane %v1995, 2
  %v2152 = vrot.slane %v1997, 2
  %v2153 = vrot.slane %v2066, 2
  %v2154 = vrot.slane %v2068, 2
  %v2155 = vrot.slane %v2137, 2
  %v2156 = vrot.slane %v2139, 2
  %v2165 = vadd.f32 %v518, %v2149
  %v2166 = vadd.f32 %v520, %v2150
  %v2167 = vadd.f32 %v595, %v2151
  %v2168 = vadd.f32 %v597, %v2152
  %v2169 = vadd.f32 %v672, %v2153
  %v2170 = vadd.f32 %v674, %v2154
  %v2171 = vadd.f32 %v749, %v2155
  %v2172 = vadd.f32 %v751, %v2156
  %v2173 = vsub.f32 0.0, %v2165
  %v2174 = vsub.f32 0.0, %v2166
  %v2175 = vmul.f32 %v2173, 1.442695
  %v2176 = vpow.pop %v2175
  %v2177 = vmul.f32 %v2174, 1.442695
  %v2178 = vpow.pop %v2177
  %v2179 = vadd.f32 %v2176, 1.0
  %v2180 = vadd.f32 %v2178, 1.0
  %v2181 = vrcp.pop %v2179
  %v2182 = vmul.f32 1.0, %v2181
  %v2183 = vrcp.pop %v2180
  %v2184 = vmul.f32 1.0, %v2183
  %v2185 = vsub.f32 0.0, %v2167
  %v2186 = vsub.f32 0.0, %v2168
  %v2187 = vmul.f32 %v2185, 1.442695
  %v2188 = vpow.pop %v2187
  %v2189 = vmul.f32 %v2186, 1.442695
  %v2190 = vpow.pop %v2189
  %v2191 = vadd.f32 %v2188, 1.0
  %v2192 = vadd.f32 %v2190, 1.0
  %v2193 = vrcp.pop %v2191
  %v2194 = vmul.f32 1.0, %v2193
  %v2195 = vrcp.pop %v2192
  %v2196 = vmul.f32 1.0, %v2195
  %v2197 = vtanh.pop %v2169
  %v2198 = vtanh.pop %v2170
  %v2199 = vsub.f32 0.0, %v2171
  %v2200 = vsub.f32 0.0, %v2172
  %v2201 = vmul.f32 %v2199, 1.442695
  %v2202 = vpow.pop %v2201
  %v2203 = vmul.f32 %v2200, 1.442695
  %v2204 = vpow.pop %v2203
  %v2205 = vadd.f32 %v2202, 1.0
  %v2206 = vadd.f32 %v2204, 1.0
  %v2207 = vrcp.pop %v2205
  %v2208 = vmul.f32 1.0, %v2207
  %v2209 = vrcp.pop %v2206
  %v2210 = vmul.f32 1.0, %v2209
  %v2213 = vrot.slane %v1843, 6
  %v2214 = vrot.slane %v1844, 6
  %v2217 = vmul.f32 %v2194, %v2213
  %v2218 = vmul.f32 %v2196, %v2214
  %v2219 = vmul.f32 %v2182, %v2197
  %v2220 = vmul.f32 %v2184, %v2198
  %v2221 = vadd.f32 %v2217, %v2219
  %v2222 = vadd.f32 %v2218, %v2220
  %v2223 = vtanh.pop %v2221
  %v2224 = vtanh.pop %v2222
  %v2225 = vmul.f32 %v2208, %v2223
  %v2226 = vmul.f32 %v2210, %v2224
  %2227 = vst [vmem:[#allocation2] sm:$0xc0] %v2225
  %2228 = vst [vmem:[#allocation2 + $0x8] sm:$0xc0] %v2226
  %v2231 = vrot.slane %v2225, 6
  %v2232 = vrot.slane %v2226, 6
  %2235 = vmatprep.subr.mxu0 %v154
  %2236 = vmatpush1.msra.mxu0 %v153
  %2237 = vmatprep.subr.mxu0 %v162
  %2238 = vmatpush1.msra.mxu0 %v161
  %2239 = vmatprep.subr.mxu0 %v170
  %2240 = vmatpush1.msra.mxu0 %v169
  %2241 = vmatprep.subr.mxu0 %v178
  %2242 = vmatpush1.msra.mxu0 %v177
  %2243 = vmatprep.subr.mxu0 %v186
  %2244 = vmatpush1.msra.mxu0 %v185
  %2245 = vmatprep.subr.mxu0 %v194
  %2246 = vmatpush1.msra.mxu0 %v193
  %2247 = vmatprep.subr.mxu0 %v202
  %2248 = vmatpush1.msra.mxu0 %v201
  %2249 = vmatprep.subr.mxu0 %v210
  %2250 = vmatpush1.msra.mxu0 %v209
  %2251 = vmatprep.subr.mxu0 %v218
  %2252 = vmatpush1.msra.mxu0 %v217
  %2253 = vmatprep.subr.mxu0 %v226
  %2254 = vmatpush1.msra.mxu0 %v225
  %2255 = vmatprep.subr.mxu0 %v234
  %2256 = vmatpush1.msra.mxu0 %v233
  %2257 = vmatprep.subr.mxu0 %v242
  %2258 = vmatpush1.msra.mxu0 %v241
  %2259 = vmatprep.subr.mxu0 %v250
  %2260 = vmatpush1.msra.mxu0 %v249
  %2261 = vmatprep.subr.mxu0 %v258
  %2262 = vmatpush1.msra.mxu0 %v257
  %2263 = vmatprep.subr.mxu0 %v266
  %2264 = vmatpush1.msra.mxu0 %v265
  %2265 = vmatprep.subr.mxu0 %v274
  %2266 = vmatpush1.msra.mxu0 %v273
  %2267 = vmatprep.subr.mxu0 %v282
  %2268 = vmatpush1.msra.mxu0 %v281
  %2269 = vmatprep.subr.mxu0 %v290
  %2270 = vmatpush1.msra.mxu0 %v289
  %2271 = vmatprep.subr.mxu0 %v298
  %2272 = vmatpush1.msra.mxu0 %v297
  %2273 = vmatprep.subr.mxu0 %v306
  %2274 = vmatpush1.msra.mxu0 %v305
  %2275 = vmatprep.subr.mxu0 %v314
  %2276 = vmatpush1.msra.mxu0 %v313
  %2277 = vmatprep.subr.mxu0 %v322
  %2278 = vmatpush1.msra.mxu0 %v321
  %2279 = vmatprep.subr.mxu0 %v330
  %2280 = vmatpush1.msra.mxu0 %v329
  %2281 = vmatprep.subr.mxu0 %v338
  %2282 = vmatpush1.msra.mxu0 %v337
  %2283 = vmatprep.subr.mxu0 %v346
  %2284 = vmatpush1.msra.mxu0 %v345
  %2285 = vmatprep.subr.mxu0 %v354
  %2286 = vmatpush1.msra.mxu0 %v353
  %2287 = vmatprep.subr.mxu0 %v362
  %2288 = vmatpush1.msra.mxu0 %v361
  %2289 = vmatprep.subr.mxu0 %v370
  %2290 = vmatpush1.msra.mxu0 %v369
  %2291 = vmatprep.subr.mxu0 %v378
  %2292 = vmatpush1.msra.mxu0 %v377
  %2293 = vmatprep.subr.mxu0 %v386
  %2294 = vmatpush1.msra.mxu0 %v385
  %2295 = vmatprep.subr.mxu0 %v394
  %2296 = vmatpush1.msra.mxu0 %v393
  %2297 = vmatprep.subr.mxu0 %v402
  %2298 = vmatpush1.msra.mxu0 %v401
  %2299 = vmatprep.mubr.f32.mxu0 %v2232
  %2300 = vmatmul.mubr.f32.gmra.mrb[0].mxu0 %v2231
  %v2301 = vpop.f32.mrb[0].mxu0
  %v2302 = vadd.f32 0.0, %v2301
  %v2303 = vpop.f32.mrb[0].mxu0
  %v2304 = vadd.f32 0.0, %v2303
  %2305 = vdwg.mxu0
  %2306 = vmatprep.subr.mxu0 %v156
  %2307 = vmatpush1.msra.mxu0 %v155
  %2308 = vmatprep.subr.mxu0 %v164
  %2309 = vmatpush1.msra.mxu0 %v163
  %2310 = vmatprep.subr.mxu0 %v172
  %2311 = vmatpush1.msra.mxu0 %v171
  %2312 = vmatprep.subr.mxu0 %v180
  %2313 = vmatpush1.msra.mxu0 %v179
  %2314 = vmatprep.subr.mxu0 %v188
  %2315 = vmatpush1.msra.mxu0 %v187
  %2316 = vmatprep.subr.mxu0 %v196
  %2317 = vmatpush1.msra.mxu0 %v195
  %2318 = vmatprep.subr.mxu0 %v204
  %2319 = vmatpush1.msra.mxu0 %v203
  %2320 = vmatprep.subr.mxu0 %v212
  %2321 = vmatpush1.msra.mxu0 %v211
  %2322 = vmatprep.subr.mxu0 %v220
  %2323 = vmatpush1.msra.mxu0 %v219
  %2324 = vmatprep.subr.mxu0 %v228
  %2325 = vmatpush1.msra.mxu0 %v227
  %2326 = vmatprep.subr.mxu0 %v236
  %2327 = vmatpush1.msra.mxu0 %v235
  %2328 = vmatprep.subr.mxu0 %v244
  %2329 = vmatpush1.msra.mxu0 %v243
  %2330 = vmatprep.subr.mxu0 %v252
  %2331 = vmatpush1.msra.mxu0 %v251
  %2332 = vmatprep.subr.mxu0 %v260
  %2333 = vmatpush1.msra.mxu0 %v259
  %2334 = vmatprep.subr.mxu0 %v268
  %2335 = vmatpush1.msra.mxu0 %v267
  %2336 = vmatprep.subr.mxu0 %v276
  %2337 = vmatpush1.msra.mxu0 %v275
  %2338 = vmatprep.subr.mxu0 %v284
  %2339 = vmatpush1.msra.mxu0 %v283
  %2340 = vmatprep.subr.mxu0 %v292
  %2341 = vmatpush1.msra.mxu0 %v291
  %2342 = vmatprep.subr.mxu0 %v300
  %2343 = vmatpush1.msra.mxu0 %v299
  %2344 = vmatprep.subr.mxu0 %v308
  %2345 = vmatpush1.msra.mxu0 %v307
  %2346 = vmatprep.subr.mxu0 %v316
  %2347 = vmatpush1.msra.mxu0 %v315
  %2348 = vmatprep.subr.mxu0 %v324
  %2349 = vmatpush1.msra.mxu0 %v323
  %2350 = vmatprep.subr.mxu0 %v332
  %2351 = vmatpush1.msra.mxu0 %v331
  %2352 = vmatprep.subr.mxu0 %v340
  %2353 = vmatpush1.msra.mxu0 %v339
  %2354 = vmatprep.subr.mxu0 %v348
  %2355 = vmatpush1.msra.mxu0 %v347
  %2356 = vmatprep.subr.mxu0 %v356
  %2357 = vmatpush1.msra.mxu0 %v355
  %2358 = vmatprep.subr.mxu0 %v364
  %2359 = vmatpush1.msra.mxu0 %v363
  %2360 = vmatprep.subr.mxu0 %v372
  %2361 = vmatpush1.msra.mxu0 %v371
  %2362 = vmatprep.subr.mxu0 %v380
  %2363 = vmatpush1.msra.mxu0 %v379
  %2364 = vmatprep.subr.mxu0 %v388
  %2365 = vmatpush1.msra.mxu0 %v387
  %2366 = vmatprep.subr.mxu0 %v396
  %2367 = vmatpush1.msra.mxu0 %v395
  %2368 = vmatprep.subr.mxu0 %v404
  %2369 = vmatpush1.msra.mxu0 %v403
  %2370 = vmatprep.mubr.f32.mxu0 %v2232
  %2371 = vmatmul.mubr.f32.gmra.mrb[0].mxu0 %v2231
  %v2372 = vpop.f32.mrb[0].mxu0
  %v2373 = vadd.f32 0.0, %v2372
  %v2374 = vpop.f32.mrb[0].mxu0
  %v2375 = vadd.f32 0.0, %v2374
  %2376 = vdwg.mxu0
  %2377 = vmatprep.subr.mxu0 %v158
  %2378 = vmatpush1.msra.mxu0 %v157
  %2379 = vmatprep.subr.mxu0 %v166
  %2380 = vmatpush1.msra.mxu0 %v165
  %2381 = vmatprep.subr.mxu0 %v174
  %2382 = vmatpush1.msra.mxu0 %v173
  %2383 = vmatprep.subr.mxu0 %v182
  %2384 = vmatpush1.msra.mxu0 %v181
  %2385 = vmatprep.subr.mxu0 %v190
  %2386 = vmatpush1.msra.mxu0 %v189
  %2387 = vmatprep.subr.mxu0 %v198
  %2388 = vmatpush1.msra.mxu0 %v197
  %2389 = vmatprep.subr.mxu0 %v206
  %2390 = vmatpush1.msra.mxu0 %v205
  %2391 = vmatprep.subr.mxu0 %v214
  %2392 = vmatpush1.msra.mxu0 %v213
  %2393 = vmatprep.subr.mxu0 %v222
  %2394 = vmatpush1.msra.mxu0 %v221
  %2395 = vmatprep.subr.mxu0 %v230
  %2396 = vmatpush1.msra.mxu0 %v229
  %2397 = vmatprep.subr.mxu0 %v238
  %2398 = vmatpush1.msra.mxu0 %v237
  %2399 = vmatprep.subr.mxu0 %v246
  %2400 = vmatpush1.msra.mxu0 %v245
  %2401 = vmatprep.subr.mxu0 %v254
  %2402 = vmatpush1.msra.mxu0 %v253
  %2403 = vmatprep.subr.mxu0 %v262
  %2404 = vmatpush1.msra.mxu0 %v261
  %2405 = vmatprep.subr.mxu0 %v270
  %2406 = vmatpush1.msra.mxu0 %v269
  %2407 = vmatprep.subr.mxu0 %v278
  %2408 = vmatpush1.msra.mxu0 %v277
  %2409 = vmatprep.subr.mxu0 %v286
  %2410 = vmatpush1.msra.mxu0 %v285
  %2411 = vmatprep.subr.mxu0 %v294
  %2412 = vmatpush1.msra.mxu0 %v293
  %2413 = vmatprep.subr.mxu0 %v302
  %2414 = vmatpush1.msra.mxu0 %v301
  %2415 = vmatprep.subr.mxu0 %v310
  %2416 = vmatpush1.msra.mxu0 %v309
  %2417 = vmatprep.subr.mxu0 %v318
  %2418 = vmatpush1.msra.mxu0 %v317
  %2419 = vmatprep.subr.mxu0 %v326
  %2420 = vmatpush1.msra.mxu0 %v325
  %2421 = vmatprep.subr.mxu0 %v334
  %2422 = vmatpush1.msra.mxu0 %v333
  %2423 = vmatprep.subr.mxu0 %v342
  %2424 = vmatpush1.msra.mxu0 %v341
  %2425 = vmatprep.subr.mxu0 %v350
  %2426 = vmatpush1.msra.mxu0 %v349
  %2427 = vmatprep.subr.mxu0 %v358
  %2428 = vmatpush1.msra.mxu0 %v357
  %2429 = vmatprep.subr.mxu0 %v366
  %2430 = vmatpush1.msra.mxu0 %v365
  %2431 = vmatprep.subr.mxu0 %v374
  %2432 = vmatpush1.msra.mxu0 %v373
  %2433 = vmatprep.subr.mxu0 %v382
  %2434 = vmatpush1.msra.mxu0 %v381
  %2435 = vmatprep.subr.mxu0 %v390
  %2436 = vmatpush1.msra.mxu0 %v389
  %2437 = vmatprep.subr.mxu0 %v398
  %2438 = vmatpush1.msra.mxu0 %v397
  %2439 = vmatprep.subr.mxu0 %v406
  %2440 = vmatpush1.msra.mxu0 %v405
  %2441 = vmatprep.mubr.f32.mxu0 %v2232
  %2442 = vmatmul.mubr.f32.gmra.mrb[0].mxu0 %v2231
  %v2443 = vpop.f32.mrb[0].mxu0
  %v2444 = vadd.f32 0.0, %v2443
  %v2445 = vpop.f32.mrb[0].mxu0
  %v2446 = vadd.f32 0.0, %v2445
  %2447 = vdwg.mxu0
  %2448 = vmatprep.subr.mxu0 %v160
  %2449 = vmatpush1.msra.mxu0 %v159
  %2450 = vmatprep.subr.mxu0 %v168
  %2451 = vmatpush1.msra.mxu0 %v167
  %2452 = vmatprep.subr.mxu0 %v176
  %2453 = vmatpush1.msra.mxu0 %v175
  %2454 = vmatprep.subr.mxu0 %v184
  %2455 = vmatpush1.msra.mxu0 %v183
  %2456 = vmatprep.subr.mxu0 %v192
  %2457 = vmatpush1.msra.mxu0 %v191
  %2458 = vmatprep.subr.mxu0 %v200
  %2459 = vmatpush1.msra.mxu0 %v199
  %2460 = vmatprep.subr.mxu0 %v208
  %2461 = vmatpush1.msra.mxu0 %v207
  %2462 = vmatprep.subr.mxu0 %v216
  %2463 = vmatpush1.msra.mxu0 %v215
  %2464 = vmatprep.subr.mxu0 %v224
  %2465 = vmatpush1.msra.mxu0 %v223
  %2466 = vmatprep.subr.mxu0 %v232
  %2467 = vmatpush1.msra.mxu0 %v231
  %2468 = vmatprep.subr.mxu0 %v240
  %2469 = vmatpush1.msra.mxu0 %v239
  %2470 = vmatprep.subr.mxu0 %v248
  %2471 = vmatpush1.msra.mxu0 %v247
  %2472 = vmatprep.subr.mxu0 %v256
  %2473 = vmatpush1.msra.mxu0 %v255
  %2474 = vmatprep.subr.mxu0 %v264
  %2475 = vmatpush1.msra.mxu0 %v263
  %2476 = vmatprep.subr.mxu0 %v272
  %2477 = vmatpush1.msra.mxu0 %v271
  %2478 = vmatprep.subr.mxu0 %v280
  %2479 = vmatpush1.msra.mxu0 %v279
  %2480 = vmatprep.subr.mxu0 %v288
  %2481 = vmatpush1.msra.mxu0 %v287
  %2482 = vmatprep.subr.mxu0 %v296
  %2483 = vmatpush1.msra.mxu0 %v295
  %2484 = vmatprep.subr.mxu0 %v304
  %2485 = vmatpush1.msra.mxu0 %v303
  %2486 = vmatprep.subr.mxu0 %v312
  %2487 = vmatpush1.msra.mxu0 %v311
  %2488 = vmatprep.subr.mxu0 %v320
  %2489 = vmatpush1.msra.mxu0 %v319
  %2490 = vmatprep.subr.mxu0 %v328
  %2491 = vmatpush1.msra.mxu0 %v327
  %2492 = vmatprep.subr.mxu0 %v336
  %2493 = vmatpush1.msra.mxu0 %v335
  %2494 = vmatprep.subr.mxu0 %v344
  %2495 = vmatpush1.msra.mxu0 %v343
  %2496 = vmatprep.subr.mxu0 %v352
  %2497 = vmatpush1.msra.mxu0 %v351
  %2498 = vmatprep.subr.mxu0 %v360
  %2499 = vmatpush1.msra.mxu0 %v359
  %2500 = vmatprep.subr.mxu0 %v368
  %2501 = vmatpush1.msra.mxu0 %v367
  %2502 = vmatprep.subr.mxu0 %v376
  %2503 = vmatpush1.msra.mxu0 %v375
  %2504 = vmatprep.subr.mxu0 %v384
  %2505 = vmatpush1.msra.mxu0 %v383
  %2506 = vmatprep.subr.mxu0 %v392
  %2507 = vmatpush1.msra.mxu0 %v391
  %2508 = vmatprep.subr.mxu0 %v400
  %2509 = vmatpush1.msra.mxu0 %v399
  %2510 = vmatprep.subr.mxu0 %v408
  %2511 = vmatpush1.msra.mxu0 %v407
  %2512 = vmatprep.mubr.f32.mxu0 %v2232
  %2513 = vmatmul.mubr.f32.gmra.mrb[0].mxu0 %v2231
  %v2514 = vpop.f32.mrb[0].mxu0
  %v2515 = vadd.f32 0.0, %v2514
  %v2516 = vpop.f32.mrb[0].mxu0
  %v2517 = vadd.f32 0.0, %v2516
  %2518 = vdwg.mxu0
  %v2519 = vadd.f32 %v524, %v2302
  %v2520 = vadd.f32 %v526, %v2304
  %v2521 = vadd.f32 %v601, %v2373
  %v2522 = vadd.f32 %v603, %v2375
  %v2523 = vadd.f32 %v678, %v2444
  %v2524 = vadd.f32 %v680, %v2446
  %v2525 = vadd.f32 %v755, %v2515
  %v2526 = vadd.f32 %v757, %v2517
  %v2527 = vsub.f32 0.0, %v2519
  %v2528 = vsub.f32 0.0, %v2520
  %v2529 = vmul.f32 %v2527, 1.442695
  %v2530 = vpow.pop %v2529
  %v2531 = vmul.f32 %v2528, 1.442695
  %v2532 = vpow.pop %v2531
  %v2533 = vadd.f32 %v2530, 1.0
  %v2534 = vadd.f32 %v2532, 1.0
  %v2535 = vrcp.pop %v2533
  %v2536 = vmul.f32 1.0, %v2535
  %v2537 = vrcp.pop %v2534
  %v2538 = vmul.f32 1.0, %v2537
  %v2539 = vsub.f32 0.0, %v2521
  %v2540 = vsub.f32 0.0, %v2522
  %v2541 = vmul.f32 %v2539, 1.442695
  %v2542 = vpow.pop %v2541
  %v2543 = vmul.f32 %v2540, 1.442695
  %v2544 = vpow.pop %v2543
  %v2545 = vadd.f32 %v2542, 1.0
  %v2546 = vadd.f32 %v2544, 1.0
  %v2547 = vrcp.pop %v2545
  %v2548 = vmul.f32 1.0, %v2547
  %v2549 = vrcp.pop %v2546
  %v2550 = vmul.f32 1.0, %v2549
  %v2551 = vtanh.pop %v2523
  %v2552 = vtanh.pop %v2524
  %v2553 = vsub.f32 0.0, %v2525
  %v2554 = vsub.f32 0.0, %v2526
  %v2555 = vmul.f32 %v2553, 1.442695
  %v2556 = vpow.pop %v2555
  %v2557 = vmul.f32 %v2554, 1.442695
  %v2558 = vpow.pop %v2557
  %v2559 = vadd.f32 %v2556, 1.0
  %v2560 = vadd.f32 %v2558, 1.0
  %v2561 = vrcp.pop %v2559
  %v2562 = vmul.f32 1.0, %v2561
  %v2563 = vrcp.pop %v2560
  %v2564 = vmul.f32 1.0, %v2563
  %v2567 = vrot.slane %v2221, 6
  %v2568 = vrot.slane %v2222, 6
  %v2571 = vmul.f32 %v2548, %v2567
  %v2572 = vmul.f32 %v2550, %v2568
  %v2573 = vmul.f32 %v2536, %v2551
  %v2574 = vmul.f32 %v2538, %v2552
  %v2575 = vadd.f32 %v2571, %v2573
  %v2576 = vadd.f32 %v2572, %v2574
  %v2577 = vtanh.pop %v2575
  %v2578 = vtanh.pop %v2576
  %v2579 = vmul.f32 %v2562, %v2577
  %v2580 = vmul.f32 %v2564, %v2578
  %2581 = vst [vmem:[#allocation2 + $0x10] sm:$0x3] %v2579
  %2582 = vst [vmem:[#allocation2 + $0x18] sm:$0x3] %v2580
  %2583 = vmatprep.subr.mxu0 %v154
  %2584 = vmatpush1.msra.mxu0 %v153
  %2585 = vmatprep.subr.mxu0 %v162
  %2586 = vmatpush1.msra.mxu0 %v161
  %2587 = vmatprep.subr.mxu0 %v170
  %2588 = vmatpush1.msra.mxu0 %v169
  %2589 = vmatprep.subr.mxu0 %v178
  %2590 = vmatpush1.msra.mxu0 %v177
  %2591 = vmatprep.subr.mxu0 %v186
  %2592 = vmatpush1.msra.mxu0 %v185
  %2593 = vmatprep.subr.mxu0 %v194
  %2594 = vmatpush1.msra.mxu0 %v193
  %2595 = vmatprep.subr.mxu0 %v202
  %2596 = vmatpush1.msra.mxu0 %v201
  %2597 = vmatprep.subr.mxu0 %v210
  %2598 = vmatpush1.msra.mxu0 %v209
  %2599 = vmatprep.subr.mxu0 %v218
  %2600 = vmatpush1.msra.mxu0 %v217
  %2601 = vmatprep.subr.mxu0 %v226
  %2602 = vmatpush1.msra.mxu0 %v225
  %2603 = vmatprep.subr.mxu0 %v234
  %2604 = vmatpush1.msra.mxu0 %v233
  %2605 = vmatprep.subr.mxu0 %v242
  %2606 = vmatpush1.msra.mxu0 %v241
  %2607 = vmatprep.subr.mxu0 %v250
  %2608 = vmatpush1.msra.mxu0 %v249
  %2609 = vmatprep.subr.mxu0 %v258
  %2610 = vmatpush1.msra.mxu0 %v257
  %2611 = vmatprep.subr.mxu0 %v266
  %2612 = vmatpush1.msra.mxu0 %v265
  %2613 = vmatprep.subr.mxu0 %v274
  %2614 = vmatpush1.msra.mxu0 %v273
  %2615 = vmatprep.subr.mxu0 %v282
  %2616 = vmatpush1.msra.mxu0 %v281
  %2617 = vmatprep.subr.mxu0 %v290
  %2618 = vmatpush1.msra.mxu0 %v289
  %2619 = vmatprep.subr.mxu0 %v298
  %2620 = vmatpush1.msra.mxu0 %v297
  %2621 = vmatprep.subr.mxu0 %v306
  %2622 = vmatpush1.msra.mxu0 %v305
  %2623 = vmatprep.subr.mxu0 %v314
  %2624 = vmatpush1.msra.mxu0 %v313
  %2625 = vmatprep.subr.mxu0 %v322
  %2626 = vmatpush1.msra.mxu0 %v321
  %2627 = vmatprep.subr.mxu0 %v330
  %2628 = vmatpush1.msra.mxu0 %v329
  %2629 = vmatprep.subr.mxu0 %v338
  %2630 = vmatpush1.msra.mxu0 %v337
  %2631 = vmatprep.subr.mxu0 %v346
  %2632 = vmatpush1.msra.mxu0 %v345
  %2633 = vmatprep.subr.mxu0 %v354
  %2634 = vmatpush1.msra.mxu0 %v353
  %2635 = vmatprep.subr.mxu0 %v362
  %2636 = vmatpush1.msra.mxu0 %v361
  %2637 = vmatprep.subr.mxu0 %v370
  %2638 = vmatpush1.msra.mxu0 %v369
  %2639 = vmatprep.subr.mxu0 %v378
  %2640 = vmatpush1.msra.mxu0 %v377
  %2641 = vmatprep.subr.mxu0 %v386
  %2642 = vmatpush1.msra.mxu0 %v385
  %2643 = vmatprep.subr.mxu0 %v394
  %2644 = vmatpush1.msra.mxu0 %v393
  %2645 = vmatprep.subr.mxu0 %v402
  %2646 = vmatpush1.msra.mxu0 %v401
  %2647 = vmatprep.mubr.f32.mxu0 %v2580
  %2648 = vmatmul.mubr.f32.gmra.mrb[0].mxu0 %v2579
  %v2649 = vpop.f32.mrb[0].mxu0
  %v2650 = vadd.f32 0.0, %v2649
  %v2651 = vpop.f32.mrb[0].mxu0
  %v2652 = vadd.f32 0.0, %v2651
  %2653 = vdwg.mxu0
  %2654 = vmatprep.subr.mxu0 %v156
  %2655 = vmatpush1.msra.mxu0 %v155
  %2656 = vmatprep.subr.mxu0 %v164
  %2657 = vmatpush1.msra.mxu0 %v163
  %2658 = vmatprep.subr.mxu0 %v172
  %2659 = vmatpush1.msra.mxu0 %v171
  %2660 = vmatprep.subr.mxu0 %v180
  %2661 = vmatpush1.msra.mxu0 %v179
  %2662 = vmatprep.subr.mxu0 %v188
  %2663 = vmatpush1.msra.mxu0 %v187
  %2664 = vmatprep.subr.mxu0 %v196
  %2665 = vmatpush1.msra.mxu0 %v195
  %2666 = vmatprep.subr.mxu0 %v204
  %2667 = vmatpush1.msra.mxu0 %v203
  %2668 = vmatprep.subr.mxu0 %v212
  %2669 = vmatpush1.msra.mxu0 %v211
  %2670 = vmatprep.subr.mxu0 %v220
  %2671 = vmatpush1.msra.mxu0 %v219
  %2672 = vmatprep.subr.mxu0 %v228
  %2673 = vmatpush1.msra.mxu0 %v227
  %2674 = vmatprep.subr.mxu0 %v236
  %2675 = vmatpush1.msra.mxu0 %v235
  %2676 = vmatprep.subr.mxu0 %v244
  %2677 = vmatpush1.msra.mxu0 %v243
  %2678 = vmatprep.subr.mxu0 %v252
  %2679 = vmatpush1.msra.mxu0 %v251
  %2680 = vmatprep.subr.mxu0 %v260
  %2681 = vmatpush1.msra.mxu0 %v259
  %2682 = vmatprep.subr.mxu0 %v268
  %2683 = vmatpush1.msra.mxu0 %v267
  %2684 = vmatprep.subr.mxu0 %v276
  %2685 = vmatpush1.msra.mxu0 %v275
  %2686 = vmatprep.subr.mxu0 %v284
  %2687 = vmatpush1.msra.mxu0 %v283
  %2688 = vmatprep.subr.mxu0 %v292
  %2689 = vmatpush1.msra.mxu0 %v291
  %2690 = vmatprep.subr.mxu0 %v300
  %2691 = vmatpush1.msra.mxu0 %v299
  %2692 = vmatprep.subr.mxu0 %v308
  %2693 = vmatpush1.msra.mxu0 %v307
  %2694 = vmatprep.subr.mxu0 %v316
  %2695 = vmatpush1.msra.mxu0 %v315
  %2696 = vmatprep.subr.mxu0 %v324
  %2697 = vmatpush1.msra.mxu0 %v323
  %2698 = vmatprep.subr.mxu0 %v332
  %2699 = vmatpush1.msra.mxu0 %v331
  %2700 = vmatprep.subr.mxu0 %v340
  %2701 = vmatpush1.msra.mxu0 %v339
  %2702 = vmatprep.subr.mxu0 %v348
  %2703 = vmatpush1.msra.mxu0 %v347
  %2704 = vmatprep.subr.mxu0 %v356
  %2705 = vmatpush1.msra.mxu0 %v355
  %2706 = vmatprep.subr.mxu0 %v364
  %2707 = vmatpush1.msra.mxu0 %v363
  %2708 = vmatprep.subr.mxu0 %v372
  %2709 = vmatpush1.msra.mxu0 %v371
  %2710 = vmatprep.subr.mxu0 %v380
  %2711 = vmatpush1.msra.mxu0 %v379
  %2712 = vmatprep.subr.mxu0 %v388
  %2713 = vmatpush1.msra.mxu0 %v387
  %2714 = vmatprep.subr.mxu0 %v396
  %2715 = vmatpush1.msra.mxu0 %v395
  %2716 = vmatprep.subr.mxu0 %v404
  %2717 = vmatpush1.msra.mxu0 %v403
  %2718 = vmatprep.mubr.f32.mxu0 %v2580
  %2719 = vmatmul.mubr.f32.gmra.mrb[0].mxu0 %v2579
  %v2720 = vpop.f32.mrb[0].mxu0
  %v2721 = vadd.f32 0.0, %v2720
  %v2722 = vpop.f32.mrb[0].mxu0
  %v2723 = vadd.f32 0.0, %v2722
  %2724 = vdwg.mxu0
  %2725 = vmatprep.subr.mxu0 %v158
  %2726 = vmatpush1.msra.mxu0 %v157
  %2727 = vmatprep.subr.mxu0 %v166
  %2728 = vmatpush1.msra.mxu0 %v165
  %2729 = vmatprep.subr.mxu0 %v174
  %2730 = vmatpush1.msra.mxu0 %v173
  %2731 = vmatprep.subr.mxu0 %v182
  %2732 = vmatpush1.msra.mxu0 %v181
  %2733 = vmatprep.subr.mxu0 %v190
  %2734 = vmatpush1.msra.mxu0 %v189
  %2735 = vmatprep.subr.mxu0 %v198
  %2736 = vmatpush1.msra.mxu0 %v197
  %2737 = vmatprep.subr.mxu0 %v206
  %2738 = vmatpush1.msra.mxu0 %v205
  %2739 = vmatprep.subr.mxu0 %v214
  %2740 = vmatpush1.msra.mxu0 %v213
  %2741 = vmatprep.subr.mxu0 %v222
  %2742 = vmatpush1.msra.mxu0 %v221
  %2743 = vmatprep.subr.mxu0 %v230
  %2744 = vmatpush1.msra.mxu0 %v229
  %2745 = vmatprep.subr.mxu0 %v238
  %2746 = vmatpush1.msra.mxu0 %v237
  %2747 = vmatprep.subr.mxu0 %v246
  %2748 = vmatpush1.msra.mxu0 %v245
  %2749 = vmatprep.subr.mxu0 %v254
  %2750 = vmatpush1.msra.mxu0 %v253
  %2751 = vmatprep.subr.mxu0 %v262
  %2752 = vmatpush1.msra.mxu0 %v261
  %2753 = vmatprep.subr.mxu0 %v270
  %2754 = vmatpush1.msra.mxu0 %v269
  %2755 = vmatprep.subr.mxu0 %v278
  %2756 = vmatpush1.msra.mxu0 %v277
  %2757 = vmatprep.subr.mxu0 %v286
  %2758 = vmatpush1.msra.mxu0 %v285
  %2759 = vmatprep.subr.mxu0 %v294
  %2760 = vmatpush1.msra.mxu0 %v293
  %2761 = vmatprep.subr.mxu0 %v302
  %2762 = vmatpush1.msra.mxu0 %v301
  %2763 = vmatprep.subr.mxu0 %v310
  %2764 = vmatpush1.msra.mxu0 %v309
  %2765 = vmatprep.subr.mxu0 %v318
  %2766 = vmatpush1.msra.mxu0 %v317
  %2767 = vmatprep.subr.mxu0 %v326
  %2768 = vmatpush1.msra.mxu0 %v325
  %2769 = vmatprep.subr.mxu0 %v334
  %2770 = vmatpush1.msra.mxu0 %v333
  %2771 = vmatprep.subr.mxu0 %v342
  %2772 = vmatpush1.msra.mxu0 %v341
  %2773 = vmatprep.subr.mxu0 %v350
  %2774 = vmatpush1.msra.mxu0 %v349
  %2775 = vmatprep.subr.mxu0 %v358
  %2776 = vmatpush1.msra.mxu0 %v357
  %2777 = vmatprep.subr.mxu0 %v366
  %2778 = vmatpush1.msra.mxu0 %v365
  %2779 = vmatprep.subr.mxu0 %v374
  %2780 = vmatpush1.msra.mxu0 %v373
  %2781 = vmatprep.subr.mxu0 %v382
  %2782 = vmatpush1.msra.mxu0 %v381
  %2783 = vmatprep.subr.mxu0 %v390
  %2784 = vmatpush1.msra.mxu0 %v389
  %2785 = vmatprep.subr.mxu0 %v398
  %2786 = vmatpush1.msra.mxu0 %v397
  %2787 = vmatprep.subr.mxu0 %v406
  %2788 = vmatpush1.msra.mxu0 %v405
  %2789 = vmatprep.mubr.f32.mxu0 %v2580
  %2790 = vmatmul.mubr.f32.gmra.mrb[0].mxu0 %v2579
  %v2791 = vpop.f32.mrb[0].mxu0
  %v2792 = vadd.f32 0.0, %v2791
  %v2793 = vpop.f32.mrb[0].mxu0
  %v2794 = vadd.f32 0.0, %v2793
  %2795 = vdwg.mxu0
  %2796 = vmatprep.subr.mxu0 %v160
  %2797 = vmatpush1.msra.mxu0 %v159
  %2798 = vmatprep.subr.mxu0 %v168
  %2799 = vmatpush1.msra.mxu0 %v167
  %2800 = vmatprep.subr.mxu0 %v176
  %2801 = vmatpush1.msra.mxu0 %v175
  %2802 = vmatprep.subr.mxu0 %v184
  %2803 = vmatpush1.msra.mxu0 %v183
  %2804 = vmatprep.subr.mxu0 %v192
  %2805 = vmatpush1.msra.mxu0 %v191
  %2806 = vmatprep.subr.mxu0 %v200
  %2807 = vmatpush1.msra.mxu0 %v199
  %2808 = vmatprep.subr.mxu0 %v208
  %2809 = vmatpush1.msra.mxu0 %v207
  %2810 = vmatprep.subr.mxu0 %v216
  %2811 = vmatpush1.msra.mxu0 %v215
  %2812 = vmatprep.subr.mxu0 %v224
  %2813 = vmatpush1.msra.mxu0 %v223
  %2814 = vmatprep.subr.mxu0 %v232
  %2815 = vmatpush1.msra.mxu0 %v231
  %2816 = vmatprep.subr.mxu0 %v240
  %2817 = vmatpush1.msra.mxu0 %v239
  %2818 = vmatprep.subr.mxu0 %v248
  %2819 = vmatpush1.msra.mxu0 %v247
  %2820 = vmatprep.subr.mxu0 %v256
  %2821 = vmatpush1.msra.mxu0 %v255
  %2822 = vmatprep.subr.mxu0 %v264
  %2823 = vmatpush1.msra.mxu0 %v263
  %2824 = vmatprep.subr.mxu0 %v272
  %2825 = vmatpush1.msra.mxu0 %v271
  %2826 = vmatprep.subr.mxu0 %v280
  %2827 = vmatpush1.msra.mxu0 %v279
  %2828 = vmatprep.subr.mxu0 %v288
  %2829 = vmatpush1.msra.mxu0 %v287
  %2830 = vmatprep.subr.mxu0 %v296
  %2831 = vmatpush1.msra.mxu0 %v295
  %2832 = vmatprep.subr.mxu0 %v304
  %2833 = vmatpush1.msra.mxu0 %v303
  %2834 = vmatprep.subr.mxu0 %v312
  %2835 = vmatpush1.msra.mxu0 %v311
  %2836 = vmatprep.subr.mxu0 %v320
  %2837 = vmatpush1.msra.mxu0 %v319
  %2838 = vmatprep.subr.mxu0 %v328
  %2839 = vmatpush1.msra.mxu0 %v327
  %2840 = vmatprep.subr.mxu0 %v336
  %2841 = vmatpush1.msra.mxu0 %v335
  %2842 = vmatprep.subr.mxu0 %v344
  %2843 = vmatpush1.msra.mxu0 %v343
  %2844 = vmatprep.subr.mxu0 %v352
  %2845 = vmatpush1.msra.mxu0 %v351
  %2846 = vmatprep.subr.mxu0 %v360
  %2847 = vmatpush1.msra.mxu0 %v359
  %2848 = vmatprep.subr.mxu0 %v368
  %2849 = vmatpush1.msra.mxu0 %v367
  %2850 = vmatprep.subr.mxu0 %v376
  %2851 = vmatpush1.msra.mxu0 %v375
  %2852 = vmatprep.subr.mxu0 %v384
  %2853 = vmatpush1.msra.mxu0 %v383
  %2854 = vmatprep.subr.mxu0 %v392
  %2855 = vmatpush1.msra.mxu0 %v391
  %2856 = vmatprep.subr.mxu0 %v400
  %2857 = vmatpush1.msra.mxu0 %v399
  %2858 = vmatprep.subr.mxu0 %v408
  %2859 = vmatpush1.msra.mxu0 %v407
  %2860 = vmatprep.mubr.f32.mxu0 %v2580
  %2861 = vmatmul.mubr.f32.gmra.mrb[0].mxu0 %v2579
  %v2862 = vpop.f32.mrb[0].mxu0
  %v2863 = vadd.f32 0.0, %v2862
  %v2864 = vpop.f32.mrb[0].mxu0
  %v2865 = vadd.f32 0.0, %v2864
  %2866 = vdwg.mxu0
  %v2875 = vrot.slane %v2650, 6
  %v2876 = vrot.slane %v2652, 6
  %v2877 = vrot.slane %v2721, 6
  %v2878 = vrot.slane %v2723, 6
  %v2879 = vrot.slane %v2792, 6
  %v2880 = vrot.slane %v2794, 6
  %v2881 = vrot.slane %v2863, 6
  %v2882 = vrot.slane %v2865, 6
  %v2891 = vadd.f32 %v524, %v2875
  %v2892 = vadd.f32 %v526, %v2876
  %v2893 = vadd.f32 %v601, %v2877
  %v2894 = vadd.f32 %v603, %v2878
  %v2895 = vadd.f32 %v678, %v2879
  %v2896 = vadd.f32 %v680, %v2880
  %v2897 = vadd.f32 %v755, %v2881
  %v2898 = vadd.f32 %v757, %v2882
  %v2899 = vsub.f32 0.0, %v2891
  %v2900 = vsub.f32 0.0, %v2892
  %v2901 = vmul.f32 %v2899, 1.442695
  %v2902 = vpow.pop %v2901
  %v2903 = vmul.f32 %v2900, 1.442695
  %v2904 = vpow.pop %v2903
  %v2905 = vadd.f32 %v2902, 1.0
  %v2906 = vadd.f32 %v2904, 1.0
  %v2907 = vrcp.pop %v2905
  %v2908 = vmul.f32 1.0, %v2907
  %v2909 = vrcp.pop %v2906
  %v2910 = vmul.f32 1.0, %v2909
  %v2911 = vsub.f32 0.0, %v2893
  %v2912 = vsub.f32 0.0, %v2894
  %v2913 = vmul.f32 %v2911, 1.442695
  %v2914 = vpow.pop %v2913
  %v2915 = vmul.f32 %v2912, 1.442695
  %v2916 = vpow.pop %v2915
  %v2917 = vadd.f32 %v2914, 1.0
  %v2918 = vadd.f32 %v2916, 1.0
  %v2919 = vrcp.pop %v2917
  %v2920 = vmul.f32 1.0, %v2919
  %v2921 = vrcp.pop %v2918
  %v2922 = vmul.f32 1.0, %v2921
  %v2923 = vtanh.pop %v2895
  %v2924 = vtanh.pop %v2896
  %v2925 = vsub.f32 0.0, %v2897
  %v2926 = vsub.f32 0.0, %v2898
  %v2927 = vmul.f32 %v2925, 1.442695
  %v2928 = vpow.pop %v2927
  %v2929 = vmul.f32 %v2926, 1.442695
  %v2930 = vpow.pop %v2929
  %v2931 = vadd.f32 %v2928, 1.0
  %v2932 = vadd.f32 %v2930, 1.0
  %v2933 = vrcp.pop %v2931
  %v2934 = vmul.f32 1.0, %v2933
  %v2935 = vrcp.pop %v2932
  %v2936 = vmul.f32 1.0, %v2935
  %v2939 = vrot.slane %v2575, 6
  %v2940 = vrot.slane %v2576, 6
  %v2943 = vmul.f32 %v2920, %v2939
  %v2944 = vmul.f32 %v2922, %v2940
  %v2945 = vmul.f32 %v2908, %v2923
  %v2946 = vmul.f32 %v2910, %v2924
  %v2947 = vadd.f32 %v2943, %v2945
  %v2948 = vadd.f32 %v2944, %v2946
  %v2949 = vtanh.pop %v2947
  %v2950 = vtanh.pop %v2948
  %v2951 = vmul.f32 %v2934, %v2949
  %v2952 = vmul.f32 %v2936, %v2950
  %2953 = vst [vmem:[#allocation2 + $0x10] sm:$0xc] %v2951
  %2954 = vst [vmem:[#allocation2 + $0x18] sm:$0xc] %v2952
  %v2957 = vrot.slane %v2951, 2
  %v2958 = vrot.slane %v2952, 2
  %2961 = vmatprep.subr.mxu0 %v154
  %2962 = vmatpush1.msra.mxu0 %v153
  %2963 = vmatprep.subr.mxu0 %v162
  %2964 = vmatpush1.msra.mxu0 %v161
  %2965 = vmatprep.subr.mxu0 %v170
  %2966 = vmatpush1.msra.mxu0 %v169
  %2967 = vmatprep.subr.mxu0 %v178
  %2968 = vmatpush1.msra.mxu0 %v177
  %2969 = vmatprep.subr.mxu0 %v186
  %2970 = vmatpush1.msra.mxu0 %v185
  %2971 = vmatprep.subr.mxu0 %v194
  %2972 = vmatpush1.msra.mxu0 %v193
  %2973 = vmatprep.subr.mxu0 %v202
  %2974 = vmatpush1.msra.mxu0 %v201
  %2975 = vmatprep.subr.mxu0 %v210
  %2976 = vmatpush1.msra.mxu0 %v209
  %2977 = vmatprep.subr.mxu0 %v218
  %2978 = vmatpush1.msra.mxu0 %v217
  %2979 = vmatprep.subr.mxu0 %v226
  %2980 = vmatpush1.msra.mxu0 %v225
  %2981 = vmatprep.subr.mxu0 %v234
  %2982 = vmatpush1.msra.mxu0 %v233
  %2983 = vmatprep.subr.mxu0 %v242
  %2984 = vmatpush1.msra.mxu0 %v241
  %2985 = vmatprep.subr.mxu0 %v250
  %2986 = vmatpush1.msra.mxu0 %v249
  %2987 = vmatprep.subr.mxu0 %v258
  %2988 = vmatpush1.msra.mxu0 %v257
  %2989 = vmatprep.subr.mxu0 %v266
  %2990 = vmatpush1.msra.mxu0 %v265
  %2991 = vmatprep.subr.mxu0 %v274
  %2992 = vmatpush1.msra.mxu0 %v273
  %2993 = vmatprep.subr.mxu0 %v282
  %2994 = vmatpush1.msra.mxu0 %v281
  %2995 = vmatprep.subr.mxu0 %v290
  %2996 = vmatpush1.msra.mxu0 %v289
  %2997 = vmatprep.subr.mxu0 %v298
  %2998 = vmatpush1.msra.mxu0 %v297
  %2999 = vmatprep.subr.mxu0 %v306
  %3000 = vmatpush1.msra.mxu0 %v305
  %3001 = vmatprep.subr.mxu0 %v314
  %3002 = vmatpush1.msra.mxu0 %v313
  %3003 = vmatprep.subr.mxu0 %v322
  %3004 = vmatpush1.msra.mxu0 %v321
  %3005 = vmatprep.subr.mxu0 %v330
  %3006 = vmatpush1.msra.mxu0 %v329
  %3007 = vmatprep.subr.mxu0 %v338
  %3008 = vmatpush1.msra.mxu0 %v337
  %3009 = vmatprep.subr.mxu0 %v346
  %3010 = vmatpush1.msra.mxu0 %v345
  %3011 = vmatprep.subr.mxu0 %v354
  %3012 = vmatpush1.msra.mxu0 %v353
  %3013 = vmatprep.subr.mxu0 %v362
  %3014 = vmatpush1.msra.mxu0 %v361
  %3015 = vmatprep.subr.mxu0 %v370
  %3016 = vmatpush1.msra.mxu0 %v369
  %3017 = vmatprep.subr.mxu0 %v378
  %3018 = vmatpush1.msra.mxu0 %v377
  %3019 = vmatprep.subr.mxu0 %v386
  %3020 = vmatpush1.msra.mxu0 %v385
  %3021 = vmatprep.subr.mxu0 %v394
  %3022 = vmatpush1.msra.mxu0 %v393
  %3023 = vmatprep.subr.mxu0 %v402
  %3024 = vmatpush1.msra.mxu0 %v401
  %3025 = vmatprep.mubr.f32.mxu0 %v2958
  %3026 = vmatmul.mubr.f32.gmra.mrb[0].mxu0 %v2957
  %v3027 = vpop.f32.mrb[0].mxu0
  %v3028 = vadd.f32 0.0, %v3027
  %v3029 = vpop.f32.mrb[0].mxu0
  %v3030 = vadd.f32 0.0, %v3029
  %3031 = vdwg.mxu0
  %3032 = vmatprep.subr.mxu0 %v156
  %3033 = vmatpush1.msra.mxu0 %v155
  %3034 = vmatprep.subr.mxu0 %v164
  %3035 = vmatpush1.msra.mxu0 %v163
  %3036 = vmatprep.subr.mxu0 %v172
  %3037 = vmatpush1.msra.mxu0 %v171
  %3038 = vmatprep.subr.mxu0 %v180
  %3039 = vmatpush1.msra.mxu0 %v179
  %3040 = vmatprep.subr.mxu0 %v188
  %3041 = vmatpush1.msra.mxu0 %v187
  %3042 = vmatprep.subr.mxu0 %v196
  %3043 = vmatpush1.msra.mxu0 %v195
  %3044 = vmatprep.subr.mxu0 %v204
  %3045 = vmatpush1.msra.mxu0 %v203
  %3046 = vmatprep.subr.mxu0 %v212
  %3047 = vmatpush1.msra.mxu0 %v211
  %3048 = vmatprep.subr.mxu0 %v220
  %3049 = vmatpush1.msra.mxu0 %v219
  %3050 = vmatprep.subr.mxu0 %v228
  %3051 = vmatpush1.msra.mxu0 %v227
  %3052 = vmatprep.subr.mxu0 %v236
  %3053 = vmatpush1.msra.mxu0 %v235
  %3054 = vmatprep.subr.mxu0 %v244
  %3055 = vmatpush1.msra.mxu0 %v243
  %3056 = vmatprep.subr.mxu0 %v252
  %3057 = vmatpush1.msra.mxu0 %v251
  %3058 = vmatprep.subr.mxu0 %v260
  %3059 = vmatpush1.msra.mxu0 %v259
  %3060 = vmatprep.subr.mxu0 %v268
  %3061 = vmatpush1.msra.mxu0 %v267
  %3062 = vmatprep.subr.mxu0 %v276
  %3063 = vmatpush1.msra.mxu0 %v275
  %3064 = vmatprep.subr.mxu0 %v284
  %3065 = vmatpush1.msra.mxu0 %v283
  %3066 = vmatprep.subr.mxu0 %v292
  %3067 = vmatpush1.msra.mxu0 %v291
  %3068 = vmatprep.subr.mxu0 %v300
  %3069 = vmatpush1.msra.mxu0 %v299
  %3070 = vmatprep.subr.mxu0 %v308
  %3071 = vmatpush1.msra.mxu0 %v307
  %3072 = vmatprep.subr.mxu0 %v316
  %3073 = vmatpush1.msra.mxu0 %v315
  %3074 = vmatprep.subr.mxu0 %v324
  %3075 = vmatpush1.msra.mxu0 %v323
  %3076 = vmatprep.subr.mxu0 %v332
  %3077 = vmatpush1.msra.mxu0 %v331
  %3078 = vmatprep.subr.mxu0 %v340
  %3079 = vmatpush1.msra.mxu0 %v339
  %3080 = vmatprep.subr.mxu0 %v348
  %3081 = vmatpush1.msra.mxu0 %v347
  %3082 = vmatprep.subr.mxu0 %v356
  %3083 = vmatpush1.msra.mxu0 %v355
  %3084 = vmatprep.subr.mxu0 %v364
  %3085 = vmatpush1.msra.mxu0 %v363
  %3086 = vmatprep.subr.mxu0 %v372
  %3087 = vmatpush1.msra.mxu0 %v371
  %3088 = vmatprep.subr.mxu0 %v380
  %3089 = vmatpush1.msra.mxu0 %v379
  %3090 = vmatprep.subr.mxu0 %v388
  %3091 = vmatpush1.msra.mxu0 %v387
  %3092 = vmatprep.subr.mxu0 %v396
  %3093 = vmatpush1.msra.mxu0 %v395
  %3094 = vmatprep.subr.mxu0 %v404
  %3095 = vmatpush1.msra.mxu0 %v403
  %3096 = vmatprep.mubr.f32.mxu0 %v2958
  %3097 = vmatmul.mubr.f32.gmra.mrb[0].mxu0 %v2957
  %v3098 = vpop.f32.mrb[0].mxu0
  %v3099 = vadd.f32 0.0, %v3098
  %v3100 = vpop.f32.mrb[0].mxu0
  %v3101 = vadd.f32 0.0, %v3100
  %3102 = vdwg.mxu0
  %3103 = vmatprep.subr.mxu0 %v158
  %3104 = vmatpush1.msra.mxu0 %v157
  %3105 = vmatprep.subr.mxu0 %v166
  %3106 = vmatpush1.msra.mxu0 %v165
  %3107 = vmatprep.subr.mxu0 %v174
  %3108 = vmatpush1.msra.mxu0 %v173
  %3109 = vmatprep.subr.mxu0 %v182
  %3110 = vmatpush1.msra.mxu0 %v181
  %3111 = vmatprep.subr.mxu0 %v190
  %3112 = vmatpush1.msra.mxu0 %v189
  %3113 = vmatprep.subr.mxu0 %v198
  %3114 = vmatpush1.msra.mxu0 %v197
  %3115 = vmatprep.subr.mxu0 %v206
  %3116 = vmatpush1.msra.mxu0 %v205
  %3117 = vmatprep.subr.mxu0 %v214
  %3118 = vmatpush1.msra.mxu0 %v213
  %3119 = vmatprep.subr.mxu0 %v222
  %3120 = vmatpush1.msra.mxu0 %v221
  %3121 = vmatprep.subr.mxu0 %v230
  %3122 = vmatpush1.msra.mxu0 %v229
  %3123 = vmatprep.subr.mxu0 %v238
  %3124 = vmatpush1.msra.mxu0 %v237
  %3125 = vmatprep.subr.mxu0 %v246
  %3126 = vmatpush1.msra.mxu0 %v245
  %3127 = vmatprep.subr.mxu0 %v254
  %3128 = vmatpush1.msra.mxu0 %v253
  %3129 = vmatprep.subr.mxu0 %v262
  %3130 = vmatpush1.msra.mxu0 %v261
  %3131 = vmatprep.subr.mxu0 %v270
  %3132 = vmatpush1.msra.mxu0 %v269
  %3133 = vmatprep.subr.mxu0 %v278
  %3134 = vmatpush1.msra.mxu0 %v277
  %3135 = vmatprep.subr.mxu0 %v286
  %3136 = vmatpush1.msra.mxu0 %v285
  %3137 = vmatprep.subr.mxu0 %v294
  %3138 = vmatpush1.msra.mxu0 %v293
  %3139 = vmatprep.subr.mxu0 %v302
  %3140 = vmatpush1.msra.mxu0 %v301
  %3141 = vmatprep.subr.mxu0 %v310
  %3142 = vmatpush1.msra.mxu0 %v309
  %3143 = vmatprep.subr.mxu0 %v318
  %3144 = vmatpush1.msra.mxu0 %v317
  %3145 = vmatprep.subr.mxu0 %v326
  %3146 = vmatpush1.msra.mxu0 %v325
  %3147 = vmatprep.subr.mxu0 %v334
  %3148 = vmatpush1.msra.mxu0 %v333
  %3149 = vmatprep.subr.mxu0 %v342
  %3150 = vmatpush1.msra.mxu0 %v341
  %3151 = vmatprep.subr.mxu0 %v350
  %3152 = vmatpush1.msra.mxu0 %v349
  %3153 = vmatprep.subr.mxu0 %v358
  %3154 = vmatpush1.msra.mxu0 %v357
  %3155 = vmatprep.subr.mxu0 %v366
  %3156 = vmatpush1.msra.mxu0 %v365
  %3157 = vmatprep.subr.mxu0 %v374
  %3158 = vmatpush1.msra.mxu0 %v373
  %3159 = vmatprep.subr.mxu0 %v382
  %3160 = vmatpush1.msra.mxu0 %v381
  %3161 = vmatprep.subr.mxu0 %v390
  %3162 = vmatpush1.msra.mxu0 %v389
  %3163 = vmatprep.subr.mxu0 %v398
  %3164 = vmatpush1.msra.mxu0 %v397
  %3165 = vmatprep.subr.mxu0 %v406
  %3166 = vmatpush1.msra.mxu0 %v405
  %3167 = vmatprep.mubr.f32.mxu0 %v2958
  %3168 = vmatmul.mubr.f32.gmra.mrb[0].mxu0 %v2957
  %v3169 = vpop.f32.mrb[0].mxu0
  %v3170 = vadd.f32 0.0, %v3169
  %v3171 = vpop.f32.mrb[0].mxu0
  %v3172 = vadd.f32 0.0, %v3171
  %3173 = vdwg.mxu0
  %3174 = vmatprep.subr.mxu0 %v160
  %3175 = vmatpush1.msra.mxu0 %v159
  %3176 = vmatprep.subr.mxu0 %v168
  %3177 = vmatpush1.msra.mxu0 %v167
  %3178 = vmatprep.subr.mxu0 %v176
  %3179 = vmatpush1.msra.mxu0 %v175
  %3180 = vmatprep.subr.mxu0 %v184
  %3181 = vmatpush1.msra.mxu0 %v183
  %3182 = vmatprep.subr.mxu0 %v192
  %3183 = vmatpush1.msra.mxu0 %v191
  %3184 = vmatprep.subr.mxu0 %v200
  %3185 = vmatpush1.msra.mxu0 %v199
  %3186 = vmatprep.subr.mxu0 %v208
  %3187 = vmatpush1.msra.mxu0 %v207
  %3188 = vmatprep.subr.mxu0 %v216
  %3189 = vmatpush1.msra.mxu0 %v215
  %3190 = vmatprep.subr.mxu0 %v224
  %3191 = vmatpush1.msra.mxu0 %v223
  %3192 = vmatprep.subr.mxu0 %v232
  %3193 = vmatpush1.msra.mxu0 %v231
  %3194 = vmatprep.subr.mxu0 %v240
  %3195 = vmatpush1.msra.mxu0 %v239
  %3196 = vmatprep.subr.mxu0 %v248
  %3197 = vmatpush1.msra.mxu0 %v247
  %3198 = vmatprep.subr.mxu0 %v256
  %3199 = vmatpush1.msra.mxu0 %v255
  %3200 = vmatprep.subr.mxu0 %v264
  %3201 = vmatpush1.msra.mxu0 %v263
  %3202 = vmatprep.subr.mxu0 %v272
  %3203 = vmatpush1.msra.mxu0 %v271
  %3204 = vmatprep.subr.mxu0 %v280
  %3205 = vmatpush1.msra.mxu0 %v279
  %3206 = vmatprep.subr.mxu0 %v288
  %3207 = vmatpush1.msra.mxu0 %v287
  %3208 = vmatprep.subr.mxu0 %v296
  %3209 = vmatpush1.msra.mxu0 %v295
  %3210 = vmatprep.subr.mxu0 %v304
  %3211 = vmatpush1.msra.mxu0 %v303
  %3212 = vmatprep.subr.mxu0 %v312
  %3213 = vmatpush1.msra.mxu0 %v311
  %3214 = vmatprep.subr.mxu0 %v320
  %3215 = vmatpush1.msra.mxu0 %v319
  %3216 = vmatprep.subr.mxu0 %v328
  %3217 = vmatpush1.msra.mxu0 %v327
  %3218 = vmatprep.subr.mxu0 %v336
  %3219 = vmatpush1.msra.mxu0 %v335
  %3220 = vmatprep.subr.mxu0 %v344
  %3221 = vmatpush1.msra.mxu0 %v343
  %3222 = vmatprep.subr.mxu0 %v352
  %3223 = vmatpush1.msra.mxu0 %v351
  %3224 = vmatprep.subr.mxu0 %v360
  %3225 = vmatpush1.msra.mxu0 %v359
  %3226 = vmatprep.subr.mxu0 %v368
  %3227 = vmatpush1.msra.mxu0 %v367
  %3228 = vmatprep.subr.mxu0 %v376
  %3229 = vmatpush1.msra.mxu0 %v375
  %3230 = vmatprep.subr.mxu0 %v384
  %3231 = vmatpush1.msra.mxu0 %v383
  %3232 = vmatprep.subr.mxu0 %v392
  %3233 = vmatpush1.msra.mxu0 %v391
  %3234 = vmatprep.subr.mxu0 %v400
  %3235 = vmatpush1.msra.mxu0 %v399
  %3236 = vmatprep.subr.mxu0 %v408
  %3237 = vmatpush1.msra.mxu0 %v407
  %3238 = vmatprep.mubr.f32.mxu0 %v2958
  %3239 = vmatmul.mubr.f32.gmra.mrb[0].mxu0 %v2957
  %v3240 = vpop.f32.mrb[0].mxu0
  %v3241 = vadd.f32 0.0, %v3240
  %v3242 = vpop.f32.mrb[0].mxu0
  %v3243 = vadd.f32 0.0, %v3242
  %3244 = vdwg.mxu0
  %v3253 = vrot.slane %v3028, 4
  %v3254 = vrot.slane %v3030, 4
  %v3255 = vrot.slane %v3099, 4
  %v3256 = vrot.slane %v3101, 4
  %v3257 = vrot.slane %v3170, 4
  %v3258 = vrot.slane %v3172, 4
  %v3259 = vrot.slane %v3241, 4
  %v3260 = vrot.slane %v3243, 4
  %v3269 = vadd.f32 %v524, %v3253
  %v3270 = vadd.f32 %v526, %v3254
  %v3271 = vadd.f32 %v601, %v3255
  %v3272 = vadd.f32 %v603, %v3256
  %v3273 = vadd.f32 %v678, %v3257
  %v3274 = vadd.f32 %v680, %v3258
  %v3275 = vadd.f32 %v755, %v3259
  %v3276 = vadd.f32 %v757, %v3260
  %v3277 = vsub.f32 0.0, %v3269
  %v3278 = vsub.f32 0.0, %v3270
  %v3279 = vmul.f32 %v3277, 1.442695
  %v3280 = vpow.pop %v3279
  %v3281 = vmul.f32 %v3278, 1.442695
  %v3282 = vpow.pop %v3281
  %v3283 = vadd.f32 %v3280, 1.0
  %v3284 = vadd.f32 %v3282, 1.0
  %v3285 = vrcp.pop %v3283
  %v3286 = vmul.f32 1.0, %v3285
  %v3287 = vrcp.pop %v3284
  %v3288 = vmul.f32 1.0, %v3287
  %v3289 = vsub.f32 0.0, %v3271
  %v3290 = vsub.f32 0.0, %v3272
  %v3291 = vmul.f32 %v3289, 1.442695
  %v3292 = vpow.pop %v3291
  %v3293 = vmul.f32 %v3290, 1.442695
  %v3294 = vpow.pop %v3293
  %v3295 = vadd.f32 %v3292, 1.0
  %v3296 = vadd.f32 %v3294, 1.0
  %v3297 = vrcp.pop %v3295
  %v3298 = vmul.f32 1.0, %v3297
  %v3299 = vrcp.pop %v3296
  %v3300 = vmul.f32 1.0, %v3299
  %v3301 = vtanh.pop %v3273
  %v3302 = vtanh.pop %v3274
  %v3303 = vsub.f32 0.0, %v3275
  %v3304 = vsub.f32 0.0, %v3276
  %v3305 = vmul.f32 %v3303, 1.442695
  %v3306 = vpow.pop %v3305
  %v3307 = vmul.f32 %v3304, 1.442695
  %v3308 = vpow.pop %v3307
  %v3309 = vadd.f32 %v3306, 1.0
  %v3310 = vadd.f32 %v3308, 1.0
  %v3311 = vrcp.pop %v3309
  %v3312 = vmul.f32 1.0, %v3311
  %v3313 = vrcp.pop %v3310
  %v3314 = vmul.f32 1.0, %v3313
  %v3317 = vrot.slane %v2947, 6
  %v3318 = vrot.slane %v2948, 6
  %v3321 = vmul.f32 %v3298, %v3317
  %v3322 = vmul.f32 %v3300, %v3318
  %v3323 = vmul.f32 %v3286, %v3301
  %v3324 = vmul.f32 %v3288, %v3302
  %v3325 = vadd.f32 %v3321, %v3323
  %v3326 = vadd.f32 %v3322, %v3324
  %v3327 = vtanh.pop %v3325
  %v3328 = vtanh.pop %v3326
  %v3329 = vmul.f32 %v3312, %v3327
  %v3330 = vmul.f32 %v3314, %v3328
  %3331 = vst [vmem:[#allocation2 + $0x10] sm:$0x30] %v3329
  %3332 = vst [vmem:[#allocation2 + $0x18] sm:$0x30] %v3330
  %v3335 = vrot.slane %v3329, 4
  %v3336 = vrot.slane %v3330, 4
  %3339 = vmatprep.subr.mxu0 %v154
  %3340 = vmatpush1.msra.mxu0 %v153
  %3341 = vmatprep.subr.mxu0 %v162
  %3342 = vmatpush1.msra.mxu0 %v161
  %3343 = vmatprep.subr.mxu0 %v170
  %3344 = vmatpush1.msra.mxu0 %v169
  %3345 = vmatprep.subr.mxu0 %v178
  %3346 = vmatpush1.msra.mxu0 %v177
  %3347 = vmatprep.subr.mxu0 %v186
  %3348 = vmatpush1.msra.mxu0 %v185
  %3349 = vmatprep.subr.mxu0 %v194
  %3350 = vmatpush1.msra.mxu0 %v193
  %3351 = vmatprep.subr.mxu0 %v202
  %3352 = vmatpush1.msra.mxu0 %v201
  %3353 = vmatprep.subr.mxu0 %v210
  %3354 = vmatpush1.msra.mxu0 %v209
  %3355 = vmatprep.subr.mxu0 %v218
  %3356 = vmatpush1.msra.mxu0 %v217
  %3357 = vmatprep.subr.mxu0 %v226
  %3358 = vmatpush1.msra.mxu0 %v225
  %3359 = vmatprep.subr.mxu0 %v234
  %3360 = vmatpush1.msra.mxu0 %v233
  %3361 = vmatprep.subr.mxu0 %v242
  %3362 = vmatpush1.msra.mxu0 %v241
  %3363 = vmatprep.subr.mxu0 %v250
  %3364 = vmatpush1.msra.mxu0 %v249
  %3365 = vmatprep.subr.mxu0 %v258
  %3366 = vmatpush1.msra.mxu0 %v257
  %3367 = vmatprep.subr.mxu0 %v266
  %3368 = vmatpush1.msra.mxu0 %v265
  %3369 = vmatprep.subr.mxu0 %v274
  %3370 = vmatpush1.msra.mxu0 %v273
  %3371 = vmatprep.subr.mxu0 %v282
  %3372 = vmatpush1.msra.mxu0 %v281
  %3373 = vmatprep.subr.mxu0 %v290
  %3374 = vmatpush1.msra.mxu0 %v289
  %3375 = vmatprep.subr.mxu0 %v298
  %3376 = vmatpush1.msra.mxu0 %v297
  %3377 = vmatprep.subr.mxu0 %v306
  %3378 = vmatpush1.msra.mxu0 %v305
  %3379 = vmatprep.subr.mxu0 %v314
  %3380 = vmatpush1.msra.mxu0 %v313
  %3381 = vmatprep.subr.mxu0 %v322
  %3382 = vmatpush1.msra.mxu0 %v321
  %3383 = vmatprep.subr.mxu0 %v330
  %3384 = vmatpush1.msra.mxu0 %v329
  %3385 = vmatprep.subr.mxu0 %v338
  %3386 = vmatpush1.msra.mxu0 %v337
  %3387 = vmatprep.subr.mxu0 %v346
  %3388 = vmatpush1.msra.mxu0 %v345
  %3389 = vmatprep.subr.mxu0 %v354
  %3390 = vmatpush1.msra.mxu0 %v353
  %3391 = vmatprep.subr.mxu0 %v362
  %3392 = vmatpush1.msra.mxu0 %v361
  %3393 = vmatprep.subr.mxu0 %v370
  %3394 = vmatpush1.msra.mxu0 %v369
  %3395 = vmatprep.subr.mxu0 %v378
  %3396 = vmatpush1.msra.mxu0 %v377
  %3397 = vmatprep.subr.mxu0 %v386
  %3398 = vmatpush1.msra.mxu0 %v385
  %3399 = vmatprep.subr.mxu0 %v394
  %3400 = vmatpush1.msra.mxu0 %v393
  %3401 = vmatprep.subr.mxu0 %v402
  %3402 = vmatpush1.msra.mxu0 %v401
  %3403 = vmatprep.mubr.f32.mxu0 %v3336
  %3404 = vmatmul.mubr.f32.gmra.mrb[0].mxu0 %v3335
  %v3405 = vpop.f32.mrb[0].mxu0
  %v3406 = vadd.f32 0.0, %v3405
  %v3407 = vpop.f32.mrb[0].mxu0
  %v3408 = vadd.f32 0.0, %v3407
  %3409 = vdwg.mxu0
  %3410 = vmatprep.subr.mxu0 %v156
  %3411 = vmatpush1.msra.mxu0 %v155
  %3412 = vmatprep.subr.mxu0 %v164
  %3413 = vmatpush1.msra.mxu0 %v163
  %3414 = vmatprep.subr.mxu0 %v172
  %3415 = vmatpush1.msra.mxu0 %v171
  %3416 = vmatprep.subr.mxu0 %v180
  %3417 = vmatpush1.msra.mxu0 %v179
  %3418 = vmatprep.subr.mxu0 %v188
  %3419 = vmatpush1.msra.mxu0 %v187
  %3420 = vmatprep.subr.mxu0 %v196
  %3421 = vmatpush1.msra.mxu0 %v195
  %3422 = vmatprep.subr.mxu0 %v204
  %3423 = vmatpush1.msra.mxu0 %v203
  %3424 = vmatprep.subr.mxu0 %v212
  %3425 = vmatpush1.msra.mxu0 %v211
  %3426 = vmatprep.subr.mxu0 %v220
  %3427 = vmatpush1.msra.mxu0 %v219
  %3428 = vmatprep.subr.mxu0 %v228
  %3429 = vmatpush1.msra.mxu0 %v227
  %3430 = vmatprep.subr.mxu0 %v236
  %3431 = vmatpush1.msra.mxu0 %v235
  %3432 = vmatprep.subr.mxu0 %v244
  %3433 = vmatpush1.msra.mxu0 %v243
  %3434 = vmatprep.subr.mxu0 %v252
  %3435 = vmatpush1.msra.mxu0 %v251
  %3436 = vmatprep.subr.mxu0 %v260
  %3437 = vmatpush1.msra.mxu0 %v259
  %3438 = vmatprep.subr.mxu0 %v268
  %3439 = vmatpush1.msra.mxu0 %v267
  %3440 = vmatprep.subr.mxu0 %v276
  %3441 = vmatpush1.msra.mxu0 %v275
  %3442 = vmatprep.subr.mxu0 %v284
  %3443 = vmatpush1.msra.mxu0 %v283
  %3444 = vmatprep.subr.mxu0 %v292
  %3445 = vmatpush1.msra.mxu0 %v291
  %3446 = vmatprep.subr.mxu0 %v300
  %3447 = vmatpush1.msra.mxu0 %v299
  %3448 = vmatprep.subr.mxu0 %v308
  %3449 = vmatpush1.msra.mxu0 %v307
  %3450 = vmatprep.subr.mxu0 %v316
  %3451 = vmatpush1.msra.mxu0 %v315
  %3452 = vmatprep.subr.mxu0 %v324
  %3453 = vmatpush1.msra.mxu0 %v323
  %3454 = vmatprep.subr.mxu0 %v332
  %3455 = vmatpush1.msra.mxu0 %v331
  %3456 = vmatprep.subr.mxu0 %v340
  %3457 = vmatpush1.msra.mxu0 %v339
  %3458 = vmatprep.subr.mxu0 %v348
  %3459 = vmatpush1.msra.mxu0 %v347
  %3460 = vmatprep.subr.mxu0 %v356
  %3461 = vmatpush1.msra.mxu0 %v355
  %3462 = vmatprep.subr.mxu0 %v364
  %3463 = vmatpush1.msra.mxu0 %v363
  %3464 = vmatprep.subr.mxu0 %v372
  %3465 = vmatpush1.msra.mxu0 %v371
  %3466 = vmatprep.subr.mxu0 %v380
  %3467 = vmatpush1.msra.mxu0 %v379
  %3468 = vmatprep.subr.mxu0 %v388
  %3469 = vmatpush1.msra.mxu0 %v387
  %3470 = vmatprep.subr.mxu0 %v396
  %3471 = vmatpush1.msra.mxu0 %v395
  %3472 = vmatprep.subr.mxu0 %v404
  %3473 = vmatpush1.msra.mxu0 %v403
  %3474 = vmatprep.mubr.f32.mxu0 %v3336
  %3475 = vmatmul.mubr.f32.gmra.mrb[0].mxu0 %v3335
  %v3476 = vpop.f32.mrb[0].mxu0
  %v3477 = vadd.f32 0.0, %v3476
  %v3478 = vpop.f32.mrb[0].mxu0
  %v3479 = vadd.f32 0.0, %v3478
  %3480 = vdwg.mxu0
  %3481 = vmatprep.subr.mxu0 %v158
  %3482 = vmatpush1.msra.mxu0 %v157
  %3483 = vmatprep.subr.mxu0 %v166
  %3484 = vmatpush1.msra.mxu0 %v165
  %3485 = vmatprep.subr.mxu0 %v174
  %3486 = vmatpush1.msra.mxu0 %v173
  %3487 = vmatprep.subr.mxu0 %v182
  %3488 = vmatpush1.msra.mxu0 %v181
  %3489 = vmatprep.subr.mxu0 %v190
  %3490 = vmatpush1.msra.mxu0 %v189
  %3491 = vmatprep.subr.mxu0 %v198
  %3492 = vmatpush1.msra.mxu0 %v197
  %3493 = vmatprep.subr.mxu0 %v206
  %3494 = vmatpush1.msra.mxu0 %v205
  %3495 = vmatprep.subr.mxu0 %v214
  %3496 = vmatpush1.msra.mxu0 %v213
  %3497 = vmatprep.subr.mxu0 %v222
  %3498 = vmatpush1.msra.mxu0 %v221
  %3499 = vmatprep.subr.mxu0 %v230
  %3500 = vmatpush1.msra.mxu0 %v229
  %3501 = vmatprep.subr.mxu0 %v238
  %3502 = vmatpush1.msra.mxu0 %v237
  %3503 = vmatprep.subr.mxu0 %v246
  %3504 = vmatpush1.msra.mxu0 %v245
  %3505 = vmatprep.subr.mxu0 %v254
  %3506 = vmatpush1.msra.mxu0 %v253
  %3507 = vmatprep.subr.mxu0 %v262
  %3508 = vmatpush1.msra.mxu0 %v261
  %3509 = vmatprep.subr.mxu0 %v270
  %3510 = vmatpush1.msra.mxu0 %v269
  %3511 = vmatprep.subr.mxu0 %v278
  %3512 = vmatpush1.msra.mxu0 %v277
  %3513 = vmatprep.subr.mxu0 %v286
  %3514 = vmatpush1.msra.mxu0 %v285
  %3515 = vmatprep.subr.mxu0 %v294
  %3516 = vmatpush1.msra.mxu0 %v293
  %3517 = vmatprep.subr.mxu0 %v302
  %3518 = vmatpush1.msra.mxu0 %v301
  %3519 = vmatprep.subr.mxu0 %v310
  %3520 = vmatpush1.msra.mxu0 %v309
  %3521 = vmatprep.subr.mxu0 %v318
  %3522 = vmatpush1.msra.mxu0 %v317
  %3523 = vmatprep.subr.mxu0 %v326
  %3524 = vmatpush1.msra.mxu0 %v325
  %3525 = vmatprep.subr.mxu0 %v334
  %3526 = vmatpush1.msra.mxu0 %v333
  %3527 = vmatprep.subr.mxu0 %v342
  %3528 = vmatpush1.msra.mxu0 %v341
  %3529 = vmatprep.subr.mxu0 %v350
  %3530 = vmatpush1.msra.mxu0 %v349
  %3531 = vmatprep.subr.mxu0 %v358
  %3532 = vmatpush1.msra.mxu0 %v357
  %3533 = vmatprep.subr.mxu0 %v366
  %3534 = vmatpush1.msra.mxu0 %v365
  %3535 = vmatprep.subr.mxu0 %v374
  %3536 = vmatpush1.msra.mxu0 %v373
  %3537 = vmatprep.subr.mxu0 %v382
  %3538 = vmatpush1.msra.mxu0 %v381
  %3539 = vmatprep.subr.mxu0 %v390
  %3540 = vmatpush1.msra.mxu0 %v389
  %3541 = vmatprep.subr.mxu0 %v398
  %3542 = vmatpush1.msra.mxu0 %v397
  %3543 = vmatprep.subr.mxu0 %v406
  %3544 = vmatpush1.msra.mxu0 %v405
  %3545 = vmatprep.mubr.f32.mxu0 %v3336
  %3546 = vmatmul.mubr.f32.gmra.mrb[0].mxu0 %v3335
  %v3547 = vpop.f32.mrb[0].mxu0
  %v3548 = vadd.f32 0.0, %v3547
  %v3549 = vpop.f32.mrb[0].mxu0
  %v3550 = vadd.f32 0.0, %v3549
  %3551 = vdwg.mxu0
  %3552 = vmatprep.subr.mxu0 %v160
  %3553 = vmatpush1.msra.mxu0 %v159
  %3554 = vmatprep.subr.mxu0 %v168
  %3555 = vmatpush1.msra.mxu0 %v167
  %3556 = vmatprep.subr.mxu0 %v176
  %3557 = vmatpush1.msra.mxu0 %v175
  %3558 = vmatprep.subr.mxu0 %v184
  %3559 = vmatpush1.msra.mxu0 %v183
  %3560 = vmatprep.subr.mxu0 %v192
  %3561 = vmatpush1.msra.mxu0 %v191
  %3562 = vmatprep.subr.mxu0 %v200
  %3563 = vmatpush1.msra.mxu0 %v199
  %3564 = vmatprep.subr.mxu0 %v208
  %3565 = vmatpush1.msra.mxu0 %v207
  %3566 = vmatprep.subr.mxu0 %v216
  %3567 = vmatpush1.msra.mxu0 %v215
  %3568 = vmatprep.subr.mxu0 %v224
  %3569 = vmatpush1.msra.mxu0 %v223
  %3570 = vmatprep.subr.mxu0 %v232
  %3571 = vmatpush1.msra.mxu0 %v231
  %3572 = vmatprep.subr.mxu0 %v240
  %3573 = vmatpush1.msra.mxu0 %v239
  %3574 = vmatprep.subr.mxu0 %v248
  %3575 = vmatpush1.msra.mxu0 %v247
  %3576 = vmatprep.subr.mxu0 %v256
  %3577 = vmatpush1.msra.mxu0 %v255
  %3578 = vmatprep.subr.mxu0 %v264
  %3579 = vmatpush1.msra.mxu0 %v263
  %3580 = vmatprep.subr.mxu0 %v272
  %3581 = vmatpush1.msra.mxu0 %v271
  %3582 = vmatprep.subr.mxu0 %v280
  %3583 = vmatpush1.msra.mxu0 %v279
  %3584 = vmatprep.subr.mxu0 %v288
  %3585 = vmatpush1.msra.mxu0 %v287
  %3586 = vmatprep.subr.mxu0 %v296
  %3587 = vmatpush1.msra.mxu0 %v295
  %3588 = vmatprep.subr.mxu0 %v304
  %3589 = vmatpush1.msra.mxu0 %v303
  %3590 = vmatprep.subr.mxu0 %v312
  %3591 = vmatpush1.msra.mxu0 %v311
  %3592 = vmatprep.subr.mxu0 %v320
  %3593 = vmatpush1.msra.mxu0 %v319
  %3594 = vmatprep.subr.mxu0 %v328
  %3595 = vmatpush1.msra.mxu0 %v327
  %3596 = vmatprep.subr.mxu0 %v336
  %3597 = vmatpush1.msra.mxu0 %v335
  %3598 = vmatprep.subr.mxu0 %v344
  %3599 = vmatpush1.msra.mxu0 %v343
  %3600 = vmatprep.subr.mxu0 %v352
  %3601 = vmatpush1.msra.mxu0 %v351
  %3602 = vmatprep.subr.mxu0 %v360
  %3603 = vmatpush1.msra.mxu0 %v359
  %3604 = vmatprep.subr.mxu0 %v368
  %3605 = vmatpush1.msra.mxu0 %v367
  %3606 = vmatprep.subr.mxu0 %v376
  %3607 = vmatpush1.msra.mxu0 %v375
  %3608 = vmatprep.subr.mxu0 %v384
  %3609 = vmatpush1.msra.mxu0 %v383
  %3610 = vmatprep.subr.mxu0 %v392
  %3611 = vmatpush1.msra.mxu0 %v391
  %3612 = vmatprep.subr.mxu0 %v400
  %3613 = vmatpush1.msra.mxu0 %v399
  %3614 = vmatprep.subr.mxu0 %v408
  %3615 = vmatpush1.msra.mxu0 %v407
  %3616 = vmatprep.mubr.f32.mxu0 %v3336
  %3617 = vmatmul.mubr.f32.gmra.mrb[0].mxu0 %v3335
  %v3618 = vpop.f32.mrb[0].mxu0
  %v3619 = vadd.f32 0.0, %v3618
  %v3620 = vpop.f32.mrb[0].mxu0
  %v3621 = vadd.f32 0.0, %v3620
  %3622 = vdwg.mxu0
  %v3631 = vrot.slane %v3406, 2
  %v3632 = vrot.slane %v3408, 2
  %v3633 = vrot.slane %v3477, 2
  %v3634 = vrot.slane %v3479, 2
  %v3635 = vrot.slane %v3548, 2
  %v3636 = vrot.slane %v3550, 2
  %v3637 = vrot.slane %v3619, 2
  %v3638 = vrot.slane %v3621, 2
  %v3647 = vadd.f32 %v524, %v3631
  %v3648 = vadd.f32 %v526, %v3632
  %v3649 = vadd.f32 %v601, %v3633
  %v3650 = vadd.f32 %v603, %v3634
  %v3651 = vadd.f32 %v678, %v3635
  %v3652 = vadd.f32 %v680, %v3636
  %v3653 = vadd.f32 %v755, %v3637
  %v3654 = vadd.f32 %v757, %v3638
  %v3655 = vsub.f32 0.0, %v3647
  %v3656 = vsub.f32 0.0, %v3648
  %v3657 = vmul.f32 %v3655, 1.442695
  %v3658 = vpow.pop %v3657
  %v3659 = vmul.f32 %v3656, 1.442695
  %v3660 = vpow.pop %v3659
  %v3661 = vadd.f32 %v3658, 1.0
  %v3662 = vadd.f32 %v3660, 1.0
  %v3663 = vrcp.pop %v3661
  %v3664 = vmul.f32 1.0, %v3663
  %v3665 = vrcp.pop %v3662
  %v3666 = vmul.f32 1.0, %v3665
  %v3667 = vsub.f32 0.0, %v3649
  %v3668 = vsub.f32 0.0, %v3650
  %v3669 = vmul.f32 %v3667, 1.442695
  %v3670 = vpow.pop %v3669
  %v3671 = vmul.f32 %v3668, 1.442695
  %v3672 = vpow.pop %v3671
  %v3673 = vadd.f32 %v3670, 1.0
  %v3674 = vadd.f32 %v3672, 1.0
  %v3675 = vrcp.pop %v3673
  %v3676 = vmul.f32 1.0, %v3675
  %v3677 = vrcp.pop %v3674
  %v3678 = vmul.f32 1.0, %v3677
  %v3679 = vtanh.pop %v3651
  %v3680 = vtanh.pop %v3652
  %v3681 = vsub.f32 0.0, %v3653
  %v3682 = vsub.f32 0.0, %v3654
  %v3683 = vmul.f32 %v3681, 1.442695
  %v3684 = vpow.pop %v3683
  %v3685 = vmul.f32 %v3682, 1.442695
  %v3686 = vpow.pop %v3685
  %v3687 = vadd.f32 %v3684, 1.0
  %v3688 = vadd.f32 %v3686, 1.0
  %v3689 = vrcp.pop %v3687
  %v3690 = vmul.f32 1.0, %v3689
  %v3691 = vrcp.pop %v3688
  %v3692 = vmul.f32 1.0, %v3691
  %v3695 = vrot.slane %v3325, 6
  %v3696 = vrot.slane %v3326, 6
  %v3699 = vmul.f32 %v3676, %v3695
  %v3700 = vmul.f32 %v3678, %v3696
  %v3701 = vmul.f32 %v3664, %v3679
  %v3702 = vmul.f32 %v3666, %v3680
  %v3703 = vadd.f32 %v3699, %v3701
  %v3704 = vadd.f32 %v3700, %v3702
  %v3705 = vtanh.pop %v3703
  %v3706 = vtanh.pop %v3704
  %v3707 = vmul.f32 %v3690, %v3705
  %v3708 = vmul.f32 %v3692, %v3706
  %3709 = vst [vmem:[#allocation2 + $0x10] sm:$0xc0] %v3707
  %3710 = vst [vmem:[#allocation2 + $0x18] sm:$0xc0] %v3708
  %v3711 = vld [vmem:[#allocation2] sm:$0xff]
  %v3712 = vld [vmem:[#allocation2 + $0x8] sm:$0xff]
  %v3713 = vld [vmem:[#allocation2 + $0x10] sm:$0xff]
  %v3714 = vld [vmem:[#allocation2 + $0x18] sm:$0xff]
  %v3715 = vld [vmem:[%s4] sm:$0xff]
  %v3716 = vld [vmem:[%s4 + $0x8] sm:$0xff]
  %v3717 = vld [vmem:[%s4 + $0x10] sm:$0xff]
  %v3718 = vld [vmem:[%s4 + $0x18] sm:$0xff]
  %v3719 = vld [vmem:[%s4 + $0x20] sm:$0xff]
  %v3720 = vld [vmem:[%s4 + $0x28] sm:$0xff]
  %v3721 = vld [vmem:[%s4 + $0x30] sm:$0xff]
  %v3722 = vld [vmem:[%s4 + $0x38] sm:$0xff]
  %v3723 = vld [vmem:[%s4 + $0x40] sm:$0xff]
  %v3724 = vld [vmem:[%s4 + $0x48] sm:$0xff]
  %v3725 = vld [vmem:[%s4 + $0x50] sm:$0xff]
  %v3726 = vld [vmem:[%s4 + $0x58] sm:$0xff]
  %v3727 = vld [vmem:[%s4 + $0x60] sm:$0xff]
  %v3728 = vld [vmem:[%s4 + $0x68] sm:$0xff]
  %v3729 = vld [vmem:[%s4 + $0x70] sm:$0xff]
  %v3730 = vld [vmem:[%s4 + $0x78] sm:$0xff]
  %v3731 = vld [vmem:[%s4 + $0x80] sm:$0xff]
  %v3732 = vld [vmem:[%s4 + $0x88] sm:$0xff]
  %v3733 = vld [vmem:[%s4 + $0x90] sm:$0xff]
  %v3734 = vld [vmem:[%s4 + $0x98] sm:$0xff]
  %v3735 = vld [vmem:[%s4 + $0xa0] sm:$0xff]
  %v3736 = vld [vmem:[%s4 + $0xa8] sm:$0xff]
  %v3737 = vld [vmem:[%s4 + $0xb0] sm:$0xff]
  %v3738 = vld [vmem:[%s4 + $0xb8] sm:$0xff]
  %v3739 = vld [vmem:[%s4 + $0xc0] sm:$0xff]
  %v3740 = vld [vmem:[%s4 + $0xc8] sm:$0xff]
  %v3741 = vld [vmem:[%s4 + $0xd0] sm:$0xff]
  %v3742 = vld [vmem:[%s4 + $0xd8] sm:$0xff]
  %v3743 = vld [vmem:[%s4 + $0xe0] sm:$0xff]
  %v3744 = vld [vmem:[%s4 + $0xe8] sm:$0xff]
  %v3745 = vld [vmem:[%s4 + $0xf0] sm:$0xff]
  %v3746 = vld [vmem:[%s4 + $0xf8] sm:$0xff]
  %v3747 = vld [vmem:[%s5] sm:$0x1]
  %v3749 = vlaneseq
  %v3750 = vshrl.u32 %v3749, 7
  %v3751 = vsub.s32 0, %v3750
  %v3752 = vrot.slane %v3747, %v3751
  %3754 = vmatprep.subr.mxu0 0.0
  %3755 = vmatpush1.msra.mxu0 %v3715
  %3756 = vmatprep.subr.mxu0 0.0
  %3757 = vmatpush1.msra.mxu0 %v3716
  %3758 = vmatprep.subr.mxu0 0.0
  %3759 = vmatpush1.msra.mxu0 %v3717
  %3760 = vmatprep.subr.mxu0 0.0
  %3761 = vmatpush1.msra.mxu0 %v3718
  %3762 = vmatprep.subr.mxu0 0.0
  %3763 = vmatpush1.msra.mxu0 %v3719
  %3764 = vmatprep.subr.mxu0 0.0
  %3765 = vmatpush1.msra.mxu0 %v3720
  %3766 = vmatprep.subr.mxu0 0.0
  %3767 = vmatpush1.msra.mxu0 %v3721
  %3768 = vmatprep.subr.mxu0 0.0
  %3769 = vmatpush1.msra.mxu0 %v3722
  %3770 = vmatprep.subr.mxu0 0.0
  %3771 = vmatpush1.msra.mxu0 %v3723
  %3772 = vmatprep.subr.mxu0 0.0
  %3773 = vmatpush1.msra.mxu0 %v3724
  %3774 = vmatprep.subr.mxu0 0.0
  %3775 = vmatpush1.msra.mxu0 %v3725
  %3776 = vmatprep.subr.mxu0 0.0
  %3777 = vmatpush1.msra.mxu0 %v3726
  %3778 = vmatprep.subr.mxu0 0.0
  %3779 = vmatpush1.msra.mxu0 %v3727
  %3780 = vmatprep.subr.mxu0 0.0
  %3781 = vmatpush1.msra.mxu0 %v3728
  %3782 = vmatprep.subr.mxu0 0.0
  %3783 = vmatpush1.msra.mxu0 %v3729
  %3784 = vmatprep.subr.mxu0 0.0
  %3785 = vmatpush1.msra.mxu0 %v3730
  %3786 = vmatprep.subr.mxu0 0.0
  %3787 = vmatpush1.msra.mxu0 %v3731
  %3788 = vmatprep.subr.mxu0 0.0
  %3789 = vmatpush1.msra.mxu0 %v3732
  %3790 = vmatprep.subr.mxu0 0.0
  %3791 = vmatpush1.msra.mxu0 %v3733
  %3792 = vmatprep.subr.mxu0 0.0
  %3793 = vmatpush1.msra.mxu0 %v3734
  %3794 = vmatprep.subr.mxu0 0.0
  %3795 = vmatpush1.msra.mxu0 %v3735
  %3796 = vmatprep.subr.mxu0 0.0
  %3797 = vmatpush1.msra.mxu0 %v3736
  %3798 = vmatprep.subr.mxu0 0.0
  %3799 = vmatpush1.msra.mxu0 %v3737
  %3800 = vmatprep.subr.mxu0 0.0
  %3801 = vmatpush1.msra.mxu0 %v3738
  %3802 = vmatprep.subr.mxu0 0.0
  %3803 = vmatpush1.msra.mxu0 %v3739
  %3804 = vmatprep.subr.mxu0 0.0
  %3805 = vmatpush1.msra.mxu0 %v3740
  %3806 = vmatprep.subr.mxu0 0.0
  %3807 = vmatpush1.msra.mxu0 %v3741
  %3808 = vmatprep.subr.mxu0 0.0
  %3809 = vmatpush1.msra.mxu0 %v3742
  %3810 = vmatprep.subr.mxu0 0.0
  %3811 = vmatpush1.msra.mxu0 %v3743
  %3812 = vmatprep.subr.mxu0 0.0
  %3813 = vmatpush1.msra.mxu0 %v3744
  %3814 = vmatprep.subr.mxu0 0.0
  %3815 = vmatpush1.msra.mxu0 %v3745
  %3816 = vmatprep.subr.mxu0 0.0
  %3817 = vmatpush1.msra.mxu0 %v3746
  %3818 = vmatprep.mubr.f32.mxu0 %v3712
  %3819 = vmatmul.mubr.f32.gmra.mrb[0].mxu0 %v3711
  %v3820 = vpop.f32.mrb[0].mxu0
  %v3821 = vadd.f32 %v3752, %v3820
  %v3822 = vpop.f32.mrb[0].mxu0
  %3823 = vmatprep.mubr.f32.mxu0 %v3714
  %3824 = vmatmul.mubr.f32.gmra.mrb[0].mxu0 %v3713
  %v3825 = vpop.f32.mrb[0].mxu0
  %v3826 = vadd.f32 %v3752, %v3825
  %v3827 = vpop.f32.mrb[0].mxu0
  %3828 = vdwg.mxu0
  %3829 = vst [vmem:[%s6] sm:$0xff] %v3821
  %3830 = vst [vmem:[%s6 + $0x8] sm:$0xff] %v3826
  // Predicated region
  $region26: #{rnn_text_generator_forward.1} parent=0 // pred_check
    _
  $region27: #{rnn_text_generator_forward.1} parent=0 // pred_check_branch
    %3832 = sbr.rel (0) target = $region29
  $region28: #{rnn_text_generator_forward.1} parent=0 // pred_region
    _
  $region29: #{rnn_text_generator_forward.1} parent=0 // pred_fallthru
    _
  // Predicated region
  $region30: #{rnn_text_generator_forward.1} parent=0 // pred_check
    _
  $region31: #{rnn_text_generator_forward.1} parent=0 // pred_check_branch
    %3834 = sbr.rel (0) target = $region33
  $region32: #{rnn_text_generator_forward.1} parent=0 // pred_region
    _
  $region33: #{rnn_text_generator_forward.1} parent=0 // pred_fallthru
    _

</llo_original>
